<compile_context>
chip_gen: v7x
topology: tpu7x:2x2x1
jax: 0.10.0
libtpu: 0.0.40
codegen_flags: <defaults>
</compile_context>

<pallas_src>
import functools

import jax
import jax.numpy as jnp
from jax import lax
from jax.experimental import pallas as pl
from jax.experimental.pallas import tpu as pltpu


def _box_aware_xcorr_kernel(K,
                            tfeat_ref, sbc_ref,
                            w1_ref, w2_ref, w3_ref, w4_ref, w5_ref, b5_ref,
                            out_ref):
    # Per grid step = block_b batch elements:
    #   tfeat_ref: (Bblk, M, C_in)  template [xyz(3) | bc(9) | feature(f)], f32
    #   sbc_ref:   (Bblk, BC, N)    search box-cloud coords, channels-first, f32
    #   w*_ref:    (in, out)        1x1-conv weights, BN folded, bf16
    #   b5_ref:    (1, out)         bias of the final (no-BN) conv, f32
    #   out_ref:   (Bblk, C_out, N) channels-first (PyTorch NCW) output
    Bblk, M, c_in = tfeat_ref.shape
    BC = sbc_ref.shape[1]
    N = sbc_ref.shape[2]
    hidden = w3_ref.shape[1]
    out_c = w5_ref.shape[1]

    tfeat = tfeat_ref[...]                       # (Bblk, M, C_in)
    sbc = sbc_ref[...]                           # (Bblk, BC, N)

    # --- pairwise squared bc distances, d[b, m, n]  (pure VPU broadcast-sub-
    #     FMA: template channel is a keepdims (M,1) column so M stays on
    #     sublanes, search channel is a natural (1,N) row; no per-channel
    #     relayouts, no s2+t2-2*cross cancellation) ---
    diff = tfeat[:, :, 3:4] - sbc[:, 0:1, :]
    d = diff * diff
    for c in range(1, BC):
        diff = tfeat[:, :, 3 + c:4 + c] - sbc[:, c:c + 1, :]
        d = d + diff * diff                                  # (Bblk, M, N) f32

    # --- SharedMLP hoisted out of the K loop: applied once to the M template
    #     rows (gather commutes with the pointwise MLP), batch-folded matmuls ---
    t2d = tfeat.reshape(Bblk * M, c_in).astype(jnp.bfloat16)
    h = jnp.maximum(jnp.dot(t2d, w1_ref[...],
                            preferred_element_type=jnp.float32), 0.0)
    h = jnp.maximum(jnp.dot(h.astype(jnp.bfloat16), w2_ref[...],
                            preferred_element_type=jnp.float32), 0.0)
    h = jnp.maximum(jnp.dot(h.astype(jnp.bfloat16), w3_ref[...],
                            preferred_element_type=jnp.float32), 0.0)
    h_template = h.reshape(Bblk, M, hidden).astype(jnp.bfloat16)

    # --- k-NN selection (reductions over the sublane axis M) + one-hot MXU
    #     gather (standard matmul) + running max over k ---
    col_mn = lax.broadcasted_iota(jnp.int32, (Bblk, M, N), 1)
    col_nm = lax.broadcasted_iota(jnp.int32, (Bblk, N, M), 2)
    acc = jnp.zeros((Bblk, N, hidden), jnp.float32)   # ReLU outputs >= 0
    for _ in range(K):
        minval = jnp.min(d, axis=1, keepdims=True)                  # (Bblk,1,N)
        is_min = d <= minval
        # smallest template index among ties -> matches stable argsort
        fi_row = jnp.min(jnp.where(is_min, col_mn, M), axis=1, keepdims=True)
        sel_mn = col_mn == fi_row                                   # (Bblk,M,N)
        fi_col = jnp.transpose(fi_row, (0, 2, 1))                   # (Bblk,N,1)
        onehot = (col_nm == fi_col).astype(jnp.bfloat16)            # (Bblk,N,M)
        g = jnp.einsum('bnm,bmh->bnh', onehot, h_template,
                       preferred_element_type=jnp.float32)          # (Bblk,N,H)
        acc = jnp.maximum(acc, g)
        d = jnp.where(sel_mn, jnp.inf, d)                           # drop chosen

    # --- fea_layer: conv1d(H)+BN+ReLU, conv1d(out) no activation ---
    acc2d = acc.reshape(Bblk * N, hidden).astype(jnp.bfloat16)
    y = jnp.maximum(jnp.dot(acc2d, w4_ref[...],
                            preferred_element_type=jnp.float32), 0.0)
    out = jnp.dot(y.astype(jnp.bfloat16), w5_ref[...],
                  preferred_element_type=jnp.float32) + b5_ref[...]  # (Bblk*N,Co)
    out3 = out.reshape(Bblk, N, out_c)
    # Output is tiny; one small transpose keeps the (B, out, N) NCW layout.
    out_ref[...] = jnp.transpose(out3, (0, 2, 1)).astype(out_ref.dtype)


def box_aware_xcorr(template_feature, search_feature, template_xyz,
                    template_bc, search_bc, params, k=8, block_b=None):
    """template_feature: (B,f,M)  search_feature: (B,f,N) (unused, defaults)
       template_xyz: (B,M,3)  template_bc: (B,M,9)  search_bc: (B,N,9)
       returns: (B, out_channel, N)  (matches PyTorch NCW output)."""
    del search_feature  # use_search_bc=False, use_search_feature=False (defaults)
    w1, w2, w3, w4, w5, b5 = params
    B, f, M = template_feature.shape
    N = search_bc.shape[1]
    bc = template_bc.shape[-1]
    c_in = w1.shape[0]
    hidden = w1.shape[1]
    out_c = w5.shape[1]
    assert k <= M, f"k={k} must be <= number of template points M={M}"

    # channel concat [xyz | bc | feature], channels-last; columns 3:3+bc also
    # serve as the template side of the distance computation.
    tfeat_cat = jnp.concatenate(
        [template_xyz, template_bc, jnp.transpose(template_feature, (0, 2, 1))],
        axis=-1).astype(jnp.float32)
    # search bc channels-first so each distance channel slice is a (1, N) row.
    sbc_cf = jnp.transpose(search_bc, (0, 2, 1)).astype(jnp.float32)  # (B,bc,N)

    # block_b: as big as possible (amortize per-grid-step overhead and fill
    # MXU rows) subject to block_b*N <= 2048, but always keep >= 2 grid steps
    # whenever B >= 2 so both v7x TensorCores get work (no downside on the
    # single-TC v5e/v6e beyond one extra ~0.35us step).
    if block_b is None:
        block_b = 1
        for cand in range(1, B + 1):
            if B % cand:
                continue
            if cand * N > 2048:
                continue
            if B >= 2 and B // cand < 2:
                continue
            block_b = cand
    assert B % block_b == 0, (B, block_b)

    # bf16 matmul operands, f32 accumulation inside the kernel.
    w1b, w2b, w3b, w4b, w5b = (w.astype(jnp.bfloat16)
                               for w in (w1, w2, w3, w4, w5))
    b5f = b5.astype(jnp.float32)

    # Explicit VMEM budget (v7x has half the VMEM of v5e/v6e): double-buffered
    # I/O blocks + weights + live intermediates, with a 2x margin, clamped to
    # a safe [32 MiB, 48 MiB] window.
    io_words = 2 * block_b * (M * c_in + bc * N + out_c * N)
    w_words = 2 * (c_in * hidden + 3 * hidden * hidden + hidden * out_c + out_c)
    live_words = block_b * (8 * M * N + 5 * N * hidden + 3 * M * hidden)
    vmem_limit = int(min(max(2 * 4 * (io_words + w_words + live_words),
                             32 * 1024 * 1024), 48 * 1024 * 1024))

    flops = int(B * M * N * (3 * bc + 4 * k)                   # dists + kNN
                + 2 * B * M * hidden * (c_in + 2 * hidden)     # shared MLP
                + 2 * B * k * N * M * hidden                   # one-hot gather
                + 2 * B * N * hidden * (hidden + out_c))       # fea_layer
    bytes_accessed = int(4 * B * (M * c_in + bc * N + out_c * N)
                         + 2 * (c_in * hidden + 3 * hidden * hidden
                                + hidden * out_c) + 4 * out_c)

    kernel = functools.partial(_box_aware_xcorr_kernel, k)

    out = pl.pallas_call(
        kernel,
        out_shape=jax.ShapeDtypeStruct((B, out_c, N), jnp.float32),
        grid_spec=pltpu.PrefetchScalarGridSpec(
            num_scalar_prefetch=0,
            grid=(B // block_b,),
            in_specs=[
                pl.BlockSpec((block_b, M, c_in), lambda b: (b, 0, 0)),
                pl.BlockSpec((block_b, bc, N), lambda b: (b, 0, 0)),
                pl.BlockSpec((c_in, hidden), lambda b: (0, 0)),
                pl.BlockSpec((hidden, hidden), lambda b: (0, 0)),
                pl.BlockSpec((hidden, hidden), lambda b: (0, 0)),
                pl.BlockSpec((hidden, hidden), lambda b: (0, 0)),
                pl.BlockSpec((hidden, out_c), lambda b: (0, 0)),
                pl.BlockSpec((1, out_c), lambda b: (0, 0)),
            ],
            out_specs=pl.BlockSpec((block_b, out_c, N), lambda b: (b, 0, 0)),
        ),
        compiler_params=pltpu.CompilerParams(
            dimension_semantics=("parallel",),
            vmem_limit_bytes=vmem_limit),
        cost_estimate=pl.CostEstimate(flops=flops, transcendentals=0,
                                      bytes_accessed=bytes_accessed),
    )(tfeat_cat, sbc_cf, w1b, w2b, w3b, w4b, w5b, b5f)

    return out  # (B, out_channel, N) — no wrapper transpose needed


def init_params(key, feature_channel, hidden_channel, out_channel, bc_channel=9):
    """Deterministic synthetic weights. BN (eval, default stats) folded in."""
    c_in = feature_channel + 3 + bc_channel
    ks = jax.random.split(key, 6)
    bn_scale = 1.0 / jnp.sqrt(jnp.float32(1.0 + 1e-5))  # gamma=1, mean=0, var=1
    w1 = jax.random.normal(ks[0], (c_in, hidden_channel), jnp.float32) * 0.2 * bn_scale
    w2 = jax.random.normal(ks[1], (hidden_channel, hidden_channel), jnp.float32) * 0.2 * bn_scale
    w3 = jax.random.normal(ks[2], (hidden_channel, hidden_channel), jnp.float32) * 0.2 * bn_scale
    w4 = jax.random.normal(ks[3], (hidden_channel, hidden_channel), jnp.float32) * 0.2 * bn_scale
    w5 = jax.random.normal(ks[4], (hidden_channel, out_channel), jnp.float32) * 0.2
    b5 = jax.random.normal(ks[5], (1, out_channel), jnp.float32) * 0.1
    return (w1, w2, w3, w4, w5, b5)


def reference(template_feature, template_xyz, template_bc, search_bc, params, k=8):
    """Plain-JAX (f32) mirror of the PyTorch forward, for correctness checking."""
    w1, w2, w3, w4, w5, b5 = params
    tfeat_cat = jnp.concatenate(
        [template_xyz, template_bc, jnp.transpose(template_feature, (0, 2, 1))],
        axis=-1)
    dist = jnp.linalg.norm(template_bc[:, :, None, :] - search_bc[:, None, :, :],
                           axis=-1)                       # (B, M, N)
    idx = jnp.argsort(dist, axis=1)[:, :k, :]             # (B, k, N)
    idx = jnp.transpose(idx, (0, 2, 1))                   # (B, N, k)
    gathered = jax.vmap(lambda feat, ind: feat[ind])(tfeat_cat, idx)  # (B,N,k,C_in)
    h = jax.nn.relu(gathered @ w1)
    h = jax.nn.relu(h @ w2)
    h = jax.nn.relu(h @ w3)
    fused = jnp.max(h, axis=2)                            # (B, N, H)
    y = jax.nn.relu(fused @ w4)
    out = y @ w5 + b5[0]
    return jnp.transpose(out, (0, 2, 1))                  # (B, out, N)


if __name__ == "__main__":
    key = jax.random.PRNGKey(0)
    B, f, M, N = 2, 4, 64, 64
    hidden, out_c, K = 32, 32, 8

    k_tf, k_sf, k_txyz, k_tbc, k_sbc, k_p = jax.random.split(key, 6)
    template_feature = jax.random.normal(k_tf, (B, f, M), jnp.float32)
    search_feature = jax.random.normal(k_sf, (B, f, N), jnp.float32)
    template_xyz = jax.random.normal(k_txyz, (B, M, 3), jnp.float32)
    template_bc = jax.random.normal(k_tbc, (B, M, 9), jnp.float32)
    search_bc = jax.random.normal(k_sbc, (B, N, 9), jnp.float32)

    params = init_params(k_p, f, hidden, out_c)

    out = box_aware_xcorr(template_feature, search_feature, template_xyz,
                          template_bc, search_bc, params, k=K)
    out = jax.block_until_ready(out)
    assert out.shape == (B, out_c, N), out.shape

    ref = reference(template_feature, template_xyz, template_bc, search_bc,
                    params, k=K)
    # Tolerance loosened vs. a pure-f32 kernel because matmul operands are
    # bf16 (f32 accumulation); kNN selection itself is done in f32 so it
    # matches the reference exactly.
    if not jnp.allclose(out, ref, rtol=5e-2, atol=5e-2):
        max_err = jnp.max(jnp.abs(out - ref))
        raise AssertionError(f"mismatch vs reference, max abs err = {max_err}")

    print("KERNEL_OK")
</pallas_src>

<mosaic_0001>
module attributes {stable_mosaic.version = 11 : i64} {
  func.func @_box_aware_xcorr_kernel(%arg0: i32, %arg1: memref<1x64x16xf32, #tpu.memory_space<vmem>>, %arg2: memref<1x9x64xf32, #tpu.memory_space<vmem>>, %arg3: memref<16x32xbf16, #tpu.memory_space<vmem>>, %arg4: memref<32x32xbf16, #tpu.memory_space<vmem>>, %arg5: memref<32x32xbf16, #tpu.memory_space<vmem>>, %arg6: memref<32x32xbf16, #tpu.memory_space<vmem>>, %arg7: memref<32x32xbf16, #tpu.memory_space<vmem>>, %arg8: memref<1x32xf32, #tpu.memory_space<vmem>>, %arg9: memref<1x32x64xf32, #tpu.memory_space<vmem>>) attributes {dimension_semantics = [#tpu.dimension_semantics<parallel>], iteration_bounds = array<i64: 2>, scalar_prefetch = 0 : i64, scratch_operands = 0 : i64, tpu.core_type = #tpu.core_type<tc>, window_params = [{transform_indices = @transform_0, window_bounds = array<i64: 1, 64, 16>}, {transform_indices = @transform_1, window_bounds = array<i64: 1, 9, 64>}, {pipeline_mode = #tpu.pipeline_mode<synchronous>, transform_indices = @transform_2, window_bounds = array<i64: 16, 32>}, {pipeline_mode = #tpu.pipeline_mode<synchronous>, transform_indices = @transform_3, window_bounds = array<i64: 32, 32>}, {pipeline_mode = #tpu.pipeline_mode<synchronous>, transform_indices = @transform_4, window_bounds = array<i64: 32, 32>}, {pipeline_mode = #tpu.pipeline_mode<synchronous>, transform_indices = @transform_5, window_bounds = array<i64: 32, 32>}, {pipeline_mode = #tpu.pipeline_mode<synchronous>, transform_indices = @transform_6, window_bounds = array<i64: 32, 32>}, {pipeline_mode = #tpu.pipeline_mode<synchronous>, transform_indices = @transform_7, window_bounds = array<i64: 1, 32>}, {transform_indices = @transform_8, window_bounds = array<i64: 1, 32, 64>}]} {
    %c0 = arith.constant 0 : index
    %c0_0 = arith.constant 0 : index
    %c0_1 = arith.constant 0 : index
    %0 = vector.load %arg1[%c0, %c0_0, %c0_1] : memref<1x64x16xf32, #tpu.memory_space<vmem>>, vector<1x64x16xf32>
    %c0_2 = arith.constant 0 : index
    %c0_3 = arith.constant 0 : index
    %c0_4 = arith.constant 0 : index
    %1 = vector.load %arg2[%c0_2, %c0_3, %c0_4] : memref<1x9x64xf32, #tpu.memory_space<vmem>>, vector<1x9x64xf32>
    %2 = vector.extract_strided_slice %0 {offsets = [0, 0, 3], sizes = [1, 64, 1], strides = [1, 1, 1]} : vector<1x64x16xf32> to vector<1x64x1xf32>
    %3 = vector.extract_strided_slice %1 {offsets = [0, 0, 0], sizes = [1, 1, 64], strides = [1, 1, 1]} : vector<1x9x64xf32> to vector<1x1x64xf32>
    %4 = vector.broadcast %2 : vector<1x64x1xf32> to vector<1x64x64xf32>
    %5 = vector.broadcast %3 : vector<1x1x64xf32> to vector<1x64x64xf32>
    %6 = arith.subf %4, %5 : vector<1x64x64xf32>
    %7 = arith.mulf %6, %6 : vector<1x64x64xf32>
    %8 = vector.extract_strided_slice %0 {offsets = [0, 0, 4], sizes = [1, 64, 1], strides = [1, 1, 1]} : vector<1x64x16xf32> to vector<1x64x1xf32>
    %9 = vector.extract_strided_slice %1 {offsets = [0, 1, 0], sizes = [1, 1, 64], strides = [1, 1, 1]} : vector<1x9x64xf32> to vector<1x1x64xf32>
    %10 = vector.broadcast %8 : vector<1x64x1xf32> to vector<1x64x64xf32>
    %11 = vector.broadcast %9 : vector<1x1x64xf32> to vector<1x64x64xf32>
    %12 = arith.subf %10, %11 : vector<1x64x64xf32>
    %13 = arith.mulf %12, %12 : vector<1x64x64xf32>
    %14 = arith.addf %7, %13 : vector<1x64x64xf32>
    %15 = vector.extract_strided_slice %0 {offsets = [0, 0, 5], sizes = [1, 64, 1], strides = [1, 1, 1]} : vector<1x64x16xf32> to vector<1x64x1xf32>
    %16 = vector.extract_strided_slice %1 {offsets = [0, 2, 0], sizes = [1, 1, 64], strides = [1, 1, 1]} : vector<1x9x64xf32> to vector<1x1x64xf32>
    %17 = vector.broadcast %15 : vector<1x64x1xf32> to vector<1x64x64xf32>
    %18 = vector.broadcast %16 : vector<1x1x64xf32> to vector<1x64x64xf32>
    %19 = arith.subf %17, %18 : vector<1x64x64xf32>
    %20 = arith.mulf %19, %19 : vector<1x64x64xf32>
    %21 = arith.addf %14, %20 : vector<1x64x64xf32>
    %22 = vector.extract_strided_slice %0 {offsets = [0, 0, 6], sizes = [1, 64, 1], strides = [1, 1, 1]} : vector<1x64x16xf32> to vector<1x64x1xf32>
    %23 = vector.extract_strided_slice %1 {offsets = [0, 3, 0], sizes = [1, 1, 64], strides = [1, 1, 1]} : vector<1x9x64xf32> to vector<1x1x64xf32>
    %24 = vector.broadcast %22 : vector<1x64x1xf32> to vector<1x64x64xf32>
    %25 = vector.broadcast %23 : vector<1x1x64xf32> to vector<1x64x64xf32>
    %26 = arith.subf %24, %25 : vector<1x64x64xf32>
    %27 = arith.mulf %26, %26 : vector<1x64x64xf32>
    %28 = arith.addf %21, %27 : vector<1x64x64xf32>
    %29 = vector.extract_strided_slice %0 {offsets = [0, 0, 7], sizes = [1, 64, 1], strides = [1, 1, 1]} : vector<1x64x16xf32> to vector<1x64x1xf32>
    %30 = vector.extract_strided_slice %1 {offsets = [0, 4, 0], sizes = [1, 1, 64], strides = [1, 1, 1]} : vector<1x9x64xf32> to vector<1x1x64xf32>
    %31 = vector.broadcast %29 : vector<1x64x1xf32> to vector<1x64x64xf32>
    %32 = vector.broadcast %30 : vector<1x1x64xf32> to vector<1x64x64xf32>
    %33 = arith.subf %31, %32 : vector<1x64x64xf32>
    %34 = arith.mulf %33, %33 : vector<1x64x64xf32>
    %35 = arith.addf %28, %34 : vector<1x64x64xf32>
    %36 = vector.extract_strided_slice %0 {offsets = [0, 0, 8], sizes = [1, 64, 1], strides = [1, 1, 1]} : vector<1x64x16xf32> to vector<1x64x1xf32>
    %37 = vector.extract_strided_slice %1 {offsets = [0, 5, 0], sizes = [1, 1, 64], strides = [1, 1, 1]} : vector<1x9x64xf32> to vector<1x1x64xf32>
    %38 = vector.broadcast %36 : vector<1x64x1xf32> to vector<1x64x64xf32>
    %39 = vector.broadcast %37 : vector<1x1x64xf32> to vector<1x64x64xf32>
    %40 = arith.subf %38, %39 : vector<1x64x64xf32>
    %41 = arith.mulf %40, %40 : vector<1x64x64xf32>
    %42 = arith.addf %35, %41 : vector<1x64x64xf32>
    %43 = vector.extract_strided_slice %0 {offsets = [0, 0, 9], sizes = [1, 64, 1], strides = [1, 1, 1]} : vector<1x64x16xf32> to vector<1x64x1xf32>
    %44 = vector.extract_strided_slice %1 {offsets = [0, 6, 0], sizes = [1, 1, 64], strides = [1, 1, 1]} : vector<1x9x64xf32> to vector<1x1x64xf32>
    %45 = vector.broadcast %43 : vector<1x64x1xf32> to vector<1x64x64xf32>
    %46 = vector.broadcast %44 : vector<1x1x64xf32> to vector<1x64x64xf32>
    %47 = arith.subf %45, %46 : vector<1x64x64xf32>
    %48 = arith.mulf %47, %47 : vector<1x64x64xf32>
    %49 = arith.addf %42, %48 : vector<1x64x64xf32>
    %50 = vector.extract_strided_slice %0 {offsets = [0, 0, 10], sizes = [1, 64, 1], strides = [1, 1, 1]} : vector<1x64x16xf32> to vector<1x64x1xf32>
    %51 = vector.extract_strided_slice %1 {offsets = [0, 7, 0], sizes = [1, 1, 64], strides = [1, 1, 1]} : vector<1x9x64xf32> to vector<1x1x64xf32>
    %52 = vector.broadcast %50 : vector<1x64x1xf32> to vector<1x64x64xf32>
    %53 = vector.broadcast %51 : vector<1x1x64xf32> to vector<1x64x64xf32>
    %54 = arith.subf %52, %53 : vector<1x64x64xf32>
    %55 = arith.mulf %54, %54 : vector<1x64x64xf32>
    %56 = arith.addf %49, %55 : vector<1x64x64xf32>
    %57 = vector.extract_strided_slice %0 {offsets = [0, 0, 11], sizes = [1, 64, 1], strides = [1, 1, 1]} : vector<1x64x16xf32> to vector<1x64x1xf32>
    %58 = vector.extract_strided_slice %1 {offsets = [0, 8, 0], sizes = [1, 1, 64], strides = [1, 1, 1]} : vector<1x9x64xf32> to vector<1x1x64xf32>
    %59 = vector.broadcast %57 : vector<1x64x1xf32> to vector<1x64x64xf32>
    %60 = vector.broadcast %58 : vector<1x1x64xf32> to vector<1x64x64xf32>
    %61 = arith.subf %59, %60 : vector<1x64x64xf32>
    %62 = arith.mulf %61, %61 : vector<1x64x64xf32>
    %63 = arith.addf %56, %62 : vector<1x64x64xf32>
    %64 = vector.shape_cast %0 : vector<1x64x16xf32> to vector<64x16xf32>
    %65 = arith.truncf %64 : vector<64x16xf32> to vector<64x16xbf16>
    %c0_5 = arith.constant 0 : index
    %c0_6 = arith.constant 0 : index
    %66 = vector.load %arg3[%c0_5, %c0_6] : memref<16x32xbf16, #tpu.memory_space<vmem>>, vector<16x32xbf16>
    %cst = arith.constant dense<0.000000e+00> : vector<64x32xf32>
    %67 = tpu.matmul %65, %66, %cst {dimension_numbers = #tpu.dot_dimension_numbers<[1], [0], [0], [1], [0, 0, 1, 1], [], []>} : vector<64x16xbf16>, vector<16x32xbf16>, vector<64x32xf32> -> vector<64x32xf32>
    %cst_7 = arith.constant 0.000000e+00 : f32
    %68 = vector.broadcast %cst_7 : f32 to vector<64x32xf32>
    %69 = arith.maximumf %67, %68 : vector<64x32xf32>
    %70 = arith.truncf %69 : vector<64x32xf32> to vector<64x32xbf16>
    %c0_8 = arith.constant 0 : index
    %c0_9 = arith.constant 0 : index
    %71 = vector.load %arg4[%c0_8, %c0_9] : memref<32x32xbf16, #tpu.memory_space<vmem>>, vector<32x32xbf16>
    %cst_10 = arith.constant dense<0.000000e+00> : vector<64x32xf32>
    %72 = tpu.matmul %70, %71, %cst_10 {dimension_numbers = #tpu.dot_dimension_numbers<[1], [0], [0], [1], [0, 0, 1, 1], [], []>} : vector<64x32xbf16>, vector<32x32xbf16>, vector<64x32xf32> -> vector<64x32xf32>
    %cst_11 = arith.constant 0.000000e+00 : f32
    %73 = vector.broadcast %cst_11 : f32 to vector<64x32xf32>
    %74 = arith.maximumf %72, %73 : vector<64x32xf32>
    %75 = arith.truncf %74 : vector<64x32xf32> to vector<64x32xbf16>
    %c0_12 = arith.constant 0 : index
    %c0_13 = arith.constant 0 : index
    %76 = vector.load %arg5[%c0_12, %c0_13] : memref<32x32xbf16, #tpu.memory_space<vmem>>, vector<32x32xbf16>
    %cst_14 = arith.constant dense<0.000000e+00> : vector<64x32xf32>
    %77 = tpu.matmul %75, %76, %cst_14 {dimension_numbers = #tpu.dot_dimension_numbers<[1], [0], [0], [1], [0, 0, 1, 1], [], []>} : vector<64x32xbf16>, vector<32x32xbf16>, vector<64x32xf32> -> vector<64x32xf32>
    %cst_15 = arith.constant 0.000000e+00 : f32
    %78 = vector.broadcast %cst_15 : f32 to vector<64x32xf32>
    %79 = arith.maximumf %77, %78 : vector<64x32xf32>
    %80 = vector.shape_cast %79 : vector<64x32xf32> to vector<1x64x32xf32>
    %81 = arith.truncf %80 : vector<1x64x32xf32> to vector<1x64x32xbf16>
    %82 = tpu.iota {dimensions = array<i32: 1>} : vector<1x64x64xi32>
    %83 = tpu.iota {dimensions = array<i32: 2>} : vector<1x64x64xi32>
    %cst_16 = arith.constant 0.000000e+00 : f32
    %84 = vector.broadcast %cst_16 : f32 to vector<1x64x32xf32>
    %cst_17 = arith.constant dense<0x7F800000> : vector<1x64xf32>
    %85 = vector.multi_reduction <minimumf>, %63, %cst_17 [1] : vector<1x64x64xf32> to vector<1x64xf32>
    %86 = vector.shape_cast %85 : vector<1x64xf32> to vector<1x1x64xf32>
    %87 = vector.broadcast %86 : vector<1x1x64xf32> to vector<1x64x64xf32>
    %88 = arith.cmpf ole, %63, %87 : vector<1x64x64xf32>
    %c64_i32 = arith.constant 64 : i32
    %89 = vector.broadcast %c64_i32 : i32 to vector<1x64x64xi32>
    %90 = arith.select %88, %82, %89 : vector<1x64x64xi1>, vector<1x64x64xi32>
    %cst_18 = arith.constant dense<2147483647> : vector<1x64xi32>
    %91 = vector.multi_reduction <minsi>, %90, %cst_18 [1] : vector<1x64x64xi32> to vector<1x64xi32>
    %92 = vector.shape_cast %91 : vector<1x64xi32> to vector<1x1x64xi32>
    %93 = vector.broadcast %92 : vector<1x1x64xi32> to vector<1x64x64xi32>
    %94 = arith.cmpi eq, %82, %93 : vector<1x64x64xi32>
    %95 = tpu.transpose %92, [0, 2, 1] : vector<1x1x64xi32> -> vector<1x64x1xi32>
    %96 = vector.broadcast %95 : vector<1x64x1xi32> to vector<1x64x64xi32>
    %97 = arith.cmpi eq, %83, %96 : vector<1x64x64xi32>
    %98 = arith.extui %97 : vector<1x64x64xi1> to vector<1x64x64xi32>
    %99 = arith.sitofp %98 : vector<1x64x64xi32> to vector<1x64x64xf32>
    %100 = arith.truncf %99 : vector<1x64x64xf32> to vector<1x64x64xbf16>
    "tpu.trace_start"() <{level = 10 : i32, message = "bnm,bmh->bnh"}> : () -> ()
    %cst_19 = arith.constant dense<0.000000e+00> : vector<1x64x32xf32>
    %101 = tpu.matmul %100, %81, %cst_19 {dimension_numbers = #tpu.dot_dimension_numbers<[2], [1], [1], [2], [0, 0, 0, 1, 1, 2], [0], [0]>} : vector<1x64x64xbf16>, vector<1x64x32xbf16>, vector<1x64x32xf32> -> vector<1x64x32xf32>
    "tpu.trace_stop"() : () -> ()
    %102 = arith.maximumf %84, %101 : vector<1x64x32xf32>
    %cst_20 = arith.constant 0x7F800000 : f32
    %103 = vector.broadcast %cst_20 : f32 to vector<1x64x64xf32>
    %104 = arith.select %94, %103, %63 : vector<1x64x64xi1>, vector<1x64x64xf32>
    %cst_21 = arith.constant dense<0x7F800000> : vector<1x64xf32>
    %105 = vector.multi_reduction <minimumf>, %104, %cst_21 [1] : vector<1x64x64xf32> to vector<1x64xf32>
    %106 = vector.shape_cast %105 : vector<1x64xf32> to vector<1x1x64xf32>
    %107 = vector.broadcast %106 : vector<1x1x64xf32> to vector<1x64x64xf32>
    %108 = arith.cmpf ole, %104, %107 : vector<1x64x64xf32>
    %c64_i32_22 = arith.constant 64 : i32
    %109 = vector.broadcast %c64_i32_22 : i32 to vector<1x64x64xi32>
    %110 = arith.select %108, %82, %109 : vector<1x64x64xi1>, vector<1x64x64xi32>
    %cst_23 = arith.constant dense<2147483647> : vector<1x64xi32>
    %111 = vector.multi_reduction <minsi>, %110, %cst_23 [1] : vector<1x64x64xi32> to vector<1x64xi32>
    %112 = vector.shape_cast %111 : vector<1x64xi32> to vector<1x1x64xi32>
    %113 = vector.broadcast %112 : vector<1x1x64xi32> to vector<1x64x64xi32>
    %114 = arith.cmpi eq, %82, %113 : vector<1x64x64xi32>
    %115 = tpu.transpose %112, [0, 2, 1] : vector<1x1x64xi32> -> vector<1x64x1xi32>
    %116 = vector.broadcast %115 : vector<1x64x1xi32> to vector<1x64x64xi32>
    %117 = arith.cmpi eq, %83, %116 : vector<1x64x64xi32>
    %118 = arith.extui %117 : vector<1x64x64xi1> to vector<1x64x64xi32>
    %119 = arith.sitofp %118 : vector<1x64x64xi32> to vector<1x64x64xf32>
    %120 = arith.truncf %119 : vector<1x64x64xf32> to vector<1x64x64xbf16>
    "tpu.trace_start"() <{level = 10 : i32, message = "bnm,bmh->bnh"}> : () -> ()
    %cst_24 = arith.constant dense<0.000000e+00> : vector<1x64x32xf32>
    %121 = tpu.matmul %120, %81, %cst_24 {dimension_numbers = #tpu.dot_dimension_numbers<[2], [1], [1], [2], [0, 0, 0, 1, 1, 2], [0], [0]>} : vector<1x64x64xbf16>, vector<1x64x32xbf16>, vector<1x64x32xf32> -> vector<1x64x32xf32>
    "tpu.trace_stop"() : () -> ()
    %122 = arith.maximumf %102, %121 : vector<1x64x32xf32>
    %cst_25 = arith.constant 0x7F800000 : f32
    %123 = vector.broadcast %cst_25 : f32 to vector<1x64x64xf32>
    %124 = arith.select %114, %123, %104 : vector<1x64x64xi1>, vector<1x64x64xf32>
    %cst_26 = arith.constant dense<0x7F800000> : vector<1x64xf32>
    %125 = vector.multi_reduction <minimumf>, %124, %cst_26 [1] : vector<1x64x64xf32> to vector<1x64xf32>
    %126 = vector.shape_cast %125 : vector<1x64xf32> to vector<1x1x64xf32>
    %127 = vector.broadcast %126 : vector<1x1x64xf32> to vector<1x64x64xf32>
    %128 = arith.cmpf ole, %124, %127 : vector<1x64x64xf32>
    %c64_i32_27 = arith.constant 64 : i32
    %129 = vector.broadcast %c64_i32_27 : i32 to vector<1x64x64xi32>
    %130 = arith.select %128, %82, %129 : vector<1x64x64xi1>, vector<1x64x64xi32>
    %cst_28 = arith.constant dense<2147483647> : vector<1x64xi32>
    %131 = vector.multi_reduction <minsi>, %130, %cst_28 [1] : vector<1x64x64xi32> to vector<1x64xi32>
    %132 = vector.shape_cast %131 : vector<1x64xi32> to vector<1x1x64xi32>
    %133 = vector.broadcast %132 : vector<1x1x64xi32> to vector<1x64x64xi32>
    %134 = arith.cmpi eq, %82, %133 : vector<1x64x64xi32>
    %135 = tpu.transpose %132, [0, 2, 1] : vector<1x1x64xi32> -> vector<1x64x1xi32>
    %136 = vector.broadcast %135 : vector<1x64x1xi32> to vector<1x64x64xi32>
    %137 = arith.cmpi eq, %83, %136 : vector<1x64x64xi32>
    %138 = arith.extui %137 : vector<1x64x64xi1> to vector<1x64x64xi32>
    %139 = arith.sitofp %138 : vector<1x64x64xi32> to vector<1x64x64xf32>
    %140 = arith.truncf %139 : vector<1x64x64xf32> to vector<1x64x64xbf16>
    "tpu.trace_start"() <{level = 10 : i32, message = "bnm,bmh->bnh"}> : () -> ()
    %cst_29 = arith.constant dense<0.000000e+00> : vector<1x64x32xf32>
    %141 = tpu.matmul %140, %81, %cst_29 {dimension_numbers = #tpu.dot_dimension_numbers<[2], [1], [1], [2], [0, 0, 0, 1, 1, 2], [0], [0]>} : vector<1x64x64xbf16>, vector<1x64x32xbf16>, vector<1x64x32xf32> -> vector<1x64x32xf32>
    "tpu.trace_stop"() : () -> ()
    %142 = arith.maximumf %122, %141 : vector<1x64x32xf32>
    %cst_30 = arith.constant 0x7F800000 : f32
    %143 = vector.broadcast %cst_30 : f32 to vector<1x64x64xf32>
    %144 = arith.select %134, %143, %124 : vector<1x64x64xi1>, vector<1x64x64xf32>
    %cst_31 = arith.constant dense<0x7F800000> : vector<1x64xf32>
    %145 = vector.multi_reduction <minimumf>, %144, %cst_31 [1] : vector<1x64x64xf32> to vector<1x64xf32>
    %146 = vector.shape_cast %145 : vector<1x64xf32> to vector<1x1x64xf32>
    %147 = vector.broadcast %146 : vector<1x1x64xf32> to vector<1x64x64xf32>
    %148 = arith.cmpf ole, %144, %147 : vector<1x64x64xf32>
    %c64_i32_32 = arith.constant 64 : i32
    %149 = vector.broadcast %c64_i32_32 : i32 to vector<1x64x64xi32>
    %150 = arith.select %148, %82, %149 : vector<1x64x64xi1>, vector<1x64x64xi32>
    %cst_33 = arith.constant dense<2147483647> : vector<1x64xi32>
    %151 = vector.multi_reduction <minsi>, %150, %cst_33 [1] : vector<1x64x64xi32> to vector<1x64xi32>
    %152 = vector.shape_cast %151 : vector<1x64xi32> to vector<1x1x64xi32>
    %153 = vector.broadcast %152 : vector<1x1x64xi32> to vector<1x64x64xi32>
    %154 = arith.cmpi eq, %82, %153 : vector<1x64x64xi32>
    %155 = tpu.transpose %152, [0, 2, 1] : vector<1x1x64xi32> -> vector<1x64x1xi32>
    %156 = vector.broadcast %155 : vector<1x64x1xi32> to vector<1x64x64xi32>
    %157 = arith.cmpi eq, %83, %156 : vector<1x64x64xi32>
    %158 = arith.extui %157 : vector<1x64x64xi1> to vector<1x64x64xi32>
    %159 = arith.sitofp %158 : vector<1x64x64xi32> to vector<1x64x64xf32>
    %160 = arith.truncf %159 : vector<1x64x64xf32> to vector<1x64x64xbf16>
    "tpu.trace_start"() <{level = 10 : i32, message = "bnm,bmh->bnh"}> : () -> ()
    %cst_34 = arith.constant dense<0.000000e+00> : vector<1x64x32xf32>
    %161 = tpu.matmul %160, %81, %cst_34 {dimension_numbers = #tpu.dot_dimension_numbers<[2], [1], [1], [2], [0, 0, 0, 1, 1, 2], [0], [0]>} : vector<1x64x64xbf16>, vector<1x64x32xbf16>, vector<1x64x32xf32> -> vector<1x64x32xf32>
    "tpu.trace_stop"() : () -> ()
    %162 = arith.maximumf %142, %161 : vector<1x64x32xf32>
    %cst_35 = arith.constant 0x7F800000 : f32
    %163 = vector.broadcast %cst_35 : f32 to vector<1x64x64xf32>
    %164 = arith.select %154, %163, %144 : vector<1x64x64xi1>, vector<1x64x64xf32>
    %cst_36 = arith.constant dense<0x7F800000> : vector<1x64xf32>
    %165 = vector.multi_reduction <minimumf>, %164, %cst_36 [1] : vector<1x64x64xf32> to vector<1x64xf32>
    %166 = vector.shape_cast %165 : vector<1x64xf32> to vector<1x1x64xf32>
    %167 = vector.broadcast %166 : vector<1x1x64xf32> to vector<1x64x64xf32>
    %168 = arith.cmpf ole, %164, %167 : vector<1x64x64xf32>
    %c64_i32_37 = arith.constant 64 : i32
    %169 = vector.broadcast %c64_i32_37 : i32 to vector<1x64x64xi32>
    %170 = arith.select %168, %82, %169 : vector<1x64x64xi1>, vector<1x64x64xi32>
    %cst_38 = arith.constant dense<2147483647> : vector<1x64xi32>
    %171 = vector.multi_reduction <minsi>, %170, %cst_38 [1] : vector<1x64x64xi32> to vector<1x64xi32>
    %172 = vector.shape_cast %171 : vector<1x64xi32> to vector<1x1x64xi32>
    %173 = vector.broadcast %172 : vector<1x1x64xi32> to vector<1x64x64xi32>
    %174 = arith.cmpi eq, %82, %173 : vector<1x64x64xi32>
    %175 = tpu.transpose %172, [0, 2, 1] : vector<1x1x64xi32> -> vector<1x64x1xi32>
    %176 = vector.broadcast %175 : vector<1x64x1xi32> to vector<1x64x64xi32>
    %177 = arith.cmpi eq, %83, %176 : vector<1x64x64xi32>
    %178 = arith.extui %177 : vector<1x64x64xi1> to vector<1x64x64xi32>
    %179 = arith.sitofp %178 : vector<1x64x64xi32> to vector<1x64x64xf32>
    %180 = arith.truncf %179 : vector<1x64x64xf32> to vector<1x64x64xbf16>
    "tpu.trace_start"() <{level = 10 : i32, message = "bnm,bmh->bnh"}> : () -> ()
    %cst_39 = arith.constant dense<0.000000e+00> : vector<1x64x32xf32>
    %181 = tpu.matmul %180, %81, %cst_39 {dimension_numbers = #tpu.dot_dimension_numbers<[2], [1], [1], [2], [0, 0, 0, 1, 1, 2], [0], [0]>} : vector<1x64x64xbf16>, vector<1x64x32xbf16>, vector<1x64x32xf32> -> vector<1x64x32xf32>
    "tpu.trace_stop"() : () -> ()
    %182 = arith.maximumf %162, %181 : vector<1x64x32xf32>
    %cst_40 = arith.constant 0x7F800000 : f32
    %183 = vector.broadcast %cst_40 : f32 to vector<1x64x64xf32>
    %184 = arith.select %174, %183, %164 : vector<1x64x64xi1>, vector<1x64x64xf32>
    %cst_41 = arith.constant dense<0x7F800000> : vector<1x64xf32>
    %185 = vector.multi_reduction <minimumf>, %184, %cst_41 [1] : vector<1x64x64xf32> to vector<1x64xf32>
    %186 = vector.shape_cast %185 : vector<1x64xf32> to vector<1x1x64xf32>
    %187 = vector.broadcast %186 : vector<1x1x64xf32> to vector<1x64x64xf32>
    %188 = arith.cmpf ole, %184, %187 : vector<1x64x64xf32>
    %c64_i32_42 = arith.constant 64 : i32
    %189 = vector.broadcast %c64_i32_42 : i32 to vector<1x64x64xi32>
    %190 = arith.select %188, %82, %189 : vector<1x64x64xi1>, vector<1x64x64xi32>
    %cst_43 = arith.constant dense<2147483647> : vector<1x64xi32>
    %191 = vector.multi_reduction <minsi>, %190, %cst_43 [1] : vector<1x64x64xi32> to vector<1x64xi32>
    %192 = vector.shape_cast %191 : vector<1x64xi32> to vector<1x1x64xi32>
    %193 = vector.broadcast %192 : vector<1x1x64xi32> to vector<1x64x64xi32>
    %194 = arith.cmpi eq, %82, %193 : vector<1x64x64xi32>
    %195 = tpu.transpose %192, [0, 2, 1] : vector<1x1x64xi32> -> vector<1x64x1xi32>
    %196 = vector.broadcast %195 : vector<1x64x1xi32> to vector<1x64x64xi32>
    %197 = arith.cmpi eq, %83, %196 : vector<1x64x64xi32>
    %198 = arith.extui %197 : vector<1x64x64xi1> to vector<1x64x64xi32>
    %199 = arith.sitofp %198 : vector<1x64x64xi32> to vector<1x64x64xf32>
    %200 = arith.truncf %199 : vector<1x64x64xf32> to vector<1x64x64xbf16>
    "tpu.trace_start"() <{level = 10 : i32, message = "bnm,bmh->bnh"}> : () -> ()
    %cst_44 = arith.constant dense<0.000000e+00> : vector<1x64x32xf32>
    %201 = tpu.matmul %200, %81, %cst_44 {dimension_numbers = #tpu.dot_dimension_numbers<[2], [1], [1], [2], [0, 0, 0, 1, 1, 2], [0], [0]>} : vector<1x64x64xbf16>, vector<1x64x32xbf16>, vector<1x64x32xf32> -> vector<1x64x32xf32>
    "tpu.trace_stop"() : () -> ()
    %202 = arith.maximumf %182, %201 : vector<1x64x32xf32>
    %cst_45 = arith.constant 0x7F800000 : f32
    %203 = vector.broadcast %cst_45 : f32 to vector<1x64x64xf32>
    %204 = arith.select %194, %203, %184 : vector<1x64x64xi1>, vector<1x64x64xf32>
    %cst_46 = arith.constant dense<0x7F800000> : vector<1x64xf32>
    %205 = vector.multi_reduction <minimumf>, %204, %cst_46 [1] : vector<1x64x64xf32> to vector<1x64xf32>
    %206 = vector.shape_cast %205 : vector<1x64xf32> to vector<1x1x64xf32>
    %207 = vector.broadcast %206 : vector<1x1x64xf32> to vector<1x64x64xf32>
    %208 = arith.cmpf ole, %204, %207 : vector<1x64x64xf32>
    %c64_i32_47 = arith.constant 64 : i32
    %209 = vector.broadcast %c64_i32_47 : i32 to vector<1x64x64xi32>
    %210 = arith.select %208, %82, %209 : vector<1x64x64xi1>, vector<1x64x64xi32>
    %cst_48 = arith.constant dense<2147483647> : vector<1x64xi32>
    %211 = vector.multi_reduction <minsi>, %210, %cst_48 [1] : vector<1x64x64xi32> to vector<1x64xi32>
    %212 = vector.shape_cast %211 : vector<1x64xi32> to vector<1x1x64xi32>
    %213 = vector.broadcast %212 : vector<1x1x64xi32> to vector<1x64x64xi32>
    %214 = arith.cmpi eq, %82, %213 : vector<1x64x64xi32>
    %215 = tpu.transpose %212, [0, 2, 1] : vector<1x1x64xi32> -> vector<1x64x1xi32>
    %216 = vector.broadcast %215 : vector<1x64x1xi32> to vector<1x64x64xi32>
    %217 = arith.cmpi eq, %83, %216 : vector<1x64x64xi32>
    %218 = arith.extui %217 : vector<1x64x64xi1> to vector<1x64x64xi32>
    %219 = arith.sitofp %218 : vector<1x64x64xi32> to vector<1x64x64xf32>
    %220 = arith.truncf %219 : vector<1x64x64xf32> to vector<1x64x64xbf16>
    "tpu.trace_start"() <{level = 10 : i32, message = "bnm,bmh->bnh"}> : () -> ()
    %cst_49 = arith.constant dense<0.000000e+00> : vector<1x64x32xf32>
    %221 = tpu.matmul %220, %81, %cst_49 {dimension_numbers = #tpu.dot_dimension_numbers<[2], [1], [1], [2], [0, 0, 0, 1, 1, 2], [0], [0]>} : vector<1x64x64xbf16>, vector<1x64x32xbf16>, vector<1x64x32xf32> -> vector<1x64x32xf32>
    "tpu.trace_stop"() : () -> ()
    %222 = arith.maximumf %202, %221 : vector<1x64x32xf32>
    %cst_50 = arith.constant 0x7F800000 : f32
    %223 = vector.broadcast %cst_50 : f32 to vector<1x64x64xf32>
    %224 = arith.select %214, %223, %204 : vector<1x64x64xi1>, vector<1x64x64xf32>
    %cst_51 = arith.constant dense<0x7F800000> : vector<1x64xf32>
    %225 = vector.multi_reduction <minimumf>, %224, %cst_51 [1] : vector<1x64x64xf32> to vector<1x64xf32>
    %226 = vector.shape_cast %225 : vector<1x64xf32> to vector<1x1x64xf32>
    %227 = vector.broadcast %226 : vector<1x1x64xf32> to vector<1x64x64xf32>
    %228 = arith.cmpf ole, %224, %227 : vector<1x64x64xf32>
    %c64_i32_52 = arith.constant 64 : i32
    %229 = vector.broadcast %c64_i32_52 : i32 to vector<1x64x64xi32>
    %230 = arith.select %228, %82, %229 : vector<1x64x64xi1>, vector<1x64x64xi32>
    %cst_53 = arith.constant dense<2147483647> : vector<1x64xi32>
    %231 = vector.multi_reduction <minsi>, %230, %cst_53 [1] : vector<1x64x64xi32> to vector<1x64xi32>
    %232 = vector.shape_cast %231 : vector<1x64xi32> to vector<1x1x64xi32>
    %233 = tpu.transpose %232, [0, 2, 1] : vector<1x1x64xi32> -> vector<1x64x1xi32>
    %234 = vector.broadcast %233 : vector<1x64x1xi32> to vector<1x64x64xi32>
    %235 = arith.cmpi eq, %83, %234 : vector<1x64x64xi32>
    %236 = arith.extui %235 : vector<1x64x64xi1> to vector<1x64x64xi32>
    %237 = arith.sitofp %236 : vector<1x64x64xi32> to vector<1x64x64xf32>
    %238 = arith.truncf %237 : vector<1x64x64xf32> to vector<1x64x64xbf16>
    "tpu.trace_start"() <{level = 10 : i32, message = "bnm,bmh->bnh"}> : () -> ()
    %cst_54 = arith.constant dense<0.000000e+00> : vector<1x64x32xf32>
    %239 = tpu.matmul %238, %81, %cst_54 {dimension_numbers = #tpu.dot_dimension_numbers<[2], [1], [1], [2], [0, 0, 0, 1, 1, 2], [0], [0]>} : vector<1x64x64xbf16>, vector<1x64x32xbf16>, vector<1x64x32xf32> -> vector<1x64x32xf32>
    "tpu.trace_stop"() : () -> ()
    %240 = arith.maximumf %222, %239 : vector<1x64x32xf32>
    %241 = vector.shape_cast %240 : vector<1x64x32xf32> to vector<64x32xf32>
    %242 = arith.truncf %241 : vector<64x32xf32> to vector<64x32xbf16>
    %c0_55 = arith.constant 0 : index
    %c0_56 = arith.constant 0 : index
    %243 = vector.load %arg6[%c0_55, %c0_56] : memref<32x32xbf16, #tpu.memory_space<vmem>>, vector<32x32xbf16>
    %cst_57 = arith.constant dense<0.000000e+00> : vector<64x32xf32>
    %244 = tpu.matmul %242, %243, %cst_57 {dimension_numbers = #tpu.dot_dimension_numbers<[1], [0], [0], [1], [0, 0, 1, 1], [], []>} : vector<64x32xbf16>, vector<32x32xbf16>, vector<64x32xf32> -> vector<64x32xf32>
    %cst_58 = arith.constant 0.000000e+00 : f32
    %245 = vector.broadcast %cst_58 : f32 to vector<64x32xf32>
    %246 = arith.maximumf %244, %245 : vector<64x32xf32>
    %247 = arith.truncf %246 : vector<64x32xf32> to vector<64x32xbf16>
    %c0_59 = arith.constant 0 : index
    %c0_60 = arith.constant 0 : index
    %248 = vector.load %arg7[%c0_59, %c0_60] : memref<32x32xbf16, #tpu.memory_space<vmem>>, vector<32x32xbf16>
    %cst_61 = arith.constant dense<0.000000e+00> : vector<64x32xf32>
    %249 = tpu.matmul %247, %248, %cst_61 {dimension_numbers = #tpu.dot_dimension_numbers<[1], [0], [0], [1], [0, 0, 1, 1], [], []>} : vector<64x32xbf16>, vector<32x32xbf16>, vector<64x32xf32> -> vector<64x32xf32>
    %c0_62 = arith.constant 0 : index
    %c0_63 = arith.constant 0 : index
    %250 = vector.load %arg8[%c0_62, %c0_63] : memref<1x32xf32, #tpu.memory_space<vmem>>, vector<1x32xf32>
    %251 = vector.broadcast %250 : vector<1x32xf32> to vector<64x32xf32>
    %252 = arith.addf %249, %251 : vector<64x32xf32>
    %253 = vector.shape_cast %252 : vector<64x32xf32> to vector<1x64x32xf32>
    %254 = tpu.transpose %253, [0, 2, 1] : vector<1x64x32xf32> -> vector<1x32x64xf32>
    %c0_64 = arith.constant 0 : index
    %c0_65 = arith.constant 0 : index
    %c0_66 = arith.constant 0 : index
    %255 = vector.load %arg9[%c0_64, %c0_65, %c0_66] : memref<1x32x64xf32, #tpu.memory_space<vmem>>, vector<1x32x64xf32>
    tpu.vector_store %arg9[%c0_64, %c0_65, %c0_66], %254 {strides = array<i32>} : memref<1x32x64xf32, #tpu.memory_space<vmem>>, vector<1x32x64xf32>,
    return
  }
  func.func @transform_0(%arg0: i32) -> (i32, i32, i32) {
    %c0_i32 = arith.constant 0 : i32
    %c0_i32_0 = arith.constant 0 : i32
    %c0_i32_1 = arith.constant 0 : i32
    return %arg0, %c0_i32, %c0_i32_0 : i32, i32, i32
  }
  func.func @transform_1(%arg0: i32) -> (i32, i32, i32) {
    %c0_i32 = arith.constant 0 : i32
    %c0_i32_0 = arith.constant 0 : i32
    %c0_i32_1 = arith.constant 0 : i32
    return %arg0, %c0_i32, %c0_i32_0 : i32, i32, i32
  }
  func.func @transform_2(%arg0: i32) -> (i32, i32) {
    %c0_i32 = arith.constant 0 : i32
    %c0_i32_0 = arith.constant 0 : i32
    %c0_i32_1 = arith.constant 0 : i32
    return %c0_i32, %c0_i32_0 : i32, i32
  }
  func.func @transform_3(%arg0: i32) -> (i32, i32) {
    %c0_i32 = arith.constant 0 : i32
    %c0_i32_0 = arith.constant 0 : i32
    %c0_i32_1 = arith.constant 0 : i32
    return %c0_i32, %c0_i32_0 : i32, i32
  }
  func.func @transform_4(%arg0: i32) -> (i32, i32) {
    %c0_i32 = arith.constant 0 : i32
    %c0_i32_0 = arith.constant 0 : i32
    %c0_i32_1 = arith.constant 0 : i32
    return %c0_i32, %c0_i32_0 : i32, i32
  }
  func.func @transform_5(%arg0: i32) -> (i32, i32) {
    %c0_i32 = arith.constant 0 : i32
    %c0_i32_0 = arith.constant 0 : i32
    %c0_i32_1 = arith.constant 0 : i32
    return %c0_i32, %c0_i32_0 : i32, i32
  }
  func.func @transform_6(%arg0: i32) -> (i32, i32) {
    %c0_i32 = arith.constant 0 : i32
    %c0_i32_0 = arith.constant 0 : i32
    %c0_i32_1 = arith.constant 0 : i32
    return %c0_i32, %c0_i32_0 : i32, i32
  }
  func.func @transform_7(%arg0: i32) -> (i32, i32) {
    %c0_i32 = arith.constant 0 : i32
    %c0_i32_0 = arith.constant 0 : i32
    %c0_i32_1 = arith.constant 0 : i32
    return %c0_i32, %c0_i32_0 : i32, i32
  }
  func.func @transform_8(%arg0: i32) -> (i32, i32, i32) {
    %c0_i32 = arith.constant 0 : i32
    %c0_i32_0 = arith.constant 0 : i32
    %c0_i32_1 = arith.constant 0 : i32
    return %arg0, %c0_i32, %c0_i32_0 : i32, i32, i32
  }
}

</mosaic_0001>

<llo_original>
// kernel: tpu_custom_call.1
$region0: #{tpu_custom_call.1}
  #allocation0 [shape = 'u32[]', space=smem, size = 0x4, offset = 0x4, fixed_abs, tag = 'smem constant byte address 0x4 - core index']
  #allocation1 [shape = 'u32[144,128]{1,0:T(1,128)}', space=vmem, size = 0x12000, scoped, tag = 'internal scratch']
  %s0 = inlined_call_operand.vmem [shape: f32[2,64,16], index: 0, kind: input, shape index: {}]
  %s1 = inlined_call_operand.vmem [shape: f32[2,9,64], index: 1, kind: input, shape index: {}]
  %s2 = inlined_call_operand.vmem [shape: bf16[16,32], index: 2, kind: input, shape index: {}]
  %s3 = inlined_call_operand.vmem [shape: bf16[32,32], index: 3, kind: input, shape index: {}]
  %s4 = inlined_call_operand.vmem [shape: bf16[32,32], index: 4, kind: input, shape index: {}]
  %s5 = inlined_call_operand.vmem [shape: bf16[32,32], index: 5, kind: input, shape index: {}]
  %s6 = inlined_call_operand.vmem [shape: bf16[32,32], index: 6, kind: input, shape index: {}]
  %s7 = inlined_call_operand.vmem [shape: f32[1,32], index: 7, kind: input, shape index: {}]
  %s8 = inlined_call_operand.hbm [shape: f32[2,32,64], index: 8, kind: output, shape index: {}]
  %s9 = sld [smem:[#allocation0]]
  $region65: #{tpu_custom_call.1} parent=0
    _
  %s11 = ssub.s32 1, %s9
  %s12 = scalar_select 0, %s11, %s9
  $region1: #{tpu_custom_call.1} parent=0
    #allocation2 [shape = 'u8[32768]{0}', space=vmem, size = 0x8000, scoped, tag = 'output window, operand 0']
    #allocation3 [shape = 's32[2]{0}', space=sflag, size = 0x8, scoped, tag = 'scoped memory for tpu_custom_call.1']
    %13 = vsyncpa [#allocation3], 0
    %s14 = scalar_lea.sflag [#allocation3], 1
    %15 = vsyncpa %s14, 0
    loop: start=0, step=1, limit=4
    $region2: #{tpu_custom_call.1} parent=1 // loop_pre_header
      _
    $region3: #{tpu_custom_call.1} parent=1 // loop_header
      %s17 = sphi 0, %s21
      %p18 = scmp.ge.s32.totalorder %s17, 4
      %s27 = sphi 0, %s29
      %s30 = sphi 0, %s27
      %s31 = sphi 0, %s30
      %s47 = sphi 0, %s31
      %s53 = sphi 0, %s55
      %s56 = sphi 0, %s53
      %s57 = sphi 0, %s56
      %s73 = sphi 0, %s57
      %s77 = sphi 0, %s77
      %s79 = sphi 0, %s77
      %s80 = sphi 0, %s79
      %s94 = sphi 0, %s80
      %s98 = sphi 0, %s98
      %s100 = sphi 0, %s98
      %s101 = sphi 0, %s100
      %s115 = sphi 0, %s101
      %s119 = sphi 0, %s119
      %s121 = sphi 0, %s119
      %s122 = sphi 0, %s121
      %s136 = sphi 0, %s122
      %s140 = sphi 0, %s140
      %s142 = sphi 0, %s140
      %s143 = sphi 0, %s142
      %s157 = sphi 0, %s143
      %s161 = sphi 0, %s161
      %s163 = sphi 0, %s161
      %s164 = sphi 0, %s163
      %s178 = sphi 0, %s164
      %s182 = sphi 0, %s182
      %s184 = sphi 0, %s182
      %s185 = sphi 0, %s184
      %s199 = sphi 0, %s185
      %s205 = sphi 0, %s207
      %s208 = sphi 0, %s205
      %s209 = sphi 0, %s208
      %s225 = sphi 0, %s209
    $region4: #{tpu_custom_call.1} parent=1 // loop_header_branch
      %20 = sbr.rel (%p18) target = $region8
    $region5: #{tpu_custom_call.1} parent=1 // loop_body
      %s22 = ssub.s32 %s17, 1
      %s23 = ssub.s32 %s17, 2
      %s24 = sadd.s32 %s17, 1
      %s25 = ssub.s32 %s17, %s24
      %p26 = scmp.eq.s32.totalorder %s25, 0
      %s28 = sadd.s32 %s27, 1
      %s29 = scalar_select %p26, %s27, %s28
      %p32 = pneg %p26
      %p33 = scmp.eq.s32.totalorder %s17, 1
      %p34 = por %p32, %p33
      %p35 = scmp.ne.s32.totalorder %s27, %s30
      %p36 = scmp.eq.s32.totalorder %s17, 0
      %p37 = por %p35, %p36
      %p38 = scmp.ne.s32.totalorder %s27, %s30
      %p39 = scmp.eq.s32.totalorder %s22, 1
      %p40 = por %p38, %p39
      %p41 = scmp.ne.s32.totalorder %s30, %s31
      %p42 = scmp.eq.s32.totalorder %s22, 0
      %p43 = por %p41, %p42
      %p44 = scmp.ne.s32.totalorder %s30, %s31
      %p45 = scmp.eq.s32.totalorder %s23, 1
      %p46 = por %p44, %p45
      %p48 = scmp.ne.s32.totalorder %s31, %s47
      %p49 = scmp.eq.s32.totalorder %s23, 0
      %p50 = por %p48, %p49
      %s51 = ssub.s32 %s17, %s24
      %p52 = scmp.eq.s32.totalorder %s51, 0
      %s54 = sadd.s32 %s53, 1
      %s55 = scalar_select %p52, %s53, %s54
      %p58 = pneg %p52
      %p59 = scmp.eq.s32.totalorder %s17, 1
      %p60 = por %p58, %p59
      %p61 = scmp.ne.s32.totalorder %s53, %s56
      %p62 = scmp.eq.s32.totalorder %s17, 0
      %p63 = por %p61, %p62
      %p64 = scmp.ne.s32.totalorder %s53, %s56
      %p65 = scmp.eq.s32.totalorder %s22, 1
      %p66 = por %p64, %p65
      %p67 = scmp.ne.s32.totalorder %s56, %s57
      %p68 = scmp.eq.s32.totalorder %s22, 0
      %p69 = por %p67, %p68
      %p70 = scmp.ne.s32.totalorder %s56, %s57
      %p71 = scmp.eq.s32.totalorder %s23, 1
      %p72 = por %p70, %p71
      %p74 = scmp.ne.s32.totalorder %s57, %s73
      %p75 = scmp.eq.s32.totalorder %s23, 0
      %p76 = por %p74, %p75
      %s78 = sadd.s32 %s77, 1
      %p81 = scmp.eq.s32.totalorder %s17, 1
      %p82 = scmp.ne.s32.totalorder %s77, %s79
      %p83 = scmp.eq.s32.totalorder %s17, 0
      %p84 = por %p82, %p83
      %p85 = scmp.ne.s32.totalorder %s77, %s79
      %p86 = scmp.eq.s32.totalorder %s22, 1
      %p87 = por %p85, %p86
      %p88 = scmp.ne.s32.totalorder %s79, %s80
      %p89 = scmp.eq.s32.totalorder %s22, 0
      %p90 = por %p88, %p89
      %p91 = scmp.ne.s32.totalorder %s79, %s80
      %p92 = scmp.eq.s32.totalorder %s23, 1
      %p93 = por %p91, %p92
      %p95 = scmp.ne.s32.totalorder %s80, %s94
      %p96 = scmp.eq.s32.totalorder %s23, 0
      %p97 = por %p95, %p96
      %s99 = sadd.s32 %s98, 1
      %p102 = scmp.eq.s32.totalorder %s17, 1
      %p103 = scmp.ne.s32.totalorder %s98, %s100
      %p104 = scmp.eq.s32.totalorder %s17, 0
      %p105 = por %p103, %p104
      %p106 = scmp.ne.s32.totalorder %s98, %s100
      %p107 = scmp.eq.s32.totalorder %s22, 1
      %p108 = por %p106, %p107
      %p109 = scmp.ne.s32.totalorder %s100, %s101
      %p110 = scmp.eq.s32.totalorder %s22, 0
      %p111 = por %p109, %p110
      %p112 = scmp.ne.s32.totalorder %s100, %s101
      %p113 = scmp.eq.s32.totalorder %s23, 1
      %p114 = por %p112, %p113
      %p116 = scmp.ne.s32.totalorder %s101, %s115
      %p117 = scmp.eq.s32.totalorder %s23, 0
      %p118 = por %p116, %p117
      %s120 = sadd.s32 %s119, 1
      %p123 = scmp.eq.s32.totalorder %s17, 1
      %p124 = scmp.ne.s32.totalorder %s119, %s121
      %p125 = scmp.eq.s32.totalorder %s17, 0
      %p126 = por %p124, %p125
      %p127 = scmp.ne.s32.totalorder %s119, %s121
      %p128 = scmp.eq.s32.totalorder %s22, 1
      %p129 = por %p127, %p128
      %p130 = scmp.ne.s32.totalorder %s121, %s122
      %p131 = scmp.eq.s32.totalorder %s22, 0
      %p132 = por %p130, %p131
      %p133 = scmp.ne.s32.totalorder %s121, %s122
      %p134 = scmp.eq.s32.totalorder %s23, 1
      %p135 = por %p133, %p134
      %p137 = scmp.ne.s32.totalorder %s122, %s136
      %p138 = scmp.eq.s32.totalorder %s23, 0
      %p139 = por %p137, %p138
      %s141 = sadd.s32 %s140, 1
      %p144 = scmp.eq.s32.totalorder %s17, 1
      %p145 = scmp.ne.s32.totalorder %s140, %s142
      %p146 = scmp.eq.s32.totalorder %s17, 0
      %p147 = por %p145, %p146
      %p148 = scmp.ne.s32.totalorder %s140, %s142
      %p149 = scmp.eq.s32.totalorder %s22, 1
      %p150 = por %p148, %p149
      %p151 = scmp.ne.s32.totalorder %s142, %s143
      %p152 = scmp.eq.s32.totalorder %s22, 0
      %p153 = por %p151, %p152
      %p154 = scmp.ne.s32.totalorder %s142, %s143
      %p155 = scmp.eq.s32.totalorder %s23, 1
      %p156 = por %p154, %p155
      %p158 = scmp.ne.s32.totalorder %s143, %s157
      %p159 = scmp.eq.s32.totalorder %s23, 0
      %p160 = por %p158, %p159
      %s162 = sadd.s32 %s161, 1
      %p165 = scmp.eq.s32.totalorder %s17, 1
      %p166 = scmp.ne.s32.totalorder %s161, %s163
      %p167 = scmp.eq.s32.totalorder %s17, 0
      %p168 = por %p166, %p167
      %p169 = scmp.ne.s32.totalorder %s161, %s163
      %p170 = scmp.eq.s32.totalorder %s22, 1
      %p171 = por %p169, %p170
      %p172 = scmp.ne.s32.totalorder %s163, %s164
      %p173 = scmp.eq.s32.totalorder %s22, 0
      %p174 = por %p172, %p173
      %p175 = scmp.ne.s32.totalorder %s163, %s164
      %p176 = scmp.eq.s32.totalorder %s23, 1
      %p177 = por %p175, %p176
      %p179 = scmp.ne.s32.totalorder %s164, %s178
      %p180 = scmp.eq.s32.totalorder %s23, 0
      %p181 = por %p179, %p180
      %s183 = sadd.s32 %s182, 1
      %p186 = scmp.eq.s32.totalorder %s17, 1
      %p187 = scmp.ne.s32.totalorder %s182, %s184
      %p188 = scmp.eq.s32.totalorder %s17, 0
      %p189 = por %p187, %p188
      %p190 = scmp.ne.s32.totalorder %s182, %s184
      %p191 = scmp.eq.s32.totalorder %s22, 1
      %p192 = por %p190, %p191
      %p193 = scmp.ne.s32.totalorder %s184, %s185
      %p194 = scmp.eq.s32.totalorder %s22, 0
      %p195 = por %p193, %p194
      %p196 = scmp.ne.s32.totalorder %s184, %s185
      %p197 = scmp.eq.s32.totalorder %s23, 1
      %p198 = por %p196, %p197
      %p200 = scmp.ne.s32.totalorder %s185, %s199
      %p201 = scmp.eq.s32.totalorder %s23, 0
      %p202 = por %p200, %p201
      %s203 = ssub.s32 %s17, %s24
      %p204 = scmp.eq.s32.totalorder %s203, 0
      %s206 = sadd.s32 %s205, 1
      %s207 = scalar_select %p204, %s205, %s206
      %p210 = pneg %p204
      %p211 = scmp.eq.s32.totalorder %s17, 1
      %p212 = por %p210, %p211
      %p213 = scmp.ne.s32.totalorder %s205, %s208
      %p214 = scmp.eq.s32.totalorder %s17, 0
      %p215 = por %p213, %p214
      %p216 = scmp.ne.s32.totalorder %s205, %s208
      %p217 = scmp.eq.s32.totalorder %s22, 1
      %p218 = por %p216, %p217
      %p219 = scmp.ne.s32.totalorder %s208, %s209
      %p220 = scmp.eq.s32.totalorder %s22, 0
      %p221 = por %p219, %p220
      %p222 = scmp.ne.s32.totalorder %s208, %s209
      %p223 = scmp.eq.s32.totalorder %s23, 1
      %p224 = por %p222, %p223
      %p226 = scmp.ne.s32.totalorder %s209, %s225
      %p227 = scmp.eq.s32.totalorder %s23, 0
      %p228 = por %p226, %p227
      %p229 = scmp.le.s32.totalorder 1, %s17
      %p230 = scmp.lt.s32.totalorder %s17, 3
      %p231 = pnand %p229, %p230
      %p232 = pneg %p231
      // Predicated region
      $region9: #{tpu_custom_call.1} parent=5 // pred_check
        _
      $region10: #{tpu_custom_call.1} parent=5 // pred_check_branch
        %234 = sbr.rel (%p231) target = $region12
      $region11: #{tpu_custom_call.1} parent=5 // pred_region
        %s235 = ssub.s32 %s17, 1
        // Predicated region
        $region13: #{tpu_custom_call.1} parent=11 // pred_check
          %p236 = pneg %p90
        $region14: #{tpu_custom_call.1} parent=11 // pred_check_branch
          %238 = sbr.rel (%p236) target = $region16
        $region15: #{tpu_custom_call.1} parent=11 // pred_region
          _
        $region16: #{tpu_custom_call.1} parent=11 // pred_fallthru
          _
        // Predicated region
        $region17: #{tpu_custom_call.1} parent=11 // pred_check
          %p239 = pneg %p111
        $region18: #{tpu_custom_call.1} parent=11 // pred_check_branch
          %241 = sbr.rel (%p239) target = $region20
        $region19: #{tpu_custom_call.1} parent=11 // pred_region
          _
        $region20: #{tpu_custom_call.1} parent=11 // pred_fallthru
          _
        // Predicated region
        $region21: #{tpu_custom_call.1} parent=11 // pred_check
          %p242 = pneg %p132
        $region22: #{tpu_custom_call.1} parent=11 // pred_check_branch
          %244 = sbr.rel (%p242) target = $region24
        $region23: #{tpu_custom_call.1} parent=11 // pred_region
          _
        $region24: #{tpu_custom_call.1} parent=11 // pred_fallthru
          _
        // Predicated region
        $region25: #{tpu_custom_call.1} parent=11 // pred_check
          %p245 = pneg %p153
        $region26: #{tpu_custom_call.1} parent=11 // pred_check_branch
          %247 = sbr.rel (%p245) target = $region28
        $region27: #{tpu_custom_call.1} parent=11 // pred_region
          _
        $region28: #{tpu_custom_call.1} parent=11 // pred_fallthru
          _
        // Predicated region
        $region29: #{tpu_custom_call.1} parent=11 // pred_check
          %p248 = pneg %p174
        $region30: #{tpu_custom_call.1} parent=11 // pred_check_branch
          %250 = sbr.rel (%p248) target = $region32
        $region31: #{tpu_custom_call.1} parent=11 // pred_region
          _
        $region32: #{tpu_custom_call.1} parent=11 // pred_fallthru
          _
        // Predicated region
        $region33: #{tpu_custom_call.1} parent=11 // pred_check
          %p251 = pneg %p195
        $region34: #{tpu_custom_call.1} parent=11 // pred_check_branch
          %253 = sbr.rel (%p251) target = $region36
        $region35: #{tpu_custom_call.1} parent=11 // pred_region
          _
        $region36: #{tpu_custom_call.1} parent=11 // pred_fallthru
          _
      $region12: #{tpu_custom_call.1} parent=5 // pred_fallthru
        _
      %p254 = scmp.lt.s32.totalorder %s17, 2
      // Predicated region
      $region37: #{tpu_custom_call.1} parent=5 // pred_check
        %p255 = pneg %p254
      $region38: #{tpu_custom_call.1} parent=5 // pred_check_branch
        %257 = sbr.rel (%p255) target = $region40
      $region39: #{tpu_custom_call.1} parent=5 // pred_region
        // Predicated region
        $region41: #{tpu_custom_call.1} parent=39 // pred_check
          %p258 = pneg %p37
        $region42: #{tpu_custom_call.1} parent=39 // pred_check_branch
          %260 = sbr.rel (%p258) target = $region44
        $region43: #{tpu_custom_call.1} parent=39 // pred_region
          %p261 = scmp.lt.s32.totalorder %s17, 1
          %s262 = scalar_select %p261, %s17, 1
          %s263 = smul.addr %s262, 8
          %s264 = smul.addr %s263, 8
          %s265 = scalar_lea.vmem %s0, %s264
        $region44: #{tpu_custom_call.1} parent=39 // pred_fallthru
          _
        // Predicated region
        $region45: #{tpu_custom_call.1} parent=39 // pred_check
          %p266 = pneg %p63
        $region46: #{tpu_custom_call.1} parent=39 // pred_check_branch
          %268 = sbr.rel (%p266) target = $region48
        $region47: #{tpu_custom_call.1} parent=39 // pred_region
          %p269 = scmp.lt.s32.totalorder %s17, 1
          %s270 = scalar_select %p269, %s17, 1
          %s271 = smul.addr %s270, 2
          %s272 = smul.addr %s271, 8
          %s273 = scalar_lea.vmem %s1, %s272
        $region48: #{tpu_custom_call.1} parent=39 // pred_fallthru
          _
      $region40: #{tpu_custom_call.1} parent=5 // pred_fallthru
        _
      %p274 = scmp.le.s32.totalorder 1, %s17
      %p275 = scmp.lt.s32.totalorder %s17, 3
      %p276 = pnand %p274, %p275
      %p277 = pneg %p276
      // Predicated region
      $region49: #{tpu_custom_call.1} parent=5 // pred_check
        _
      $region50: #{tpu_custom_call.1} parent=5 // pred_check_branch
        %279 = sbr.rel (%p276) target = $region52
      $region51: #{tpu_custom_call.1} parent=5 // pred_region
        %s280 = ssub.s32 %s17, 1
        %p281 = scmp.lt.s32.totalorder %s22, 1
        %s282 = scalar_select %p281, %s22, 1
        %s283 = smul.addr %s282, 8
        %s284 = smul.addr %s283, 8
        %s285 = scalar_lea.vmem %s0, %s284
        %p286 = pneg %p43
        %p287 = pneg %p40
        %p288 = scmp.lt.s32.totalorder %s22, 1
        %s289 = scalar_select %p288, %s22, 1
        %s290 = smul.addr %s289, 2
        %s291 = smul.addr %s290, 8
        %s292 = scalar_lea.vmem %s1, %s291
        %p293 = pneg %p69
        %p294 = pneg %p66
        %p295 = pneg %p90
        %p296 = pneg %p87
        %p297 = pneg %p111
        %p298 = pneg %p108
        %p299 = pneg %p132
        %p300 = pneg %p129
        %p301 = pneg %p153
        %p302 = pneg %p150
        %p303 = pneg %p174
        %p304 = pneg %p171
        %p305 = pneg %p195
        %p306 = pneg %p192
        %p307 = pneg %p221
        %p308 = pneg %p218
        %s309 = sand.u32 %s208, 1
        %s310 = scalar_lea.sflag [#allocation3], %s309
        %s311 = sand.u32 %s208, 1
        %s312 = smul.addr %s311, 32
        %s313 = scalar_lea.vmem [#allocation2], %s312
        %p314 = scmp.lt.s32.totalorder %s22, 1
        %s315 = scalar_select %p314, %s22, 1
        %s316 = smul.addr %s315, 8
        %s317 = smul.addr %s316, 8
        %s318 = scalar_lea.vmem %s0, %s317
        %p319 = scmp.lt.s32.totalorder %s22, 1
        %s320 = scalar_select %p319, %s22, 1
        %s321 = smul.addr %s320, 2
        %s322 = smul.addr %s321, 8
        %s323 = scalar_lea.vmem %s1, %s322
        %v325 = vld [vmem:[%s318] sm:$0xff]
        %v326 = vld [vmem:[%s318 + $0x8] sm:$0xff]
        %v327 = vld [vmem:[%s318 + $0x10] sm:$0xff]
        %v328 = vld [vmem:[%s318 + $0x18] sm:$0xff]
        %v329 = vld [vmem:[%s318 + $0x20] sm:$0xff]
        %v330 = vld [vmem:[%s318 + $0x28] sm:$0xff]
        %v331 = vld [vmem:[%s318 + $0x30] sm:$0xff]
        %v332 = vld [vmem:[%s318 + $0x38] sm:$0xff]
        %v333 = vld [vmem:[%s323] sm:$0xff]
        %v334 = vld [vmem:[%s323 + $0x8] sm:$0x1]
        %336 = vset.pattern.permute.xlu0 3
        %337 = vperm.xlu0 %336, %v325
        %v338 = vpop.permute.xlu0 %337
        %341 = vset.pattern.permute.xlu0 3
        %342 = vperm.xlu0 %341, %v326
        %v343 = vpop.permute.xlu0 %342
        %346 = vset.pattern.permute.xlu0 3
        %347 = vperm.xlu0 %346, %v327
        %v348 = vpop.permute.xlu0 %347
        %351 = vset.pattern.permute.xlu0 3
        %352 = vperm.xlu0 %351, %v328
        %v353 = vpop.permute.xlu0 %352
        %356 = vset.pattern.permute.xlu0 3
        %357 = vperm.xlu0 %356, %v329
        %v358 = vpop.permute.xlu0 %357
        %361 = vset.pattern.permute.xlu0 3
        %362 = vperm.xlu0 %361, %v330
        %v363 = vpop.permute.xlu0 %362
        %366 = vset.pattern.permute.xlu0 3
        %367 = vperm.xlu0 %366, %v331
        %v368 = vpop.permute.xlu0 %367
        %371 = vset.pattern.permute.xlu0 3
        %372 = vperm.xlu0 %371, %v332
        %v373 = vpop.permute.xlu0 %372
        %v375 = vlaneseq
        %v376 = vshrl.u32 %v375, 7
        %v377 = vsub.s32 0, %v376
        %v378 = vrot.slane %v333, %v377
        %v379 = vsub.f32 %v338, %v378
        %v380 = vsub.f32 %v343, %v378
        %v381 = vsub.f32 %v348, %v378
        %v382 = vsub.f32 %v353, %v378
        %v383 = vsub.f32 %v358, %v378
        %v384 = vsub.f32 %v363, %v378
        %v385 = vsub.f32 %v368, %v378
        %v386 = vsub.f32 %v373, %v378
        %v387 = vmul.f32 %v379, %v379
        %v388 = vmul.f32 %v380, %v380
        %v389 = vmul.f32 %v381, %v381
        %v390 = vmul.f32 %v382, %v382
        %v391 = vmul.f32 %v383, %v383
        %v392 = vmul.f32 %v384, %v384
        %v393 = vmul.f32 %v385, %v385
        %v394 = vmul.f32 %v386, %v386
        %395 = vset.pattern.permute.xlu0 4
        %396 = vperm.xlu0 %395, %v325
        %v397 = vpop.permute.xlu0 %396
        %399 = vset.pattern.permute.xlu0 4
        %400 = vperm.xlu0 %399, %v326
        %v401 = vpop.permute.xlu0 %400
        %403 = vset.pattern.permute.xlu0 4
        %404 = vperm.xlu0 %403, %v327
        %v405 = vpop.permute.xlu0 %404
        %407 = vset.pattern.permute.xlu0 4
        %408 = vperm.xlu0 %407, %v328
        %v409 = vpop.permute.xlu0 %408
        %411 = vset.pattern.permute.xlu0 4
        %412 = vperm.xlu0 %411, %v329
        %v413 = vpop.permute.xlu0 %412
        %415 = vset.pattern.permute.xlu0 4
        %416 = vperm.xlu0 %415, %v330
        %v417 = vpop.permute.xlu0 %416
        %419 = vset.pattern.permute.xlu0 4
        %420 = vperm.xlu0 %419, %v331
        %v421 = vpop.permute.xlu0 %420
        %423 = vset.pattern.permute.xlu0 4
        %424 = vperm.xlu0 %423, %v332
        %v425 = vpop.permute.xlu0 %424
        %v427 = vlaneseq
        %v428 = vshrl.u32 %v427, 7
        %v429 = vsub.s32 1, %v428
        %v430 = vrot.slane %v333, %v429
        %v431 = vsub.f32 %v397, %v430
        %v432 = vsub.f32 %v401, %v430
        %v433 = vsub.f32 %v405, %v430
        %v434 = vsub.f32 %v409, %v430
        %v435 = vsub.f32 %v413, %v430
        %v436 = vsub.f32 %v417, %v430
        %v437 = vsub.f32 %v421, %v430
        %v438 = vsub.f32 %v425, %v430
        %v439 = vmul.f32 %v431, %v431
        %v440 = vmul.f32 %v432, %v432
        %v441 = vmul.f32 %v433, %v433
        %v442 = vmul.f32 %v434, %v434
        %v443 = vmul.f32 %v435, %v435
        %v444 = vmul.f32 %v436, %v436
        %v445 = vmul.f32 %v437, %v437
        %v446 = vmul.f32 %v438, %v438
        %v447 = vadd.f32 %v387, %v439
        %v448 = vadd.f32 %v388, %v440
        %v449 = vadd.f32 %v389, %v441
        %v450 = vadd.f32 %v390, %v442
        %v451 = vadd.f32 %v391, %v443
        %v452 = vadd.f32 %v392, %v444
        %v453 = vadd.f32 %v393, %v445
        %v454 = vadd.f32 %v394, %v446
        %455 = vset.pattern.permute.xlu0 5
        %456 = vperm.xlu0 %455, %v325
        %v457 = vpop.permute.xlu0 %456
        %459 = vset.pattern.permute.xlu0 5
        %460 = vperm.xlu0 %459, %v326
        %v461 = vpop.permute.xlu0 %460
        %463 = vset.pattern.permute.xlu0 5
        %464 = vperm.xlu0 %463, %v327
        %v465 = vpop.permute.xlu0 %464
        %467 = vset.pattern.permute.xlu0 5
        %468 = vperm.xlu0 %467, %v328
        %v469 = vpop.permute.xlu0 %468
        %471 = vset.pattern.permute.xlu0 5
        %472 = vperm.xlu0 %471, %v329
        %v473 = vpop.permute.xlu0 %472
        %475 = vset.pattern.permute.xlu0 5
        %476 = vperm.xlu0 %475, %v330
        %v477 = vpop.permute.xlu0 %476
        %479 = vset.pattern.permute.xlu0 5
        %480 = vperm.xlu0 %479, %v331
        %v481 = vpop.permute.xlu0 %480
        %483 = vset.pattern.permute.xlu0 5
        %484 = vperm.xlu0 %483, %v332
        %v485 = vpop.permute.xlu0 %484
        %v487 = vlaneseq
        %v488 = vshrl.u32 %v487, 7
        %v489 = vsub.s32 2, %v488
        %v490 = vrot.slane %v333, %v489
        %v491 = vsub.f32 %v457, %v490
        %v492 = vsub.f32 %v461, %v490
        %v493 = vsub.f32 %v465, %v490
        %v494 = vsub.f32 %v469, %v490
        %v495 = vsub.f32 %v473, %v490
        %v496 = vsub.f32 %v477, %v490
        %v497 = vsub.f32 %v481, %v490
        %v498 = vsub.f32 %v485, %v490
        %v499 = vmul.f32 %v491, %v491
        %v500 = vmul.f32 %v492, %v492
        %v501 = vmul.f32 %v493, %v493
        %v502 = vmul.f32 %v494, %v494
        %v503 = vmul.f32 %v495, %v495
        %v504 = vmul.f32 %v496, %v496
        %v505 = vmul.f32 %v497, %v497
        %v506 = vmul.f32 %v498, %v498
        %v507 = vadd.f32 %v447, %v499
        %v508 = vadd.f32 %v448, %v500
        %v509 = vadd.f32 %v449, %v501
        %v510 = vadd.f32 %v450, %v502
        %v511 = vadd.f32 %v451, %v503
        %v512 = vadd.f32 %v452, %v504
        %v513 = vadd.f32 %v453, %v505
        %v514 = vadd.f32 %v454, %v506
        %515 = vset.pattern.permute.xlu0 6
        %516 = vperm.xlu0 %515, %v325
        %v517 = vpop.permute.xlu0 %516
        %519 = vset.pattern.permute.xlu0 6
        %520 = vperm.xlu0 %519, %v326
        %v521 = vpop.permute.xlu0 %520
        %523 = vset.pattern.permute.xlu0 6
        %524 = vperm.xlu0 %523, %v327
        %v525 = vpop.permute.xlu0 %524
        %527 = vset.pattern.permute.xlu0 6
        %528 = vperm.xlu0 %527, %v328
        %v529 = vpop.permute.xlu0 %528
        %531 = vset.pattern.permute.xlu0 6
        %532 = vperm.xlu0 %531, %v329
        %v533 = vpop.permute.xlu0 %532
        %535 = vset.pattern.permute.xlu0 6
        %536 = vperm.xlu0 %535, %v330
        %v537 = vpop.permute.xlu0 %536
        %539 = vset.pattern.permute.xlu0 6
        %540 = vperm.xlu0 %539, %v331
        %v541 = vpop.permute.xlu0 %540
        %543 = vset.pattern.permute.xlu0 6
        %544 = vperm.xlu0 %543, %v332
        %v545 = vpop.permute.xlu0 %544
        %v547 = vlaneseq
        %v548 = vshrl.u32 %v547, 7
        %v549 = vsub.s32 3, %v548
        %v550 = vrot.slane %v333, %v549
        %v551 = vsub.f32 %v517, %v550
        %v552 = vsub.f32 %v521, %v550
        %v553 = vsub.f32 %v525, %v550
        %v554 = vsub.f32 %v529, %v550
        %v555 = vsub.f32 %v533, %v550
        %v556 = vsub.f32 %v537, %v550
        %v557 = vsub.f32 %v541, %v550
        %v558 = vsub.f32 %v545, %v550
        %v559 = vmul.f32 %v551, %v551
        %v560 = vmul.f32 %v552, %v552
        %v561 = vmul.f32 %v553, %v553
        %v562 = vmul.f32 %v554, %v554
        %v563 = vmul.f32 %v555, %v555
        %v564 = vmul.f32 %v556, %v556
        %v565 = vmul.f32 %v557, %v557
        %v566 = vmul.f32 %v558, %v558
        %v567 = vadd.f32 %v507, %v559
        %v568 = vadd.f32 %v508, %v560
        %v569 = vadd.f32 %v509, %v561
        %v570 = vadd.f32 %v510, %v562
        %v571 = vadd.f32 %v511, %v563
        %v572 = vadd.f32 %v512, %v564
        %v573 = vadd.f32 %v513, %v565
        %v574 = vadd.f32 %v514, %v566
        %575 = vset.pattern.permute.xlu0 7
        %576 = vperm.xlu0 %575, %v325
        %v577 = vpop.permute.xlu0 %576
        %579 = vset.pattern.permute.xlu0 7
        %580 = vperm.xlu0 %579, %v326
        %v581 = vpop.permute.xlu0 %580
        %583 = vset.pattern.permute.xlu0 7
        %584 = vperm.xlu0 %583, %v327
        %v585 = vpop.permute.xlu0 %584
        %587 = vset.pattern.permute.xlu0 7
        %588 = vperm.xlu0 %587, %v328
        %v589 = vpop.permute.xlu0 %588
        %591 = vset.pattern.permute.xlu0 7
        %592 = vperm.xlu0 %591, %v329
        %v593 = vpop.permute.xlu0 %592
        %595 = vset.pattern.permute.xlu0 7
        %596 = vperm.xlu0 %595, %v330
        %v597 = vpop.permute.xlu0 %596
        %599 = vset.pattern.permute.xlu0 7
        %600 = vperm.xlu0 %599, %v331
        %v601 = vpop.permute.xlu0 %600
        %603 = vset.pattern.permute.xlu0 7
        %604 = vperm.xlu0 %603, %v332
        %v605 = vpop.permute.xlu0 %604
        %v607 = vlaneseq
        %v608 = vshrl.u32 %v607, 7
        %v609 = vsub.s32 4, %v608
        %v610 = vrot.slane %v333, %v609
        %v611 = vsub.f32 %v577, %v610
        %v612 = vsub.f32 %v581, %v610
        %v613 = vsub.f32 %v585, %v610
        %v614 = vsub.f32 %v589, %v610
        %v615 = vsub.f32 %v593, %v610
        %v616 = vsub.f32 %v597, %v610
        %v617 = vsub.f32 %v601, %v610
        %v618 = vsub.f32 %v605, %v610
        %v619 = vmul.f32 %v611, %v611
        %v620 = vmul.f32 %v612, %v612
        %v621 = vmul.f32 %v613, %v613
        %v622 = vmul.f32 %v614, %v614
        %v623 = vmul.f32 %v615, %v615
        %v624 = vmul.f32 %v616, %v616
        %v625 = vmul.f32 %v617, %v617
        %v626 = vmul.f32 %v618, %v618
        %v627 = vadd.f32 %v567, %v619
        %v628 = vadd.f32 %v568, %v620
        %v629 = vadd.f32 %v569, %v621
        %v630 = vadd.f32 %v570, %v622
        %v631 = vadd.f32 %v571, %v623
        %v632 = vadd.f32 %v572, %v624
        %v633 = vadd.f32 %v573, %v625
        %v634 = vadd.f32 %v574, %v626
        %635 = vset.pattern.permute.xlu0 8
        %636 = vperm.xlu0 %635, %v325
        %v637 = vpop.permute.xlu0 %636
        %639 = vset.pattern.permute.xlu0 8
        %640 = vperm.xlu0 %639, %v326
        %v641 = vpop.permute.xlu0 %640
        %643 = vset.pattern.permute.xlu0 8
        %644 = vperm.xlu0 %643, %v327
        %v645 = vpop.permute.xlu0 %644
        %647 = vset.pattern.permute.xlu0 8
        %648 = vperm.xlu0 %647, %v328
        %v649 = vpop.permute.xlu0 %648
        %651 = vset.pattern.permute.xlu0 8
        %652 = vperm.xlu0 %651, %v329
        %v653 = vpop.permute.xlu0 %652
        %655 = vset.pattern.permute.xlu0 8
        %656 = vperm.xlu0 %655, %v330
        %v657 = vpop.permute.xlu0 %656
        %659 = vset.pattern.permute.xlu0 8
        %660 = vperm.xlu0 %659, %v331
        %v661 = vpop.permute.xlu0 %660
        %663 = vset.pattern.permute.xlu0 8
        %664 = vperm.xlu0 %663, %v332
        %v665 = vpop.permute.xlu0 %664
        %v667 = vlaneseq
        %v668 = vshrl.u32 %v667, 7
        %v669 = vsub.s32 5, %v668
        %v670 = vrot.slane %v333, %v669
        %v671 = vsub.f32 %v637, %v670
        %v672 = vsub.f32 %v641, %v670
        %v673 = vsub.f32 %v645, %v670
        %v674 = vsub.f32 %v649, %v670
        %v675 = vsub.f32 %v653, %v670
        %v676 = vsub.f32 %v657, %v670
        %v677 = vsub.f32 %v661, %v670
        %v678 = vsub.f32 %v665, %v670
        %v679 = vmul.f32 %v671, %v671
        %v680 = vmul.f32 %v672, %v672
        %v681 = vmul.f32 %v673, %v673
        %v682 = vmul.f32 %v674, %v674
        %v683 = vmul.f32 %v675, %v675
        %v684 = vmul.f32 %v676, %v676
        %v685 = vmul.f32 %v677, %v677
        %v686 = vmul.f32 %v678, %v678
        %v687 = vadd.f32 %v627, %v679
        %v688 = vadd.f32 %v628, %v680
        %v689 = vadd.f32 %v629, %v681
        %v690 = vadd.f32 %v630, %v682
        %v691 = vadd.f32 %v631, %v683
        %v692 = vadd.f32 %v632, %v684
        %v693 = vadd.f32 %v633, %v685
        %v694 = vadd.f32 %v634, %v686
        %695 = vset.pattern.permute.xlu0 9
        %696 = vperm.xlu0 %695, %v325
        %v697 = vpop.permute.xlu0 %696
        %699 = vset.pattern.permute.xlu0 9
        %700 = vperm.xlu0 %699, %v326
        %v701 = vpop.permute.xlu0 %700
        %703 = vset.pattern.permute.xlu0 9
        %704 = vperm.xlu0 %703, %v327
        %v705 = vpop.permute.xlu0 %704
        %707 = vset.pattern.permute.xlu0 9
        %708 = vperm.xlu0 %707, %v328
        %v709 = vpop.permute.xlu0 %708
        %711 = vset.pattern.permute.xlu0 9
        %712 = vperm.xlu0 %711, %v329
        %v713 = vpop.permute.xlu0 %712
        %715 = vset.pattern.permute.xlu0 9
        %716 = vperm.xlu0 %715, %v330
        %v717 = vpop.permute.xlu0 %716
        %719 = vset.pattern.permute.xlu0 9
        %720 = vperm.xlu0 %719, %v331
        %v721 = vpop.permute.xlu0 %720
        %723 = vset.pattern.permute.xlu0 9
        %724 = vperm.xlu0 %723, %v332
        %v725 = vpop.permute.xlu0 %724
        %v727 = vlaneseq
        %v728 = vshrl.u32 %v727, 7
        %v729 = vsub.s32 6, %v728
        %v730 = vrot.slane %v333, %v729
        %v731 = vsub.f32 %v697, %v730
        %v732 = vsub.f32 %v701, %v730
        %v733 = vsub.f32 %v705, %v730
        %v734 = vsub.f32 %v709, %v730
        %v735 = vsub.f32 %v713, %v730
        %v736 = vsub.f32 %v717, %v730
        %v737 = vsub.f32 %v721, %v730
        %v738 = vsub.f32 %v725, %v730
        %v739 = vmul.f32 %v731, %v731
        %v740 = vmul.f32 %v732, %v732
        %v741 = vmul.f32 %v733, %v733
        %v742 = vmul.f32 %v734, %v734
        %v743 = vmul.f32 %v735, %v735
        %v744 = vmul.f32 %v736, %v736
        %v745 = vmul.f32 %v737, %v737
        %v746 = vmul.f32 %v738, %v738
        %v747 = vadd.f32 %v687, %v739
        %v748 = vadd.f32 %v688, %v740
        %v749 = vadd.f32 %v689, %v741
        %v750 = vadd.f32 %v690, %v742
        %v751 = vadd.f32 %v691, %v743
        %v752 = vadd.f32 %v692, %v744
        %v753 = vadd.f32 %v693, %v745
        %v754 = vadd.f32 %v694, %v746
        %755 = vset.pattern.permute.xlu0 10
        %756 = vperm.xlu0 %755, %v325
        %v757 = vpop.permute.xlu0 %756
        %759 = vset.pattern.permute.xlu0 10
        %760 = vperm.xlu0 %759, %v326
        %v761 = vpop.permute.xlu0 %760
        %763 = vset.pattern.permute.xlu0 10
        %764 = vperm.xlu0 %763, %v327
        %v765 = vpop.permute.xlu0 %764
        %767 = vset.pattern.permute.xlu0 10
        %768 = vperm.xlu0 %767, %v328
        %v769 = vpop.permute.xlu0 %768
        %771 = vset.pattern.permute.xlu0 10
        %772 = vperm.xlu0 %771, %v329
        %v773 = vpop.permute.xlu0 %772
        %775 = vset.pattern.permute.xlu0 10
        %776 = vperm.xlu0 %775, %v330
        %v777 = vpop.permute.xlu0 %776
        %779 = vset.pattern.permute.xlu0 10
        %780 = vperm.xlu0 %779, %v331
        %v781 = vpop.permute.xlu0 %780
        %783 = vset.pattern.permute.xlu0 10
        %784 = vperm.xlu0 %783, %v332
        %v785 = vpop.permute.xlu0 %784
        %v787 = vlaneseq
        %v788 = vshrl.u32 %v787, 7
        %v789 = vsub.s32 7, %v788
        %v790 = vrot.slane %v333, %v789
        %v791 = vsub.f32 %v757, %v790
        %v792 = vsub.f32 %v761, %v790
        %v793 = vsub.f32 %v765, %v790
        %v794 = vsub.f32 %v769, %v790
        %v795 = vsub.f32 %v773, %v790
        %v796 = vsub.f32 %v777, %v790
        %v797 = vsub.f32 %v781, %v790
        %v798 = vsub.f32 %v785, %v790
        %v799 = vmul.f32 %v791, %v791
        %v800 = vmul.f32 %v792, %v792
        %v801 = vmul.f32 %v793, %v793
        %v802 = vmul.f32 %v794, %v794
        %v803 = vmul.f32 %v795, %v795
        %v804 = vmul.f32 %v796, %v796
        %v805 = vmul.f32 %v797, %v797
        %v806 = vmul.f32 %v798, %v798
        %v807 = vadd.f32 %v747, %v799
        %v808 = vadd.f32 %v748, %v800
        %v809 = vadd.f32 %v749, %v801
        %v810 = vadd.f32 %v750, %v802
        %v811 = vadd.f32 %v751, %v803
        %v812 = vadd.f32 %v752, %v804
        %v813 = vadd.f32 %v753, %v805
        %v814 = vadd.f32 %v754, %v806
        %815 = vset.pattern.permute.xlu0 11
        %816 = vperm.xlu0 %815, %v325
        %v817 = vpop.permute.xlu0 %816
        %819 = vset.pattern.permute.xlu0 11
        %820 = vperm.xlu0 %819, %v326
        %v821 = vpop.permute.xlu0 %820
        %823 = vset.pattern.permute.xlu0 11
        %824 = vperm.xlu0 %823, %v327
        %v825 = vpop.permute.xlu0 %824
        %827 = vset.pattern.permute.xlu0 11
        %828 = vperm.xlu0 %827, %v328
        %v829 = vpop.permute.xlu0 %828
        %831 = vset.pattern.permute.xlu0 11
        %832 = vperm.xlu0 %831, %v329
        %v833 = vpop.permute.xlu0 %832
        %835 = vset.pattern.permute.xlu0 11
        %836 = vperm.xlu0 %835, %v330
        %v837 = vpop.permute.xlu0 %836
        %839 = vset.pattern.permute.xlu0 11
        %840 = vperm.xlu0 %839, %v331
        %v841 = vpop.permute.xlu0 %840
        %843 = vset.pattern.permute.xlu0 11
        %844 = vperm.xlu0 %843, %v332
        %v845 = vpop.permute.xlu0 %844
        %v847 = vlaneseq
        %v848 = vshrl.u32 %v847, 7
        %v849 = vsub.s32 0, %v848
        %v850 = vrot.slane %v334, %v849
        %v851 = vsub.f32 %v817, %v850
        %v852 = vsub.f32 %v821, %v850
        %v853 = vsub.f32 %v825, %v850
        %v854 = vsub.f32 %v829, %v850
        %v855 = vsub.f32 %v833, %v850
        %v856 = vsub.f32 %v837, %v850
        %v857 = vsub.f32 %v841, %v850
        %v858 = vsub.f32 %v845, %v850
        %v859 = vmul.f32 %v851, %v851
        %v860 = vmul.f32 %v852, %v852
        %v861 = vmul.f32 %v853, %v853
        %v862 = vmul.f32 %v854, %v854
        %v863 = vmul.f32 %v855, %v855
        %v864 = vmul.f32 %v856, %v856
        %v865 = vmul.f32 %v857, %v857
        %v866 = vmul.f32 %v858, %v858
        %v867 = vadd.f32 %v807, %v859
        %v868 = vadd.f32 %v808, %v860
        %v869 = vadd.f32 %v809, %v861
        %v870 = vadd.f32 %v810, %v862
        %v871 = vadd.f32 %v811, %v863
        %v872 = vadd.f32 %v812, %v864
        %v873 = vadd.f32 %v813, %v865
        %v874 = vadd.f32 %v814, %v866
        %v875 = vpack.c.bf16 %v326, %v325
        %v876 = vpack.c.bf16 %v328, %v327
        %v877 = vpack.c.bf16 %v330, %v329
        %v878 = vpack.c.bf16 %v332, %v331
        %v879 = vld [vmem:[%s2] sm:$0xf]
        %v880 = vld [vmem:[%s2 + $0x4] sm:$0xf]
        %v883 = vunpack.c.l.b16 %v879
        %v884 = vunpack.c.l.b16 %v880
        %v885 = vpack.c.b16 %v884, %v883
        %vm887 = vcmask 130048
        %v889 = vsel %vm887, %v875, 0
        %v892 = vsel %vm887, %v876, 0
        %v895 = vsel %vm887, %v877, 0
        %v898 = vsel %vm887, %v878, 0
        %900 = vmatprep.subr.bf16.mxu0 0
        %901 = vmatpush1.bf16.msra.mxu0 %v885
        %902 = vmatprep.subr.bf16.mxu0 0
        %903 = vmatpush1.bf16.msra.mxu0 0
        %904 = vmatprep.subr.bf16.mxu0 0
        %905 = vmatpush1.bf16.msra.mxu0 0
        %906 = vmatprep.subr.bf16.mxu0 0
        %907 = vmatpush1.bf16.msra.mxu0 0
        %908 = vmatprep.subr.bf16.mxu0 0
        %909 = vmatpush1.bf16.msra.mxu0 0
        %910 = vmatprep.subr.bf16.mxu0 0
        %911 = vmatpush1.bf16.msra.mxu0 0
        %912 = vmatprep.subr.bf16.mxu0 0
        %913 = vmatpush1.bf16.msra.mxu0 0
        %914 = vmatprep.subr.bf16.mxu0 0
        %915 = vmatpush1.bf16.msra.mxu0 0
        %916 = vmatprep.subr.bf16.mxu0 0
        %917 = vmatpush1.bf16.msra.mxu0 0
        %918 = vmatprep.subr.bf16.mxu0 0
        %919 = vmatpush1.bf16.msra.mxu0 0
        %920 = vmatprep.subr.bf16.mxu0 0
        %921 = vmatpush1.bf16.msra.mxu0 0
        %922 = vmatprep.subr.bf16.mxu0 0
        %923 = vmatpush1.bf16.msra.mxu0 0
        %924 = vmatprep.subr.bf16.mxu0 0
        %925 = vmatpush1.bf16.msra.mxu0 0
        %926 = vmatprep.subr.bf16.mxu0 0
        %927 = vmatpush1.bf16.msra.mxu0 0
        %928 = vmatprep.subr.bf16.mxu0 0
        %929 = vmatpush1.bf16.msra.mxu0 0
        %930 = vmatprep.subr.bf16.mxu0 0
        %931 = vmatpush1.bf16.msra.mxu0 0
        %932 = vmatprep.mubr.bf16.mxu0 0
        %933 = vmatmul.mubr.bf16.gmra.mrb[0].mxu0 %v889
        %v934 = vpop.f32.mrb[0].mxu0
        %v935 = vadd.f32 0.0, %v934
        %v936 = vpop.f32.mrb[0].mxu0
        %v937 = vpop.f32.mrb[0].mxu0
        %v938 = vadd.f32 0.0, %v937
        %v939 = vpop.f32.mrb[0].mxu0
        %940 = vmatprep.mubr.bf16.mxu0 0
        %941 = vmatmul.mubr.bf16.gmra.mrb[0].mxu0 %v892
        %v942 = vpop.f32.mrb[0].mxu0
        %v943 = vadd.f32 0.0, %v942
        %v944 = vpop.f32.mrb[0].mxu0
        %v945 = vpop.f32.mrb[0].mxu0
        %v946 = vadd.f32 0.0, %v945
        %v947 = vpop.f32.mrb[0].mxu0
        %948 = vmatprep.mubr.bf16.mxu0 0
        %949 = vmatmul.mubr.bf16.gmra.mrb[0].mxu0 %v895
        %v950 = vpop.f32.mrb[0].mxu0
        %v951 = vadd.f32 0.0, %v950
        %v952 = vpop.f32.mrb[0].mxu0
        %v953 = vpop.f32.mrb[0].mxu0
        %v954 = vadd.f32 0.0, %v953
        %v955 = vpop.f32.mrb[0].mxu0
        %956 = vmatprep.mubr.bf16.mxu0 0
        %957 = vmatmul.mubr.bf16.gmra.mrb[0].mxu0 %v898
        %v958 = vpop.f32.mrb[0].mxu0
        %v959 = vadd.f32 0.0, %v958
        %v960 = vpop.f32.mrb[0].mxu0
        %v961 = vpop.f32.mrb[0].mxu0
        %v962 = vadd.f32 0.0, %v961
        %v963 = vpop.f32.mrb[0].mxu0
        %964 = vdwg.mxu0
        %v965 = vmax.f32 %v935, 0.0
        %v966 = vmax.f32 %v938, 0.0
        %v967 = vmax.f32 %v943, 0.0
        %v968 = vmax.f32 %v946, 0.0
        %v969 = vmax.f32 %v951, 0.0
        %v970 = vmax.f32 %v954, 0.0
        %v971 = vmax.f32 %v959, 0.0
        %v972 = vmax.f32 %v962, 0.0
        %v973 = vpack.c.bf16 %v966, %v965
        %v974 = vpack.c.bf16 %v968, %v967
        %v975 = vpack.c.bf16 %v970, %v969
        %v976 = vpack.c.bf16 %v972, %v971
        %v977 = vld [vmem:[%s3] sm:$0xf]
        %v978 = vld [vmem:[%s3 + $0x4] sm:$0xf]
        %v979 = vld [vmem:[%s3 + $0x8] sm:$0xf]
        %v980 = vld [vmem:[%s3 + $0xc] sm:$0xf]
        %v985 = vunpack.c.l.b16 %v977
        %v986 = vunpack.c.l.b16 %v978
        %v987 = vunpack.c.l.b16 %v979
        %v988 = vunpack.c.l.b16 %v980
        %v989 = vpack.c.b16 %v986, %v985
        %v990 = vpack.c.b16 %v988, %v987
        %vm993 = vcmask 261120
        %v995 = vsel %vm993, %v973, 0
        %v998 = vsel %vm993, %v974, 0
        %v1001 = vsel %vm993, %v975, 0
        %v1004 = vsel %vm993, %v976, 0
        %1006 = vmatprep.subr.bf16.mxu0 0
        %1007 = vmatpush1.bf16.msra.mxu0 %v989
        %1008 = vmatprep.subr.bf16.mxu0 0
        %1009 = vmatpush1.bf16.msra.mxu0 %v990
        %1010 = vmatprep.subr.bf16.mxu0 0
        %1011 = vmatpush1.bf16.msra.mxu0 0
        %1012 = vmatprep.subr.bf16.mxu0 0
        %1013 = vmatpush1.bf16.msra.mxu0 0
        %1014 = vmatprep.subr.bf16.mxu0 0
        %1015 = vmatpush1.bf16.msra.mxu0 0
        %1016 = vmatprep.subr.bf16.mxu0 0
        %1017 = vmatpush1.bf16.msra.mxu0 0
        %1018 = vmatprep.subr.bf16.mxu0 0
        %1019 = vmatpush1.bf16.msra.mxu0 0
        %1020 = vmatprep.subr.bf16.mxu0 0
        %1021 = vmatpush1.bf16.msra.mxu0 0
        %1022 = vmatprep.subr.bf16.mxu0 0
        %1023 = vmatpush1.bf16.msra.mxu0 0
        %1024 = vmatprep.subr.bf16.mxu0 0
        %1025 = vmatpush1.bf16.msra.mxu0 0
        %1026 = vmatprep.subr.bf16.mxu0 0
        %1027 = vmatpush1.bf16.msra.mxu0 0
        %1028 = vmatprep.subr.bf16.mxu0 0
        %1029 = vmatpush1.bf16.msra.mxu0 0
        %1030 = vmatprep.subr.bf16.mxu0 0
        %1031 = vmatpush1.bf16.msra.mxu0 0
        %1032 = vmatprep.subr.bf16.mxu0 0
        %1033 = vmatpush1.bf16.msra.mxu0 0
        %1034 = vmatprep.subr.bf16.mxu0 0
        %1035 = vmatpush1.bf16.msra.mxu0 0
        %1036 = vmatprep.subr.bf16.mxu0 0
        %1037 = vmatpush1.bf16.msra.mxu0 0
        %1038 = vmatprep.mubr.bf16.mxu0 0
        %1039 = vmatmul.mubr.bf16.gmra.mrb[0].mxu0 %v995
        %v1040 = vpop.f32.mrb[0].mxu0
        %v1041 = vadd.f32 0.0, %v1040
        %v1042 = vpop.f32.mrb[0].mxu0
        %v1043 = vpop.f32.mrb[0].mxu0
        %v1044 = vadd.f32 0.0, %v1043
        %v1045 = vpop.f32.mrb[0].mxu0
        %1046 = vmatprep.mubr.bf16.mxu0 0
        %1047 = vmatmul.mubr.bf16.gmra.mrb[0].mxu0 %v998
        %v1048 = vpop.f32.mrb[0].mxu0
        %v1049 = vadd.f32 0.0, %v1048
        %v1050 = vpop.f32.mrb[0].mxu0
        %v1051 = vpop.f32.mrb[0].mxu0
        %v1052 = vadd.f32 0.0, %v1051
        %v1053 = vpop.f32.mrb[0].mxu0
        %1054 = vmatprep.mubr.bf16.mxu0 0
        %1055 = vmatmul.mubr.bf16.gmra.mrb[0].mxu0 %v1001
        %v1056 = vpop.f32.mrb[0].mxu0
        %v1057 = vadd.f32 0.0, %v1056
        %v1058 = vpop.f32.mrb[0].mxu0
        %v1059 = vpop.f32.mrb[0].mxu0
        %v1060 = vadd.f32 0.0, %v1059
        %v1061 = vpop.f32.mrb[0].mxu0
        %1062 = vmatprep.mubr.bf16.mxu0 0
        %1063 = vmatmul.mubr.bf16.gmra.mrb[0].mxu0 %v1004
        %v1064 = vpop.f32.mrb[0].mxu0
        %v1065 = vadd.f32 0.0, %v1064
        %v1066 = vpop.f32.mrb[0].mxu0
        %v1067 = vpop.f32.mrb[0].mxu0
        %v1068 = vadd.f32 0.0, %v1067
        %v1069 = vpop.f32.mrb[0].mxu0
        %1070 = vdwg.mxu0
        %v1071 = vmax.f32 %v1041, 0.0
        %v1072 = vmax.f32 %v1044, 0.0
        %v1073 = vmax.f32 %v1049, 0.0
        %v1074 = vmax.f32 %v1052, 0.0
        %v1075 = vmax.f32 %v1057, 0.0
        %v1076 = vmax.f32 %v1060, 0.0
        %v1077 = vmax.f32 %v1065, 0.0
        %v1078 = vmax.f32 %v1068, 0.0
        %v1079 = vpack.c.bf16 %v1072, %v1071
        %v1080 = vpack.c.bf16 %v1074, %v1073
        %v1081 = vpack.c.bf16 %v1076, %v1075
        %v1082 = vpack.c.bf16 %v1078, %v1077
        %v1083 = vld [vmem:[%s4] sm:$0xf]
        %v1084 = vld [vmem:[%s4 + $0x4] sm:$0xf]
        %v1085 = vld [vmem:[%s4 + $0x8] sm:$0xf]
        %v1086 = vld [vmem:[%s4 + $0xc] sm:$0xf]
        %v1091 = vunpack.c.l.b16 %v1083
        %v1092 = vunpack.c.l.b16 %v1084
        %v1093 = vunpack.c.l.b16 %v1085
        %v1094 = vunpack.c.l.b16 %v1086
        %v1095 = vpack.c.b16 %v1092, %v1091
        %v1096 = vpack.c.b16 %v1094, %v1093
        %v1100 = vsel %vm993, %v1079, 0
        %v1103 = vsel %vm993, %v1080, 0
        %v1106 = vsel %vm993, %v1081, 0
        %v1109 = vsel %vm993, %v1082, 0
        %1111 = vmatprep.subr.bf16.mxu0 0
        %1112 = vmatpush1.bf16.msra.mxu0 %v1095
        %1113 = vmatprep.subr.bf16.mxu0 0
        %1114 = vmatpush1.bf16.msra.mxu0 %v1096
        %1115 = vmatprep.subr.bf16.mxu0 0
        %1116 = vmatpush1.bf16.msra.mxu0 0
        %1117 = vmatprep.subr.bf16.mxu0 0
        %1118 = vmatpush1.bf16.msra.mxu0 0
        %1119 = vmatprep.subr.bf16.mxu0 0
        %1120 = vmatpush1.bf16.msra.mxu0 0
        %1121 = vmatprep.subr.bf16.mxu0 0
        %1122 = vmatpush1.bf16.msra.mxu0 0
        %1123 = vmatprep.subr.bf16.mxu0 0
        %1124 = vmatpush1.bf16.msra.mxu0 0
        %1125 = vmatprep.subr.bf16.mxu0 0
        %1126 = vmatpush1.bf16.msra.mxu0 0
        %1127 = vmatprep.subr.bf16.mxu0 0
        %1128 = vmatpush1.bf16.msra.mxu0 0
        %1129 = vmatprep.subr.bf16.mxu0 0
        %1130 = vmatpush1.bf16.msra.mxu0 0
        %1131 = vmatprep.subr.bf16.mxu0 0
        %1132 = vmatpush1.bf16.msra.mxu0 0
        %1133 = vmatprep.subr.bf16.mxu0 0
        %1134 = vmatpush1.bf16.msra.mxu0 0
        %1135 = vmatprep.subr.bf16.mxu0 0
        %1136 = vmatpush1.bf16.msra.mxu0 0
        %1137 = vmatprep.subr.bf16.mxu0 0
        %1138 = vmatpush1.bf16.msra.mxu0 0
        %1139 = vmatprep.subr.bf16.mxu0 0
        %1140 = vmatpush1.bf16.msra.mxu0 0
        %1141 = vmatprep.subr.bf16.mxu0 0
        %1142 = vmatpush1.bf16.msra.mxu0 0
        %1143 = vmatprep.mubr.bf16.mxu0 0
        %1144 = vmatmul.mubr.bf16.gmra.mrb[0].mxu0 %v1100
        %v1145 = vpop.f32.mrb[0].mxu0
        %v1146 = vadd.f32 0.0, %v1145
        %v1147 = vpop.f32.mrb[0].mxu0
        %v1148 = vpop.f32.mrb[0].mxu0
        %v1149 = vadd.f32 0.0, %v1148
        %v1150 = vpop.f32.mrb[0].mxu0
        %1151 = vmatprep.mubr.bf16.mxu0 0
        %1152 = vmatmul.mubr.bf16.gmra.mrb[0].mxu0 %v1103
        %v1153 = vpop.f32.mrb[0].mxu0
        %v1154 = vadd.f32 0.0, %v1153
        %v1155 = vpop.f32.mrb[0].mxu0
        %v1156 = vpop.f32.mrb[0].mxu0
        %v1157 = vadd.f32 0.0, %v1156
        %v1158 = vpop.f32.mrb[0].mxu0
        %1159 = vmatprep.mubr.bf16.mxu0 0
        %1160 = vmatmul.mubr.bf16.gmra.mrb[0].mxu0 %v1106
        %v1161 = vpop.f32.mrb[0].mxu0
        %v1162 = vadd.f32 0.0, %v1161
        %v1163 = vpop.f32.mrb[0].mxu0
        %v1164 = vpop.f32.mrb[0].mxu0
        %v1165 = vadd.f32 0.0, %v1164
        %v1166 = vpop.f32.mrb[0].mxu0
        %1167 = vmatprep.mubr.bf16.mxu0 0
        %1168 = vmatmul.mubr.bf16.gmra.mrb[0].mxu0 %v1109
        %v1169 = vpop.f32.mrb[0].mxu0
        %v1170 = vadd.f32 0.0, %v1169
        %v1171 = vpop.f32.mrb[0].mxu0
        %v1172 = vpop.f32.mrb[0].mxu0
        %v1173 = vadd.f32 0.0, %v1172
        %v1174 = vpop.f32.mrb[0].mxu0
        %1175 = vdwg.mxu0
        %v1176 = vmax.f32 %v1146, 0.0
        %v1177 = vmax.f32 %v1149, 0.0
        %v1178 = vmax.f32 %v1154, 0.0
        %v1179 = vmax.f32 %v1157, 0.0
        %v1180 = vmax.f32 %v1162, 0.0
        %v1181 = vmax.f32 %v1165, 0.0
        %v1182 = vmax.f32 %v1170, 0.0
        %v1183 = vmax.f32 %v1173, 0.0
        %v1184 = vpack.c.bf16 %v1177, %v1176
        %v1185 = vpack.c.bf16 %v1179, %v1178
        %v1186 = vpack.c.bf16 %v1181, %v1180
        %v1187 = vpack.c.bf16 %v1183, %v1182
        %v1188 = vlaneseq
        %v1189 = vshrl.u32 %v1188, 7
        %v1190 = vadd.s32 %v1189, 8
        %v1191 = vadd.s32 %v1189, 16
        %v1192 = vadd.s32 %v1189, 24
        %v1193 = vadd.s32 %v1189, 32
        %v1194 = vadd.s32 %v1189, 40
        %v1195 = vadd.s32 %v1189, 48
        %v1196 = vadd.s32 %v1189, 56
        %v1197 = vlaneseq
        %v1198 = vand.u32 %v1197, 127
        %vm1199 = vcmask 523264
        %v1200 = vsel %vm1199, %v867, inf
        %v1201 = vsel %vm1199, %v868, inf
        %v1202 = vsel %vm1199, %v869, inf
        %v1203 = vsel %vm1199, %v870, inf
        %v1204 = vsel %vm1199, %v871, inf
        %v1205 = vmin.f32 %v1200, %v1204
        %v1206 = vsel %vm1199, %v872, inf
        %v1207 = vmin.f32 %v1201, %v1206
        %v1208 = vsel %vm1199, %v873, inf
        %v1209 = vmin.f32 %v1202, %v1208
        %v1210 = vsel %vm1199, %v874, inf
        %v1211 = vmin.f32 %v1203, %v1210
        %v1212 = vmin.f32 %v1205, %v1207
        %v1213 = vmin.f32 %v1209, %v1211
        %v1214 = vmin.f32 %v1212, %v1213
        %v1215 = vrot.slane %v1214, 4
        %v1216 = vmin.f32 %v1214, %v1215
        %v1217 = vrot.slane %v1216, 2
        %v1218 = vmin.f32 %v1216, %v1217
        %v1219 = vrot.slane %v1218, 1
        %v1220 = vmin.f32 %v1218, %v1219
        %vm1221 = vcmp.le.f32.partialorder %v867, %v1220
        %vm1222 = vcmp.le.f32.partialorder %v868, %v1220
        %vm1223 = vcmp.le.f32.partialorder %v869, %v1220
        %vm1224 = vcmp.le.f32.partialorder %v870, %v1220
        %vm1225 = vcmp.le.f32.partialorder %v871, %v1220
        %vm1226 = vcmp.le.f32.partialorder %v872, %v1220
        %vm1227 = vcmp.le.f32.partialorder %v873, %v1220
        %vm1228 = vcmp.le.f32.partialorder %v874, %v1220
        %v1229 = vsel %vm1221, %v1189, 64
        %v1230 = vsel %vm1222, %v1190, 64
        %v1231 = vsel %vm1223, %v1191, 64
        %v1232 = vsel %vm1224, %v1192, 64
        %v1233 = vsel %vm1225, %v1193, 64
        %v1234 = vsel %vm1226, %v1194, 64
        %v1235 = vsel %vm1227, %v1195, 64
        %v1236 = vsel %vm1228, %v1196, 64
        %v1237 = vsel %vm1199, %v1229, 2147483647
        %v1238 = vsel %vm1199, %v1230, 2147483647
        %v1239 = vsel %vm1199, %v1231, 2147483647
        %v1240 = vsel %vm1199, %v1232, 2147483647
        %v1241 = vsel %vm1199, %v1233, 2147483647
        %vm1242 = vcmp.lt.s32.totalorder %v1237, %v1241
        %v1243 = vsel %vm1242, %v1237, %v1241
        %v1244 = vsel %vm1199, %v1234, 2147483647
        %vm1245 = vcmp.lt.s32.totalorder %v1238, %v1244
        %v1246 = vsel %vm1245, %v1238, %v1244
        %v1247 = vsel %vm1199, %v1235, 2147483647
        %vm1248 = vcmp.lt.s32.totalorder %v1239, %v1247
        %v1249 = vsel %vm1248, %v1239, %v1247
        %v1250 = vsel %vm1199, %v1236, 2147483647
        %vm1251 = vcmp.lt.s32.totalorder %v1240, %v1250
        %v1252 = vsel %vm1251, %v1240, %v1250
        %vm1253 = vcmp.lt.s32.totalorder %v1243, %v1246
        %v1254 = vsel %vm1253, %v1243, %v1246
        %vm1255 = vcmp.lt.s32.totalorder %v1249, %v1252
        %v1256 = vsel %vm1255, %v1249, %v1252
        %vm1257 = vcmp.lt.s32.totalorder %v1254, %v1256
        %v1258 = vsel %vm1257, %v1254, %v1256
        %v1259 = vrot.slane %v1258, 4
        %vm1260 = vcmp.lt.s32.totalorder %v1258, %v1259
        %v1261 = vsel %vm1260, %v1258, %v1259
        %v1262 = vrot.slane %v1261, 2
        %vm1263 = vcmp.lt.s32.totalorder %v1261, %v1262
        %v1264 = vsel %vm1263, %v1261, %v1262
        %v1265 = vrot.slane %v1264, 1
        %vm1266 = vcmp.lt.s32.totalorder %v1264, %v1265
        %v1267 = vsel %vm1266, %v1264, %v1265
        %vm1268 = vcmp.eq.s32.totalorder %v1189, %v1267
        %vm1269 = vcmp.eq.s32.totalorder %v1190, %v1267
        %vm1270 = vcmp.eq.s32.totalorder %v1191, %v1267
        %vm1271 = vcmp.eq.s32.totalorder %v1192, %v1267
        %vm1272 = vcmp.eq.s32.totalorder %v1193, %v1267
        %vm1273 = vcmp.eq.s32.totalorder %v1194, %v1267
        %vm1274 = vcmp.eq.s32.totalorder %v1195, %v1267
        %vm1275 = vcmp.eq.s32.totalorder %v1196, %v1267
        %1276 = vxpose.xlu0.b32.start [1/16] %v1267, 128
        %1277 = vxpose.xlu0.b32.cont [2/16] 0, 128
        %1278 = vxpose.xlu0.b32.cont [3/16] 0, 128
        %1279 = vxpose.xlu0.b32.cont [4/16] 0, 128
        %1280 = vxpose.xlu0.b32.cont [5/16] 0, 128
        %1281 = vxpose.xlu0.b32.cont [6/16] 0, 128
        %1282 = vxpose.xlu0.b32.cont [7/16] 0, 128
        %1283 = vxpose.xlu0.b32.cont [8/16] 0, 128
        %1284 = vxpose.xlu0.b32.cont [9/16] 0, 128
        %1285 = vxpose.xlu0.b32.cont [10/16] 0, 128
        %1286 = vxpose.xlu0.b32.cont [11/16] 0, 128
        %1287 = vxpose.xlu0.b32.cont [12/16] 0, 128
        %1288 = vxpose.xlu0.b32.cont [13/16] 0, 128
        %1289 = vxpose.xlu0.b32.cont [14/16] 0, 128
        %1290 = vxpose.xlu0.b32.cont [15/16] 0, 128
        %1291 = vxpose.xlu0.b32.end [16/16] 0, 128
        %v1292 = vpop.trf.xlu0
        %v1293 = vpop.trf.xlu0
        %v1294 = vpop.trf.xlu0
        %v1295 = vpop.trf.xlu0
        %v1296 = vpop.trf.xlu0
        %v1297 = vpop.trf.xlu0
        %v1298 = vpop.trf.xlu0
        %v1299 = vpop.trf.xlu0
        %v1300 = vpop.trf.xlu0
        %v1301 = vpop.trf.xlu0
        %v1302 = vpop.trf.xlu0
        %v1303 = vpop.trf.xlu0
        %v1304 = vpop.trf.xlu0
        %v1305 = vpop.trf.xlu0
        %v1306 = vpop.trf.xlu0
        %v1307 = vpop.trf.xlu0
        %1308 = vset.pattern.permute.xlu0 0
        %1309 = vperm.xlu0 %1308, %v1292
        %v1310 = vpop.permute.xlu0 %1309
        %1311 = vset.pattern.permute.xlu0 0
        %1312 = vperm.xlu0 %1311, %v1293
        %v1313 = vpop.permute.xlu0 %1312
        %1314 = vset.pattern.permute.xlu0 0
        %1315 = vperm.xlu0 %1314, %v1294
        %v1316 = vpop.permute.xlu0 %1315
        %1317 = vset.pattern.permute.xlu0 0
        %1318 = vperm.xlu0 %1317, %v1295
        %v1319 = vpop.permute.xlu0 %1318
        %1320 = vset.pattern.permute.xlu0 0
        %1321 = vperm.xlu0 %1320, %v1296
        %v1322 = vpop.permute.xlu0 %1321
        %1323 = vset.pattern.permute.xlu0 0
        %1324 = vperm.xlu0 %1323, %v1297
        %v1325 = vpop.permute.xlu0 %1324
        %1326 = vset.pattern.permute.xlu0 0
        %1327 = vperm.xlu0 %1326, %v1298
        %v1328 = vpop.permute.xlu0 %1327
        %1329 = vset.pattern.permute.xlu0 0
        %1330 = vperm.xlu0 %1329, %v1299
        %v1331 = vpop.permute.xlu0 %1330
        %vm1332 = vcmp.eq.s32.totalorder %v1198, %v1310
        %vm1333 = vcmp.eq.s32.totalorder %v1198, %v1313
        %vm1334 = vcmp.eq.s32.totalorder %v1198, %v1316
        %vm1335 = vcmp.eq.s32.totalorder %v1198, %v1319
        %vm1336 = vcmp.eq.s32.totalorder %v1198, %v1322
        %vm1337 = vcmp.eq.s32.totalorder %v1198, %v1325
        %vm1338 = vcmp.eq.s32.totalorder %v1198, %v1328
        %vm1339 = vcmp.eq.s32.totalorder %v1198, %v1331
        %v1340 = vsel %vm1332, 1, 0
        %v1341 = vsel %vm1333, 1, 0
        %v1342 = vsel %vm1334, 1, 0
        %v1343 = vsel %vm1335, 1, 0
        %v1344 = vsel %vm1336, 1, 0
        %v1345 = vsel %vm1337, 1, 0
        %v1346 = vsel %vm1338, 1, 0
        %v1347 = vsel %vm1339, 1, 0
        %v1348 = vcvt.s32.f32 %v1340
        %v1349 = vcvt.s32.f32 %v1341
        %v1350 = vcvt.s32.f32 %v1342
        %v1351 = vcvt.s32.f32 %v1343
        %v1352 = vcvt.s32.f32 %v1344
        %v1353 = vcvt.s32.f32 %v1345
        %v1354 = vcvt.s32.f32 %v1346
        %v1355 = vcvt.s32.f32 %v1347
        %v1356 = vpack.c.bf16 %v1349, %v1348
        %v1357 = vpack.c.bf16 %v1351, %v1350
        %v1358 = vpack.c.bf16 %v1353, %v1352
        %v1359 = vpack.c.bf16 %v1355, %v1354
        %v1361 = vsel %vm1199, %v1356, 0
        %v1364 = vsel %vm1199, %v1357, 0
        %v1367 = vsel %vm1199, %v1358, 0
        %v1370 = vsel %vm1199, %v1359, 0
        %1372 = vmatprep.subr.bf16.mxu0 0
        %1373 = vmatpush1.bf16.msra.mxu0 %v1184
        %1374 = vmatprep.subr.bf16.mxu0 0
        %1375 = vmatpush1.bf16.msra.mxu0 %v1185
        %1376 = vmatprep.subr.bf16.mxu0 0
        %1377 = vmatpush1.bf16.msra.mxu0 %v1186
        %1378 = vmatprep.subr.bf16.mxu0 0
        %1379 = vmatpush1.bf16.msra.mxu0 %v1187
        %1380 = vmatprep.subr.bf16.mxu0 0
        %1381 = vmatpush1.bf16.msra.mxu0 0
        %1382 = vmatprep.subr.bf16.mxu0 0
        %1383 = vmatpush1.bf16.msra.mxu0 0
        %1384 = vmatprep.subr.bf16.mxu0 0
        %1385 = vmatpush1.bf16.msra.mxu0 0
        %1386 = vmatprep.subr.bf16.mxu0 0
        %1387 = vmatpush1.bf16.msra.mxu0 0
        %1388 = vmatprep.subr.bf16.mxu0 0
        %1389 = vmatpush1.bf16.msra.mxu0 0
        %1390 = vmatprep.subr.bf16.mxu0 0
        %1391 = vmatpush1.bf16.msra.mxu0 0
        %1392 = vmatprep.subr.bf16.mxu0 0
        %1393 = vmatpush1.bf16.msra.mxu0 0
        %1394 = vmatprep.subr.bf16.mxu0 0
        %1395 = vmatpush1.bf16.msra.mxu0 0
        %1396 = vmatprep.subr.bf16.mxu0 0
        %1397 = vmatpush1.bf16.msra.mxu0 0
        %1398 = vmatprep.subr.bf16.mxu0 0
        %1399 = vmatpush1.bf16.msra.mxu0 0
        %1400 = vmatprep.subr.bf16.mxu0 0
        %1401 = vmatpush1.bf16.msra.mxu0 0
        %1402 = vmatprep.subr.bf16.mxu0 0
        %1403 = vmatpush1.bf16.msra.mxu0 0
        %1404 = vmatprep.mubr.bf16.mxu0 0
        %1405 = vmatmul.mubr.bf16.gmra.mrb[0].mxu0 %v1361
        %v1406 = vpop.f32.mrb[0].mxu0
        %v1407 = vadd.f32 0.0, %v1406
        %v1408 = vpop.f32.mrb[0].mxu0
        %v1409 = vpop.f32.mrb[0].mxu0
        %v1410 = vadd.f32 0.0, %v1409
        %v1411 = vpop.f32.mrb[0].mxu0
        %1412 = vmatprep.mubr.bf16.mxu0 0
        %1413 = vmatmul.mubr.bf16.gmra.mrb[0].mxu0 %v1364
        %v1414 = vpop.f32.mrb[0].mxu0
        %v1415 = vadd.f32 0.0, %v1414
        %v1416 = vpop.f32.mrb[0].mxu0
        %v1417 = vpop.f32.mrb[0].mxu0
        %v1418 = vadd.f32 0.0, %v1417
        %v1419 = vpop.f32.mrb[0].mxu0
        %1420 = vmatprep.mubr.bf16.mxu0 0
        %1421 = vmatmul.mubr.bf16.gmra.mrb[0].mxu0 %v1367
        %v1422 = vpop.f32.mrb[0].mxu0
        %v1423 = vadd.f32 0.0, %v1422
        %v1424 = vpop.f32.mrb[0].mxu0
        %v1425 = vpop.f32.mrb[0].mxu0
        %v1426 = vadd.f32 0.0, %v1425
        %v1427 = vpop.f32.mrb[0].mxu0
        %1428 = vmatprep.mubr.bf16.mxu0 0
        %1429 = vmatmul.mubr.bf16.gmra.mrb[0].mxu0 %v1370
        %v1430 = vpop.f32.mrb[0].mxu0
        %v1431 = vadd.f32 0.0, %v1430
        %v1432 = vpop.f32.mrb[0].mxu0
        %v1433 = vpop.f32.mrb[0].mxu0
        %v1434 = vadd.f32 0.0, %v1433
        %v1435 = vpop.f32.mrb[0].mxu0
        %1436 = vdwg.mxu0
        %v1437 = vmax.f32 %v1407, 0.0
        %v1438 = vmax.f32 %v1410, 0.0
        %v1439 = vmax.f32 %v1415, 0.0
        %v1440 = vmax.f32 %v1418, 0.0
        %v1441 = vmax.f32 %v1423, 0.0
        %v1442 = vmax.f32 %v1426, 0.0
        %v1443 = vmax.f32 %v1431, 0.0
        %v1444 = vmax.f32 %v1434, 0.0
        %v1445 = vsel %vm1268, inf, %v867
        %v1446 = vsel %vm1269, inf, %v868
        %v1447 = vsel %vm1270, inf, %v869
        %v1448 = vsel %vm1271, inf, %v870
        %v1449 = vsel %vm1272, inf, %v871
        %v1450 = vsel %vm1273, inf, %v872
        %v1451 = vsel %vm1274, inf, %v873
        %v1452 = vsel %vm1275, inf, %v874
        %v1453 = vsel %vm1199, %v1445, inf
        %v1454 = vsel %vm1199, %v1446, inf
        %v1455 = vsel %vm1199, %v1447, inf
        %v1456 = vsel %vm1199, %v1448, inf
        %v1457 = vsel %vm1199, %v1449, inf
        %v1458 = vmin.f32 %v1453, %v1457
        %v1459 = vsel %vm1199, %v1450, inf
        %v1460 = vmin.f32 %v1454, %v1459
        %v1461 = vsel %vm1199, %v1451, inf
        %v1462 = vmin.f32 %v1455, %v1461
        %v1463 = vsel %vm1199, %v1452, inf
        %v1464 = vmin.f32 %v1456, %v1463
        %v1465 = vmin.f32 %v1458, %v1460
        %v1466 = vmin.f32 %v1462, %v1464
        %v1467 = vmin.f32 %v1465, %v1466
        %v1468 = vrot.slane %v1467, 4
        %v1469 = vmin.f32 %v1467, %v1468
        %v1470 = vrot.slane %v1469, 2
        %v1471 = vmin.f32 %v1469, %v1470
        %v1472 = vrot.slane %v1471, 1
        %v1473 = vmin.f32 %v1471, %v1472
        %vm1474 = vcmp.le.f32.partialorder %v1445, %v1473
        %vm1475 = vcmp.le.f32.partialorder %v1446, %v1473
        %vm1476 = vcmp.le.f32.partialorder %v1447, %v1473
        %vm1477 = vcmp.le.f32.partialorder %v1448, %v1473
        %vm1478 = vcmp.le.f32.partialorder %v1449, %v1473
        %vm1479 = vcmp.le.f32.partialorder %v1450, %v1473
        %vm1480 = vcmp.le.f32.partialorder %v1451, %v1473
        %vm1481 = vcmp.le.f32.partialorder %v1452, %v1473
        %v1482 = vsel %vm1474, %v1189, 64
        %v1483 = vsel %vm1475, %v1190, 64
        %v1484 = vsel %vm1476, %v1191, 64
        %v1485 = vsel %vm1477, %v1192, 64
        %v1486 = vsel %vm1478, %v1193, 64
        %v1487 = vsel %vm1479, %v1194, 64
        %v1488 = vsel %vm1480, %v1195, 64
        %v1489 = vsel %vm1481, %v1196, 64
        %v1490 = vsel %vm1199, %v1482, 2147483647
        %v1491 = vsel %vm1199, %v1483, 2147483647
        %v1492 = vsel %vm1199, %v1484, 2147483647
        %v1493 = vsel %vm1199, %v1485, 2147483647
        %v1494 = vsel %vm1199, %v1486, 2147483647
        %vm1495 = vcmp.lt.s32.totalorder %v1490, %v1494
        %v1496 = vsel %vm1495, %v1490, %v1494
        %v1497 = vsel %vm1199, %v1487, 2147483647
        %vm1498 = vcmp.lt.s32.totalorder %v1491, %v1497
        %v1499 = vsel %vm1498, %v1491, %v1497
        %v1500 = vsel %vm1199, %v1488, 2147483647
        %vm1501 = vcmp.lt.s32.totalorder %v1492, %v1500
        %v1502 = vsel %vm1501, %v1492, %v1500
        %v1503 = vsel %vm1199, %v1489, 2147483647
        %vm1504 = vcmp.lt.s32.totalorder %v1493, %v1503
        %v1505 = vsel %vm1504, %v1493, %v1503
        %vm1506 = vcmp.lt.s32.totalorder %v1496, %v1499
        %v1507 = vsel %vm1506, %v1496, %v1499
        %vm1508 = vcmp.lt.s32.totalorder %v1502, %v1505
        %v1509 = vsel %vm1508, %v1502, %v1505
        %vm1510 = vcmp.lt.s32.totalorder %v1507, %v1509
        %v1511 = vsel %vm1510, %v1507, %v1509
        %v1512 = vrot.slane %v1511, 4
        %vm1513 = vcmp.lt.s32.totalorder %v1511, %v1512
        %v1514 = vsel %vm1513, %v1511, %v1512
        %v1515 = vrot.slane %v1514, 2
        %vm1516 = vcmp.lt.s32.totalorder %v1514, %v1515
        %v1517 = vsel %vm1516, %v1514, %v1515
        %v1518 = vrot.slane %v1517, 1
        %vm1519 = vcmp.lt.s32.totalorder %v1517, %v1518
        %v1520 = vsel %vm1519, %v1517, %v1518
        %vm1521 = vcmp.eq.s32.totalorder %v1189, %v1520
        %vm1522 = vcmp.eq.s32.totalorder %v1190, %v1520
        %vm1523 = vcmp.eq.s32.totalorder %v1191, %v1520
        %vm1524 = vcmp.eq.s32.totalorder %v1192, %v1520
        %vm1525 = vcmp.eq.s32.totalorder %v1193, %v1520
        %vm1526 = vcmp.eq.s32.totalorder %v1194, %v1520
        %vm1527 = vcmp.eq.s32.totalorder %v1195, %v1520
        %vm1528 = vcmp.eq.s32.totalorder %v1196, %v1520
        %1529 = vxpose.xlu0.b32.start [1/16] %v1520, 128
        %1530 = vxpose.xlu0.b32.cont [2/16] 0, 128
        %1531 = vxpose.xlu0.b32.cont [3/16] 0, 128
        %1532 = vxpose.xlu0.b32.cont [4/16] 0, 128
        %1533 = vxpose.xlu0.b32.cont [5/16] 0, 128
        %1534 = vxpose.xlu0.b32.cont [6/16] 0, 128
        %1535 = vxpose.xlu0.b32.cont [7/16] 0, 128
        %1536 = vxpose.xlu0.b32.cont [8/16] 0, 128
        %1537 = vxpose.xlu0.b32.cont [9/16] 0, 128
        %1538 = vxpose.xlu0.b32.cont [10/16] 0, 128
        %1539 = vxpose.xlu0.b32.cont [11/16] 0, 128
        %1540 = vxpose.xlu0.b32.cont [12/16] 0, 128
        %1541 = vxpose.xlu0.b32.cont [13/16] 0, 128
        %1542 = vxpose.xlu0.b32.cont [14/16] 0, 128
        %1543 = vxpose.xlu0.b32.cont [15/16] 0, 128
        %1544 = vxpose.xlu0.b32.end [16/16] 0, 128
        %v1545 = vpop.trf.xlu0
        %v1546 = vpop.trf.xlu0
        %v1547 = vpop.trf.xlu0
        %v1548 = vpop.trf.xlu0
        %v1549 = vpop.trf.xlu0
        %v1550 = vpop.trf.xlu0
        %v1551 = vpop.trf.xlu0
        %v1552 = vpop.trf.xlu0
        %v1553 = vpop.trf.xlu0
        %v1554 = vpop.trf.xlu0
        %v1555 = vpop.trf.xlu0
        %v1556 = vpop.trf.xlu0
        %v1557 = vpop.trf.xlu0
        %v1558 = vpop.trf.xlu0
        %v1559 = vpop.trf.xlu0
        %v1560 = vpop.trf.xlu0
        %1561 = vset.pattern.permute.xlu0 0
        %1562 = vperm.xlu0 %1561, %v1545
        %v1563 = vpop.permute.xlu0 %1562
        %1564 = vset.pattern.permute.xlu0 0
        %1565 = vperm.xlu0 %1564, %v1546
        %v1566 = vpop.permute.xlu0 %1565
        %1567 = vset.pattern.permute.xlu0 0
        %1568 = vperm.xlu0 %1567, %v1547
        %v1569 = vpop.permute.xlu0 %1568
        %1570 = vset.pattern.permute.xlu0 0
        %1571 = vperm.xlu0 %1570, %v1548
        %v1572 = vpop.permute.xlu0 %1571
        %1573 = vset.pattern.permute.xlu0 0
        %1574 = vperm.xlu0 %1573, %v1549
        %v1575 = vpop.permute.xlu0 %1574
        %1576 = vset.pattern.permute.xlu0 0
        %1577 = vperm.xlu0 %1576, %v1550
        %v1578 = vpop.permute.xlu0 %1577
        %1579 = vset.pattern.permute.xlu0 0
        %1580 = vperm.xlu0 %1579, %v1551
        %v1581 = vpop.permute.xlu0 %1580
        %1582 = vset.pattern.permute.xlu0 0
        %1583 = vperm.xlu0 %1582, %v1552
        %v1584 = vpop.permute.xlu0 %1583
        %vm1585 = vcmp.eq.s32.totalorder %v1198, %v1563
        %vm1586 = vcmp.eq.s32.totalorder %v1198, %v1566
        %vm1587 = vcmp.eq.s32.totalorder %v1198, %v1569
        %vm1588 = vcmp.eq.s32.totalorder %v1198, %v1572
        %vm1589 = vcmp.eq.s32.totalorder %v1198, %v1575
        %vm1590 = vcmp.eq.s32.totalorder %v1198, %v1578
        %vm1591 = vcmp.eq.s32.totalorder %v1198, %v1581
        %vm1592 = vcmp.eq.s32.totalorder %v1198, %v1584
        %v1593 = vsel %vm1585, 1, 0
        %v1594 = vsel %vm1586, 1, 0
        %v1595 = vsel %vm1587, 1, 0
        %v1596 = vsel %vm1588, 1, 0
        %v1597 = vsel %vm1589, 1, 0
        %v1598 = vsel %vm1590, 1, 0
        %v1599 = vsel %vm1591, 1, 0
        %v1600 = vsel %vm1592, 1, 0
        %v1601 = vcvt.s32.f32 %v1593
        %v1602 = vcvt.s32.f32 %v1594
        %v1603 = vcvt.s32.f32 %v1595
        %v1604 = vcvt.s32.f32 %v1596
        %v1605 = vcvt.s32.f32 %v1597
        %v1606 = vcvt.s32.f32 %v1598
        %v1607 = vcvt.s32.f32 %v1599
        %v1608 = vcvt.s32.f32 %v1600
        %v1609 = vpack.c.bf16 %v1602, %v1601
        %v1610 = vpack.c.bf16 %v1604, %v1603
        %v1611 = vpack.c.bf16 %v1606, %v1605
        %v1612 = vpack.c.bf16 %v1608, %v1607
        %v1614 = vsel %vm1199, %v1609, 0
        %v1617 = vsel %vm1199, %v1610, 0
        %v1620 = vsel %vm1199, %v1611, 0
        %v1623 = vsel %vm1199, %v1612, 0
        %1625 = vmatprep.subr.bf16.mxu0 0
        %1626 = vmatpush1.bf16.msra.mxu0 %v1184
        %1627 = vmatprep.subr.bf16.mxu0 0
        %1628 = vmatpush1.bf16.msra.mxu0 %v1185
        %1629 = vmatprep.subr.bf16.mxu0 0
        %1630 = vmatpush1.bf16.msra.mxu0 %v1186
        %1631 = vmatprep.subr.bf16.mxu0 0
        %1632 = vmatpush1.bf16.msra.mxu0 %v1187
        %1633 = vmatprep.subr.bf16.mxu0 0
        %1634 = vmatpush1.bf16.msra.mxu0 0
        %1635 = vmatprep.subr.bf16.mxu0 0
        %1636 = vmatpush1.bf16.msra.mxu0 0
        %1637 = vmatprep.subr.bf16.mxu0 0
        %1638 = vmatpush1.bf16.msra.mxu0 0
        %1639 = vmatprep.subr.bf16.mxu0 0
        %1640 = vmatpush1.bf16.msra.mxu0 0
        %1641 = vmatprep.subr.bf16.mxu0 0
        %1642 = vmatpush1.bf16.msra.mxu0 0
        %1643 = vmatprep.subr.bf16.mxu0 0
        %1644 = vmatpush1.bf16.msra.mxu0 0
        %1645 = vmatprep.subr.bf16.mxu0 0
        %1646 = vmatpush1.bf16.msra.mxu0 0
        %1647 = vmatprep.subr.bf16.mxu0 0
        %1648 = vmatpush1.bf16.msra.mxu0 0
        %1649 = vmatprep.subr.bf16.mxu0 0
        %1650 = vmatpush1.bf16.msra.mxu0 0
        %1651 = vmatprep.subr.bf16.mxu0 0
        %1652 = vmatpush1.bf16.msra.mxu0 0
        %1653 = vmatprep.subr.bf16.mxu0 0
        %1654 = vmatpush1.bf16.msra.mxu0 0
        %1655 = vmatprep.subr.bf16.mxu0 0
        %1656 = vmatpush1.bf16.msra.mxu0 0
        %1657 = vmatprep.mubr.bf16.mxu0 0
        %1658 = vmatmul.mubr.bf16.gmra.mrb[0].mxu0 %v1614
        %v1659 = vpop.f32.mrb[0].mxu0
        %v1660 = vadd.f32 0.0, %v1659
        %v1661 = vpop.f32.mrb[0].mxu0
        %v1662 = vpop.f32.mrb[0].mxu0
        %v1663 = vadd.f32 0.0, %v1662
        %v1664 = vpop.f32.mrb[0].mxu0
        %1665 = vmatprep.mubr.bf16.mxu0 0
        %1666 = vmatmul.mubr.bf16.gmra.mrb[0].mxu0 %v1617
        %v1667 = vpop.f32.mrb[0].mxu0
        %v1668 = vadd.f32 0.0, %v1667
        %v1669 = vpop.f32.mrb[0].mxu0
        %v1670 = vpop.f32.mrb[0].mxu0
        %v1671 = vadd.f32 0.0, %v1670
        %v1672 = vpop.f32.mrb[0].mxu0
        %1673 = vmatprep.mubr.bf16.mxu0 0
        %1674 = vmatmul.mubr.bf16.gmra.mrb[0].mxu0 %v1620
        %v1675 = vpop.f32.mrb[0].mxu0
        %v1676 = vadd.f32 0.0, %v1675
        %v1677 = vpop.f32.mrb[0].mxu0
        %v1678 = vpop.f32.mrb[0].mxu0
        %v1679 = vadd.f32 0.0, %v1678
        %v1680 = vpop.f32.mrb[0].mxu0
        %1681 = vmatprep.mubr.bf16.mxu0 0
        %1682 = vmatmul.mubr.bf16.gmra.mrb[0].mxu0 %v1623
        %v1683 = vpop.f32.mrb[0].mxu0
        %v1684 = vadd.f32 0.0, %v1683
        %v1685 = vpop.f32.mrb[0].mxu0
        %v1686 = vpop.f32.mrb[0].mxu0
        %v1687 = vadd.f32 0.0, %v1686
        %v1688 = vpop.f32.mrb[0].mxu0
        %1689 = vdwg.mxu0
        %v1690 = vmax.f32 %v1437, %v1660
        %v1691 = vmax.f32 %v1438, %v1663
        %v1692 = vmax.f32 %v1439, %v1668
        %v1693 = vmax.f32 %v1440, %v1671
        %v1694 = vmax.f32 %v1441, %v1676
        %v1695 = vmax.f32 %v1442, %v1679
        %v1696 = vmax.f32 %v1443, %v1684
        %v1697 = vmax.f32 %v1444, %v1687
        %v1698 = vsel %vm1521, inf, %v1445
        %v1699 = vsel %vm1522, inf, %v1446
        %v1700 = vsel %vm1523, inf, %v1447
        %v1701 = vsel %vm1524, inf, %v1448
        %v1702 = vsel %vm1525, inf, %v1449
        %v1703 = vsel %vm1526, inf, %v1450
        %v1704 = vsel %vm1527, inf, %v1451
        %v1705 = vsel %vm1528, inf, %v1452
        %v1706 = vsel %vm1199, %v1698, inf
        %v1707 = vsel %vm1199, %v1699, inf
        %v1708 = vsel %vm1199, %v1700, inf
        %v1709 = vsel %vm1199, %v1701, inf
        %v1710 = vsel %vm1199, %v1702, inf
        %v1711 = vmin.f32 %v1706, %v1710
        %v1712 = vsel %vm1199, %v1703, inf
        %v1713 = vmin.f32 %v1707, %v1712
        %v1714 = vsel %vm1199, %v1704, inf
        %v1715 = vmin.f32 %v1708, %v1714
        %v1716 = vsel %vm1199, %v1705, inf
        %v1717 = vmin.f32 %v1709, %v1716
        %v1718 = vmin.f32 %v1711, %v1713
        %v1719 = vmin.f32 %v1715, %v1717
        %v1720 = vmin.f32 %v1718, %v1719
        %v1721 = vrot.slane %v1720, 4
        %v1722 = vmin.f32 %v1720, %v1721
        %v1723 = vrot.slane %v1722, 2
        %v1724 = vmin.f32 %v1722, %v1723
        %v1725 = vrot.slane %v1724, 1
        %v1726 = vmin.f32 %v1724, %v1725
        %vm1727 = vcmp.le.f32.partialorder %v1698, %v1726
        %vm1728 = vcmp.le.f32.partialorder %v1699, %v1726
        %vm1729 = vcmp.le.f32.partialorder %v1700, %v1726
        %vm1730 = vcmp.le.f32.partialorder %v1701, %v1726
        %vm1731 = vcmp.le.f32.partialorder %v1702, %v1726
        %vm1732 = vcmp.le.f32.partialorder %v1703, %v1726
        %vm1733 = vcmp.le.f32.partialorder %v1704, %v1726
        %vm1734 = vcmp.le.f32.partialorder %v1705, %v1726
        %v1735 = vsel %vm1727, %v1189, 64
        %v1736 = vsel %vm1728, %v1190, 64
        %v1737 = vsel %vm1729, %v1191, 64
        %v1738 = vsel %vm1730, %v1192, 64
        %v1739 = vsel %vm1731, %v1193, 64
        %v1740 = vsel %vm1732, %v1194, 64
        %v1741 = vsel %vm1733, %v1195, 64
        %v1742 = vsel %vm1734, %v1196, 64
        %v1743 = vsel %vm1199, %v1735, 2147483647
        %v1744 = vsel %vm1199, %v1736, 2147483647
        %v1745 = vsel %vm1199, %v1737, 2147483647
        %v1746 = vsel %vm1199, %v1738, 2147483647
        %v1747 = vsel %vm1199, %v1739, 2147483647
        %vm1748 = vcmp.lt.s32.totalorder %v1743, %v1747
        %v1749 = vsel %vm1748, %v1743, %v1747
        %v1750 = vsel %vm1199, %v1740, 2147483647
        %vm1751 = vcmp.lt.s32.totalorder %v1744, %v1750
        %v1752 = vsel %vm1751, %v1744, %v1750
        %v1753 = vsel %vm1199, %v1741, 2147483647
        %vm1754 = vcmp.lt.s32.totalorder %v1745, %v1753
        %v1755 = vsel %vm1754, %v1745, %v1753
        %v1756 = vsel %vm1199, %v1742, 2147483647
        %vm1757 = vcmp.lt.s32.totalorder %v1746, %v1756
        %v1758 = vsel %vm1757, %v1746, %v1756
        %vm1759 = vcmp.lt.s32.totalorder %v1749, %v1752
        %v1760 = vsel %vm1759, %v1749, %v1752
        %vm1761 = vcmp.lt.s32.totalorder %v1755, %v1758
        %v1762 = vsel %vm1761, %v1755, %v1758
        %vm1763 = vcmp.lt.s32.totalorder %v1760, %v1762
        %v1764 = vsel %vm1763, %v1760, %v1762
        %v1765 = vrot.slane %v1764, 4
        %vm1766 = vcmp.lt.s32.totalorder %v1764, %v1765
        %v1767 = vsel %vm1766, %v1764, %v1765
        %v1768 = vrot.slane %v1767, 2
        %vm1769 = vcmp.lt.s32.totalorder %v1767, %v1768
        %v1770 = vsel %vm1769, %v1767, %v1768
        %v1771 = vrot.slane %v1770, 1
        %vm1772 = vcmp.lt.s32.totalorder %v1770, %v1771
        %v1773 = vsel %vm1772, %v1770, %v1771
        %vm1774 = vcmp.eq.s32.totalorder %v1189, %v1773
        %vm1775 = vcmp.eq.s32.totalorder %v1190, %v1773
        %vm1776 = vcmp.eq.s32.totalorder %v1191, %v1773
        %vm1777 = vcmp.eq.s32.totalorder %v1192, %v1773
        %vm1778 = vcmp.eq.s32.totalorder %v1193, %v1773
        %vm1779 = vcmp.eq.s32.totalorder %v1194, %v1773
        %vm1780 = vcmp.eq.s32.totalorder %v1195, %v1773
        %vm1781 = vcmp.eq.s32.totalorder %v1196, %v1773
        %1782 = vxpose.xlu0.b32.start [1/16] %v1773, 128
        %1783 = vxpose.xlu0.b32.cont [2/16] 0, 128
        %1784 = vxpose.xlu0.b32.cont [3/16] 0, 128
        %1785 = vxpose.xlu0.b32.cont [4/16] 0, 128
        %1786 = vxpose.xlu0.b32.cont [5/16] 0, 128
        %1787 = vxpose.xlu0.b32.cont [6/16] 0, 128
        %1788 = vxpose.xlu0.b32.cont [7/16] 0, 128
        %1789 = vxpose.xlu0.b32.cont [8/16] 0, 128
        %1790 = vxpose.xlu0.b32.cont [9/16] 0, 128
        %1791 = vxpose.xlu0.b32.cont [10/16] 0, 128
        %1792 = vxpose.xlu0.b32.cont [11/16] 0, 128
        %1793 = vxpose.xlu0.b32.cont [12/16] 0, 128
        %1794 = vxpose.xlu0.b32.cont [13/16] 0, 128
        %1795 = vxpose.xlu0.b32.cont [14/16] 0, 128
        %1796 = vxpose.xlu0.b32.cont [15/16] 0, 128
        %1797 = vxpose.xlu0.b32.end [16/16] 0, 128
        %v1798 = vpop.trf.xlu0
        %v1799 = vpop.trf.xlu0
        %v1800 = vpop.trf.xlu0
        %v1801 = vpop.trf.xlu0
        %v1802 = vpop.trf.xlu0
        %v1803 = vpop.trf.xlu0
        %v1804 = vpop.trf.xlu0
        %v1805 = vpop.trf.xlu0
        %v1806 = vpop.trf.xlu0
        %v1807 = vpop.trf.xlu0
        %v1808 = vpop.trf.xlu0
        %v1809 = vpop.trf.xlu0
        %v1810 = vpop.trf.xlu0
        %v1811 = vpop.trf.xlu0
        %v1812 = vpop.trf.xlu0
        %v1813 = vpop.trf.xlu0
        %1814 = vset.pattern.permute.xlu0 0
        %1815 = vperm.xlu0 %1814, %v1798
        %v1816 = vpop.permute.xlu0 %1815
        %1817 = vset.pattern.permute.xlu0 0
        %1818 = vperm.xlu0 %1817, %v1799
        %v1819 = vpop.permute.xlu0 %1818
        %1820 = vset.pattern.permute.xlu0 0
        %1821 = vperm.xlu0 %1820, %v1800
        %v1822 = vpop.permute.xlu0 %1821
        %1823 = vset.pattern.permute.xlu0 0
        %1824 = vperm.xlu0 %1823, %v1801
        %v1825 = vpop.permute.xlu0 %1824
        %1826 = vset.pattern.permute.xlu0 0
        %1827 = vperm.xlu0 %1826, %v1802
        %v1828 = vpop.permute.xlu0 %1827
        %1829 = vset.pattern.permute.xlu0 0
        %1830 = vperm.xlu0 %1829, %v1803
        %v1831 = vpop.permute.xlu0 %1830
        %1832 = vset.pattern.permute.xlu0 0
        %1833 = vperm.xlu0 %1832, %v1804
        %v1834 = vpop.permute.xlu0 %1833
        %1835 = vset.pattern.permute.xlu0 0
        %1836 = vperm.xlu0 %1835, %v1805
        %v1837 = vpop.permute.xlu0 %1836
        %vm1838 = vcmp.eq.s32.totalorder %v1198, %v1816
        %vm1839 = vcmp.eq.s32.totalorder %v1198, %v1819
        %vm1840 = vcmp.eq.s32.totalorder %v1198, %v1822
        %vm1841 = vcmp.eq.s32.totalorder %v1198, %v1825
        %vm1842 = vcmp.eq.s32.totalorder %v1198, %v1828
        %vm1843 = vcmp.eq.s32.totalorder %v1198, %v1831
        %vm1844 = vcmp.eq.s32.totalorder %v1198, %v1834
        %vm1845 = vcmp.eq.s32.totalorder %v1198, %v1837
        %v1846 = vsel %vm1838, 1, 0
        %v1847 = vsel %vm1839, 1, 0
        %v1848 = vsel %vm1840, 1, 0
        %v1849 = vsel %vm1841, 1, 0
        %v1850 = vsel %vm1842, 1, 0
        %v1851 = vsel %vm1843, 1, 0
        %v1852 = vsel %vm1844, 1, 0
        %v1853 = vsel %vm1845, 1, 0
        %v1854 = vcvt.s32.f32 %v1846
        %v1855 = vcvt.s32.f32 %v1847
        %v1856 = vcvt.s32.f32 %v1848
        %v1857 = vcvt.s32.f32 %v1849
        %v1858 = vcvt.s32.f32 %v1850
        %v1859 = vcvt.s32.f32 %v1851
        %v1860 = vcvt.s32.f32 %v1852
        %v1861 = vcvt.s32.f32 %v1853
        %v1862 = vpack.c.bf16 %v1855, %v1854
        %v1863 = vpack.c.bf16 %v1857, %v1856
        %v1864 = vpack.c.bf16 %v1859, %v1858
        %v1865 = vpack.c.bf16 %v1861, %v1860
        %v1867 = vsel %vm1199, %v1862, 0
        %v1870 = vsel %vm1199, %v1863, 0
        %v1873 = vsel %vm1199, %v1864, 0
        %v1876 = vsel %vm1199, %v1865, 0
        %1878 = vmatprep.subr.bf16.mxu0 0
        %1879 = vmatpush1.bf16.msra.mxu0 %v1184
        %1880 = vmatprep.subr.bf16.mxu0 0
        %1881 = vmatpush1.bf16.msra.mxu0 %v1185
        %1882 = vmatprep.subr.bf16.mxu0 0
        %1883 = vmatpush1.bf16.msra.mxu0 %v1186
        %1884 = vmatprep.subr.bf16.mxu0 0
        %1885 = vmatpush1.bf16.msra.mxu0 %v1187
        %1886 = vmatprep.subr.bf16.mxu0 0
        %1887 = vmatpush1.bf16.msra.mxu0 0
        %1888 = vmatprep.subr.bf16.mxu0 0
        %1889 = vmatpush1.bf16.msra.mxu0 0
        %1890 = vmatprep.subr.bf16.mxu0 0
        %1891 = vmatpush1.bf16.msra.mxu0 0
        %1892 = vmatprep.subr.bf16.mxu0 0
        %1893 = vmatpush1.bf16.msra.mxu0 0
        %1894 = vmatprep.subr.bf16.mxu0 0
        %1895 = vmatpush1.bf16.msra.mxu0 0
        %1896 = vmatprep.subr.bf16.mxu0 0
        %1897 = vmatpush1.bf16.msra.mxu0 0
        %1898 = vmatprep.subr.bf16.mxu0 0
        %1899 = vmatpush1.bf16.msra.mxu0 0
        %1900 = vmatprep.subr.bf16.mxu0 0
        %1901 = vmatpush1.bf16.msra.mxu0 0
        %1902 = vmatprep.subr.bf16.mxu0 0
        %1903 = vmatpush1.bf16.msra.mxu0 0
        %1904 = vmatprep.subr.bf16.mxu0 0
        %1905 = vmatpush1.bf16.msra.mxu0 0
        %1906 = vmatprep.subr.bf16.mxu0 0
        %1907 = vmatpush1.bf16.msra.mxu0 0
        %1908 = vmatprep.subr.bf16.mxu0 0
        %1909 = vmatpush1.bf16.msra.mxu0 0
        %1910 = vmatprep.mubr.bf16.mxu0 0
        %1911 = vmatmul.mubr.bf16.gmra.mrb[0].mxu0 %v1867
        %v1912 = vpop.f32.mrb[0].mxu0
        %v1913 = vadd.f32 0.0, %v1912
        %v1914 = vpop.f32.mrb[0].mxu0
        %v1915 = vpop.f32.mrb[0].mxu0
        %v1916 = vadd.f32 0.0, %v1915
        %v1917 = vpop.f32.mrb[0].mxu0
        %1918 = vmatprep.mubr.bf16.mxu0 0
        %1919 = vmatmul.mubr.bf16.gmra.mrb[0].mxu0 %v1870
        %v1920 = vpop.f32.mrb[0].mxu0
        %v1921 = vadd.f32 0.0, %v1920
        %v1922 = vpop.f32.mrb[0].mxu0
        %v1923 = vpop.f32.mrb[0].mxu0
        %v1924 = vadd.f32 0.0, %v1923
        %v1925 = vpop.f32.mrb[0].mxu0
        %1926 = vmatprep.mubr.bf16.mxu0 0
        %1927 = vmatmul.mubr.bf16.gmra.mrb[0].mxu0 %v1873
        %v1928 = vpop.f32.mrb[0].mxu0
        %v1929 = vadd.f32 0.0, %v1928
        %v1930 = vpop.f32.mrb[0].mxu0
        %v1931 = vpop.f32.mrb[0].mxu0
        %v1932 = vadd.f32 0.0, %v1931
        %v1933 = vpop.f32.mrb[0].mxu0
        %1934 = vmatprep.mubr.bf16.mxu0 0
        %1935 = vmatmul.mubr.bf16.gmra.mrb[0].mxu0 %v1876
        %v1936 = vpop.f32.mrb[0].mxu0
        %v1937 = vadd.f32 0.0, %v1936
        %v1938 = vpop.f32.mrb[0].mxu0
        %v1939 = vpop.f32.mrb[0].mxu0
        %v1940 = vadd.f32 0.0, %v1939
        %v1941 = vpop.f32.mrb[0].mxu0
        %1942 = vdwg.mxu0
        %v1943 = vmax.f32 %v1690, %v1913
        %v1944 = vmax.f32 %v1691, %v1916
        %v1945 = vmax.f32 %v1692, %v1921
        %v1946 = vmax.f32 %v1693, %v1924
        %v1947 = vmax.f32 %v1694, %v1929
        %v1948 = vmax.f32 %v1695, %v1932
        %v1949 = vmax.f32 %v1696, %v1937
        %v1950 = vmax.f32 %v1697, %v1940
        %v1951 = vsel %vm1774, inf, %v1698
        %v1952 = vsel %vm1775, inf, %v1699
        %v1953 = vsel %vm1776, inf, %v1700
        %v1954 = vsel %vm1777, inf, %v1701
        %v1955 = vsel %vm1778, inf, %v1702
        %v1956 = vsel %vm1779, inf, %v1703
        %v1957 = vsel %vm1780, inf, %v1704
        %v1958 = vsel %vm1781, inf, %v1705
        %v1959 = vsel %vm1199, %v1951, inf
        %v1960 = vsel %vm1199, %v1952, inf
        %v1961 = vsel %vm1199, %v1953, inf
        %v1962 = vsel %vm1199, %v1954, inf
        %v1963 = vsel %vm1199, %v1955, inf
        %v1964 = vmin.f32 %v1959, %v1963
        %v1965 = vsel %vm1199, %v1956, inf
        %v1966 = vmin.f32 %v1960, %v1965
        %v1967 = vsel %vm1199, %v1957, inf
        %v1968 = vmin.f32 %v1961, %v1967
        %v1969 = vsel %vm1199, %v1958, inf
        %v1970 = vmin.f32 %v1962, %v1969
        %v1971 = vmin.f32 %v1964, %v1966
        %v1972 = vmin.f32 %v1968, %v1970
        %v1973 = vmin.f32 %v1971, %v1972
        %v1974 = vrot.slane %v1973, 4
        %v1975 = vmin.f32 %v1973, %v1974
        %v1976 = vrot.slane %v1975, 2
        %v1977 = vmin.f32 %v1975, %v1976
        %v1978 = vrot.slane %v1977, 1
        %v1979 = vmin.f32 %v1977, %v1978
        %vm1980 = vcmp.le.f32.partialorder %v1951, %v1979
        %vm1981 = vcmp.le.f32.partialorder %v1952, %v1979
        %vm1982 = vcmp.le.f32.partialorder %v1953, %v1979
        %vm1983 = vcmp.le.f32.partialorder %v1954, %v1979
        %vm1984 = vcmp.le.f32.partialorder %v1955, %v1979
        %vm1985 = vcmp.le.f32.partialorder %v1956, %v1979
        %vm1986 = vcmp.le.f32.partialorder %v1957, %v1979
        %vm1987 = vcmp.le.f32.partialorder %v1958, %v1979
        %v1988 = vsel %vm1980, %v1189, 64
        %v1989 = vsel %vm1981, %v1190, 64
        %v1990 = vsel %vm1982, %v1191, 64
        %v1991 = vsel %vm1983, %v1192, 64
        %v1992 = vsel %vm1984, %v1193, 64
        %v1993 = vsel %vm1985, %v1194, 64
        %v1994 = vsel %vm1986, %v1195, 64
        %v1995 = vsel %vm1987, %v1196, 64
        %v1996 = vsel %vm1199, %v1988, 2147483647
        %v1997 = vsel %vm1199, %v1989, 2147483647
        %v1998 = vsel %vm1199, %v1990, 2147483647
        %v1999 = vsel %vm1199, %v1991, 2147483647
        %v2000 = vsel %vm1199, %v1992, 2147483647
        %vm2001 = vcmp.lt.s32.totalorder %v1996, %v2000
        %v2002 = vsel %vm2001, %v1996, %v2000
        %v2003 = vsel %vm1199, %v1993, 2147483647
        %vm2004 = vcmp.lt.s32.totalorder %v1997, %v2003
        %v2005 = vsel %vm2004, %v1997, %v2003
        %v2006 = vsel %vm1199, %v1994, 2147483647
        %vm2007 = vcmp.lt.s32.totalorder %v1998, %v2006
        %v2008 = vsel %vm2007, %v1998, %v2006
        %v2009 = vsel %vm1199, %v1995, 2147483647
        %vm2010 = vcmp.lt.s32.totalorder %v1999, %v2009
        %v2011 = vsel %vm2010, %v1999, %v2009
        %vm2012 = vcmp.lt.s32.totalorder %v2002, %v2005
        %v2013 = vsel %vm2012, %v2002, %v2005
        %vm2014 = vcmp.lt.s32.totalorder %v2008, %v2011
        %v2015 = vsel %vm2014, %v2008, %v2011
        %vm2016 = vcmp.lt.s32.totalorder %v2013, %v2015
        %v2017 = vsel %vm2016, %v2013, %v2015
        %v2018 = vrot.slane %v2017, 4
        %vm2019 = vcmp.lt.s32.totalorder %v2017, %v2018
        %v2020 = vsel %vm2019, %v2017, %v2018
        %v2021 = vrot.slane %v2020, 2
        %vm2022 = vcmp.lt.s32.totalorder %v2020, %v2021
        %v2023 = vsel %vm2022, %v2020, %v2021
        %v2024 = vrot.slane %v2023, 1
        %vm2025 = vcmp.lt.s32.totalorder %v2023, %v2024
        %v2026 = vsel %vm2025, %v2023, %v2024
        %vm2027 = vcmp.eq.s32.totalorder %v1189, %v2026
        %vm2028 = vcmp.eq.s32.totalorder %v1190, %v2026
        %vm2029 = vcmp.eq.s32.totalorder %v1191, %v2026
        %vm2030 = vcmp.eq.s32.totalorder %v1192, %v2026
        %vm2031 = vcmp.eq.s32.totalorder %v1193, %v2026
        %vm2032 = vcmp.eq.s32.totalorder %v1194, %v2026
        %vm2033 = vcmp.eq.s32.totalorder %v1195, %v2026
        %vm2034 = vcmp.eq.s32.totalorder %v1196, %v2026
        %2035 = vxpose.xlu0.b32.start [1/16] %v2026, 128
        %2036 = vxpose.xlu0.b32.cont [2/16] 0, 128
        %2037 = vxpose.xlu0.b32.cont [3/16] 0, 128
        %2038 = vxpose.xlu0.b32.cont [4/16] 0, 128
        %2039 = vxpose.xlu0.b32.cont [5/16] 0, 128
        %2040 = vxpose.xlu0.b32.cont [6/16] 0, 128
        %2041 = vxpose.xlu0.b32.cont [7/16] 0, 128
        %2042 = vxpose.xlu0.b32.cont [8/16] 0, 128
        %2043 = vxpose.xlu0.b32.cont [9/16] 0, 128
        %2044 = vxpose.xlu0.b32.cont [10/16] 0, 128
        %2045 = vxpose.xlu0.b32.cont [11/16] 0, 128
        %2046 = vxpose.xlu0.b32.cont [12/16] 0, 128
        %2047 = vxpose.xlu0.b32.cont [13/16] 0, 128
        %2048 = vxpose.xlu0.b32.cont [14/16] 0, 128
        %2049 = vxpose.xlu0.b32.cont [15/16] 0, 128
        %2050 = vxpose.xlu0.b32.end [16/16] 0, 128
        %v2051 = vpop.trf.xlu0
        %v2052 = vpop.trf.xlu0
        %v2053 = vpop.trf.xlu0
        %v2054 = vpop.trf.xlu0
        %v2055 = vpop.trf.xlu0
        %v2056 = vpop.trf.xlu0
        %v2057 = vpop.trf.xlu0
        %v2058 = vpop.trf.xlu0
        %v2059 = vpop.trf.xlu0
        %v2060 = vpop.trf.xlu0
        %v2061 = vpop.trf.xlu0
        %v2062 = vpop.trf.xlu0
        %v2063 = vpop.trf.xlu0
        %v2064 = vpop.trf.xlu0
        %v2065 = vpop.trf.xlu0
        %v2066 = vpop.trf.xlu0
        %2067 = vset.pattern.permute.xlu0 0
        %2068 = vperm.xlu0 %2067, %v2051
        %v2069 = vpop.permute.xlu0 %2068
        %2070 = vset.pattern.permute.xlu0 0
        %2071 = vperm.xlu0 %2070, %v2052
        %v2072 = vpop.permute.xlu0 %2071
        %2073 = vset.pattern.permute.xlu0 0
        %2074 = vperm.xlu0 %2073, %v2053
        %v2075 = vpop.permute.xlu0 %2074
        %2076 = vset.pattern.permute.xlu0 0
        %2077 = vperm.xlu0 %2076, %v2054
        %v2078 = vpop.permute.xlu0 %2077
        %2079 = vset.pattern.permute.xlu0 0
        %2080 = vperm.xlu0 %2079, %v2055
        %v2081 = vpop.permute.xlu0 %2080
        %2082 = vset.pattern.permute.xlu0 0
        %2083 = vperm.xlu0 %2082, %v2056
        %v2084 = vpop.permute.xlu0 %2083
        %2085 = vset.pattern.permute.xlu0 0
        %2086 = vperm.xlu0 %2085, %v2057
        %v2087 = vpop.permute.xlu0 %2086
        %2088 = vset.pattern.permute.xlu0 0
        %2089 = vperm.xlu0 %2088, %v2058
        %v2090 = vpop.permute.xlu0 %2089
        %vm2091 = vcmp.eq.s32.totalorder %v1198, %v2069
        %vm2092 = vcmp.eq.s32.totalorder %v1198, %v2072
        %vm2093 = vcmp.eq.s32.totalorder %v1198, %v2075
        %vm2094 = vcmp.eq.s32.totalorder %v1198, %v2078
        %vm2095 = vcmp.eq.s32.totalorder %v1198, %v2081
        %vm2096 = vcmp.eq.s32.totalorder %v1198, %v2084
        %vm2097 = vcmp.eq.s32.totalorder %v1198, %v2087
        %vm2098 = vcmp.eq.s32.totalorder %v1198, %v2090
        %v2099 = vsel %vm2091, 1, 0
        %v2100 = vsel %vm2092, 1, 0
        %v2101 = vsel %vm2093, 1, 0
        %v2102 = vsel %vm2094, 1, 0
        %v2103 = vsel %vm2095, 1, 0
        %v2104 = vsel %vm2096, 1, 0
        %v2105 = vsel %vm2097, 1, 0
        %v2106 = vsel %vm2098, 1, 0
        %v2107 = vcvt.s32.f32 %v2099
        %v2108 = vcvt.s32.f32 %v2100
        %v2109 = vcvt.s32.f32 %v2101
        %v2110 = vcvt.s32.f32 %v2102
        %v2111 = vcvt.s32.f32 %v2103
        %v2112 = vcvt.s32.f32 %v2104
        %v2113 = vcvt.s32.f32 %v2105
        %v2114 = vcvt.s32.f32 %v2106
        %v2115 = vpack.c.bf16 %v2108, %v2107
        %v2116 = vpack.c.bf16 %v2110, %v2109
        %v2117 = vpack.c.bf16 %v2112, %v2111
        %v2118 = vpack.c.bf16 %v2114, %v2113
        %v2120 = vsel %vm1199, %v2115, 0
        %v2123 = vsel %vm1199, %v2116, 0
        %v2126 = vsel %vm1199, %v2117, 0
        %v2129 = vsel %vm1199, %v2118, 0
        %2131 = vmatprep.subr.bf16.mxu0 0
        %2132 = vmatpush1.bf16.msra.mxu0 %v1184
        %2133 = vmatprep.subr.bf16.mxu0 0
        %2134 = vmatpush1.bf16.msra.mxu0 %v1185
        %2135 = vmatprep.subr.bf16.mxu0 0
        %2136 = vmatpush1.bf16.msra.mxu0 %v1186
        %2137 = vmatprep.subr.bf16.mxu0 0
        %2138 = vmatpush1.bf16.msra.mxu0 %v1187
        %2139 = vmatprep.subr.bf16.mxu0 0
        %2140 = vmatpush1.bf16.msra.mxu0 0
        %2141 = vmatprep.subr.bf16.mxu0 0
        %2142 = vmatpush1.bf16.msra.mxu0 0
        %2143 = vmatprep.subr.bf16.mxu0 0
        %2144 = vmatpush1.bf16.msra.mxu0 0
        %2145 = vmatprep.subr.bf16.mxu0 0
        %2146 = vmatpush1.bf16.msra.mxu0 0
        %2147 = vmatprep.subr.bf16.mxu0 0
        %2148 = vmatpush1.bf16.msra.mxu0 0
        %2149 = vmatprep.subr.bf16.mxu0 0
        %2150 = vmatpush1.bf16.msra.mxu0 0
        %2151 = vmatprep.subr.bf16.mxu0 0
        %2152 = vmatpush1.bf16.msra.mxu0 0
        %2153 = vmatprep.subr.bf16.mxu0 0
        %2154 = vmatpush1.bf16.msra.mxu0 0
        %2155 = vmatprep.subr.bf16.mxu0 0
        %2156 = vmatpush1.bf16.msra.mxu0 0
        %2157 = vmatprep.subr.bf16.mxu0 0
        %2158 = vmatpush1.bf16.msra.mxu0 0
        %2159 = vmatprep.subr.bf16.mxu0 0
        %2160 = vmatpush1.bf16.msra.mxu0 0
        %2161 = vmatprep.subr.bf16.mxu0 0
        %2162 = vmatpush1.bf16.msra.mxu0 0
        %2163 = vmatprep.mubr.bf16.mxu0 0
        %2164 = vmatmul.mubr.bf16.gmra.mrb[0].mxu0 %v2120
        %v2165 = vpop.f32.mrb[0].mxu0
        %v2166 = vadd.f32 0.0, %v2165
        %v2167 = vpop.f32.mrb[0].mxu0
        %v2168 = vpop.f32.mrb[0].mxu0
        %v2169 = vadd.f32 0.0, %v2168
        %v2170 = vpop.f32.mrb[0].mxu0
        %2171 = vmatprep.mubr.bf16.mxu0 0
        %2172 = vmatmul.mubr.bf16.gmra.mrb[0].mxu0 %v2123
        %v2173 = vpop.f32.mrb[0].mxu0
        %v2174 = vadd.f32 0.0, %v2173
        %v2175 = vpop.f32.mrb[0].mxu0
        %v2176 = vpop.f32.mrb[0].mxu0
        %v2177 = vadd.f32 0.0, %v2176
        %v2178 = vpop.f32.mrb[0].mxu0
        %2179 = vmatprep.mubr.bf16.mxu0 0
        %2180 = vmatmul.mubr.bf16.gmra.mrb[0].mxu0 %v2126
        %v2181 = vpop.f32.mrb[0].mxu0
        %v2182 = vadd.f32 0.0, %v2181
        %v2183 = vpop.f32.mrb[0].mxu0
        %v2184 = vpop.f32.mrb[0].mxu0
        %v2185 = vadd.f32 0.0, %v2184
        %v2186 = vpop.f32.mrb[0].mxu0
        %2187 = vmatprep.mubr.bf16.mxu0 0
        %2188 = vmatmul.mubr.bf16.gmra.mrb[0].mxu0 %v2129
        %v2189 = vpop.f32.mrb[0].mxu0
        %v2190 = vadd.f32 0.0, %v2189
        %v2191 = vpop.f32.mrb[0].mxu0
        %v2192 = vpop.f32.mrb[0].mxu0
        %v2193 = vadd.f32 0.0, %v2192
        %v2194 = vpop.f32.mrb[0].mxu0
        %2195 = vdwg.mxu0
        %v2196 = vmax.f32 %v1943, %v2166
        %v2197 = vmax.f32 %v1944, %v2169
        %v2198 = vmax.f32 %v1945, %v2174
        %v2199 = vmax.f32 %v1946, %v2177
        %v2200 = vmax.f32 %v1947, %v2182
        %v2201 = vmax.f32 %v1948, %v2185
        %v2202 = vmax.f32 %v1949, %v2190
        %v2203 = vmax.f32 %v1950, %v2193
        %v2204 = vsel %vm2027, inf, %v1951
        %v2205 = vsel %vm2028, inf, %v1952
        %v2206 = vsel %vm2029, inf, %v1953
        %v2207 = vsel %vm2030, inf, %v1954
        %v2208 = vsel %vm2031, inf, %v1955
        %v2209 = vsel %vm2032, inf, %v1956
        %v2210 = vsel %vm2033, inf, %v1957
        %v2211 = vsel %vm2034, inf, %v1958
        %v2212 = vsel %vm1199, %v2204, inf
        %v2213 = vsel %vm1199, %v2205, inf
        %v2214 = vsel %vm1199, %v2206, inf
        %v2215 = vsel %vm1199, %v2207, inf
        %v2216 = vsel %vm1199, %v2208, inf
        %v2217 = vmin.f32 %v2212, %v2216
        %v2218 = vsel %vm1199, %v2209, inf
        %v2219 = vmin.f32 %v2213, %v2218
        %v2220 = vsel %vm1199, %v2210, inf
        %v2221 = vmin.f32 %v2214, %v2220
        %v2222 = vsel %vm1199, %v2211, inf
        %v2223 = vmin.f32 %v2215, %v2222
        %v2224 = vmin.f32 %v2217, %v2219
        %v2225 = vmin.f32 %v2221, %v2223
        %v2226 = vmin.f32 %v2224, %v2225
        %v2227 = vrot.slane %v2226, 4
        %v2228 = vmin.f32 %v2226, %v2227
        %v2229 = vrot.slane %v2228, 2
        %v2230 = vmin.f32 %v2228, %v2229
        %v2231 = vrot.slane %v2230, 1
        %v2232 = vmin.f32 %v2230, %v2231
        %vm2233 = vcmp.le.f32.partialorder %v2204, %v2232
        %vm2234 = vcmp.le.f32.partialorder %v2205, %v2232
        %vm2235 = vcmp.le.f32.partialorder %v2206, %v2232
        %vm2236 = vcmp.le.f32.partialorder %v2207, %v2232
        %vm2237 = vcmp.le.f32.partialorder %v2208, %v2232
        %vm2238 = vcmp.le.f32.partialorder %v2209, %v2232
        %vm2239 = vcmp.le.f32.partialorder %v2210, %v2232
        %vm2240 = vcmp.le.f32.partialorder %v2211, %v2232
        %v2241 = vsel %vm2233, %v1189, 64
        %v2242 = vsel %vm2234, %v1190, 64
        %v2243 = vsel %vm2235, %v1191, 64
        %v2244 = vsel %vm2236, %v1192, 64
        %v2245 = vsel %vm2237, %v1193, 64
        %v2246 = vsel %vm2238, %v1194, 64
        %v2247 = vsel %vm2239, %v1195, 64
        %v2248 = vsel %vm2240, %v1196, 64
        %v2249 = vsel %vm1199, %v2241, 2147483647
        %v2250 = vsel %vm1199, %v2242, 2147483647
        %v2251 = vsel %vm1199, %v2243, 2147483647
        %v2252 = vsel %vm1199, %v2244, 2147483647
        %v2253 = vsel %vm1199, %v2245, 2147483647
        %vm2254 = vcmp.lt.s32.totalorder %v2249, %v2253
        %v2255 = vsel %vm2254, %v2249, %v2253
        %v2256 = vsel %vm1199, %v2246, 2147483647
        %vm2257 = vcmp.lt.s32.totalorder %v2250, %v2256
        %v2258 = vsel %vm2257, %v2250, %v2256
        %v2259 = vsel %vm1199, %v2247, 2147483647
        %vm2260 = vcmp.lt.s32.totalorder %v2251, %v2259
        %v2261 = vsel %vm2260, %v2251, %v2259
        %v2262 = vsel %vm1199, %v2248, 2147483647
        %vm2263 = vcmp.lt.s32.totalorder %v2252, %v2262
        %v2264 = vsel %vm2263, %v2252, %v2262
        %vm2265 = vcmp.lt.s32.totalorder %v2255, %v2258
        %v2266 = vsel %vm2265, %v2255, %v2258
        %vm2267 = vcmp.lt.s32.totalorder %v2261, %v2264
        %v2268 = vsel %vm2267, %v2261, %v2264
        %vm2269 = vcmp.lt.s32.totalorder %v2266, %v2268
        %v2270 = vsel %vm2269, %v2266, %v2268
        %v2271 = vrot.slane %v2270, 4
        %vm2272 = vcmp.lt.s32.totalorder %v2270, %v2271
        %v2273 = vsel %vm2272, %v2270, %v2271
        %v2274 = vrot.slane %v2273, 2
        %vm2275 = vcmp.lt.s32.totalorder %v2273, %v2274
        %v2276 = vsel %vm2275, %v2273, %v2274
        %v2277 = vrot.slane %v2276, 1
        %vm2278 = vcmp.lt.s32.totalorder %v2276, %v2277
        %v2279 = vsel %vm2278, %v2276, %v2277
        %vm2280 = vcmp.eq.s32.totalorder %v1189, %v2279
        %vm2281 = vcmp.eq.s32.totalorder %v1190, %v2279
        %vm2282 = vcmp.eq.s32.totalorder %v1191, %v2279
        %vm2283 = vcmp.eq.s32.totalorder %v1192, %v2279
        %vm2284 = vcmp.eq.s32.totalorder %v1193, %v2279
        %vm2285 = vcmp.eq.s32.totalorder %v1194, %v2279
        %vm2286 = vcmp.eq.s32.totalorder %v1195, %v2279
        %vm2287 = vcmp.eq.s32.totalorder %v1196, %v2279
        %2288 = vxpose.xlu0.b32.start [1/16] %v2279, 128
        %2289 = vxpose.xlu0.b32.cont [2/16] 0, 128
        %2290 = vxpose.xlu0.b32.cont [3/16] 0, 128
        %2291 = vxpose.xlu0.b32.cont [4/16] 0, 128
        %2292 = vxpose.xlu0.b32.cont [5/16] 0, 128
        %2293 = vxpose.xlu0.b32.cont [6/16] 0, 128
        %2294 = vxpose.xlu0.b32.cont [7/16] 0, 128
        %2295 = vxpose.xlu0.b32.cont [8/16] 0, 128
        %2296 = vxpose.xlu0.b32.cont [9/16] 0, 128
        %2297 = vxpose.xlu0.b32.cont [10/16] 0, 128
        %2298 = vxpose.xlu0.b32.cont [11/16] 0, 128
        %2299 = vxpose.xlu0.b32.cont [12/16] 0, 128
        %2300 = vxpose.xlu0.b32.cont [13/16] 0, 128
        %2301 = vxpose.xlu0.b32.cont [14/16] 0, 128
        %2302 = vxpose.xlu0.b32.cont [15/16] 0, 128
        %2303 = vxpose.xlu0.b32.end [16/16] 0, 128
        %v2304 = vpop.trf.xlu0
        %v2305 = vpop.trf.xlu0
        %v2306 = vpop.trf.xlu0
        %v2307 = vpop.trf.xlu0
        %v2308 = vpop.trf.xlu0
        %v2309 = vpop.trf.xlu0
        %v2310 = vpop.trf.xlu0
        %v2311 = vpop.trf.xlu0
        %v2312 = vpop.trf.xlu0
        %v2313 = vpop.trf.xlu0
        %v2314 = vpop.trf.xlu0
        %v2315 = vpop.trf.xlu0
        %v2316 = vpop.trf.xlu0
        %v2317 = vpop.trf.xlu0
        %v2318 = vpop.trf.xlu0
        %v2319 = vpop.trf.xlu0
        %2320 = vset.pattern.permute.xlu0 0
        %2321 = vperm.xlu0 %2320, %v2304
        %v2322 = vpop.permute.xlu0 %2321
        %2323 = vset.pattern.permute.xlu0 0
        %2324 = vperm.xlu0 %2323, %v2305
        %v2325 = vpop.permute.xlu0 %2324
        %2326 = vset.pattern.permute.xlu0 0
        %2327 = vperm.xlu0 %2326, %v2306
        %v2328 = vpop.permute.xlu0 %2327
        %2329 = vset.pattern.permute.xlu0 0
        %2330 = vperm.xlu0 %2329, %v2307
        %v2331 = vpop.permute.xlu0 %2330
        %2332 = vset.pattern.permute.xlu0 0
        %2333 = vperm.xlu0 %2332, %v2308
        %v2334 = vpop.permute.xlu0 %2333
        %2335 = vset.pattern.permute.xlu0 0
        %2336 = vperm.xlu0 %2335, %v2309
        %v2337 = vpop.permute.xlu0 %2336
        %2338 = vset.pattern.permute.xlu0 0
        %2339 = vperm.xlu0 %2338, %v2310
        %v2340 = vpop.permute.xlu0 %2339
        %2341 = vset.pattern.permute.xlu0 0
        %2342 = vperm.xlu0 %2341, %v2311
        %v2343 = vpop.permute.xlu0 %2342
        %vm2344 = vcmp.eq.s32.totalorder %v1198, %v2322
        %vm2345 = vcmp.eq.s32.totalorder %v1198, %v2325
        %vm2346 = vcmp.eq.s32.totalorder %v1198, %v2328
        %vm2347 = vcmp.eq.s32.totalorder %v1198, %v2331
        %vm2348 = vcmp.eq.s32.totalorder %v1198, %v2334
        %vm2349 = vcmp.eq.s32.totalorder %v1198, %v2337
        %vm2350 = vcmp.eq.s32.totalorder %v1198, %v2340
        %vm2351 = vcmp.eq.s32.totalorder %v1198, %v2343
        %v2352 = vsel %vm2344, 1, 0
        %v2353 = vsel %vm2345, 1, 0
        %v2354 = vsel %vm2346, 1, 0
        %v2355 = vsel %vm2347, 1, 0
        %v2356 = vsel %vm2348, 1, 0
        %v2357 = vsel %vm2349, 1, 0
        %v2358 = vsel %vm2350, 1, 0
        %v2359 = vsel %vm2351, 1, 0
        %v2360 = vcvt.s32.f32 %v2352
        %v2361 = vcvt.s32.f32 %v2353
        %v2362 = vcvt.s32.f32 %v2354
        %v2363 = vcvt.s32.f32 %v2355
        %v2364 = vcvt.s32.f32 %v2356
        %v2365 = vcvt.s32.f32 %v2357
        %v2366 = vcvt.s32.f32 %v2358
        %v2367 = vcvt.s32.f32 %v2359
        %v2368 = vpack.c.bf16 %v2361, %v2360
        %v2369 = vpack.c.bf16 %v2363, %v2362
        %v2370 = vpack.c.bf16 %v2365, %v2364
        %v2371 = vpack.c.bf16 %v2367, %v2366
        %v2373 = vsel %vm1199, %v2368, 0
        %v2376 = vsel %vm1199, %v2369, 0
        %v2379 = vsel %vm1199, %v2370, 0
        %v2382 = vsel %vm1199, %v2371, 0
        %2384 = vmatprep.subr.bf16.mxu0 0
        %2385 = vmatpush1.bf16.msra.mxu0 %v1184
        %2386 = vmatprep.subr.bf16.mxu0 0
        %2387 = vmatpush1.bf16.msra.mxu0 %v1185
        %2388 = vmatprep.subr.bf16.mxu0 0
        %2389 = vmatpush1.bf16.msra.mxu0 %v1186
        %2390 = vmatprep.subr.bf16.mxu0 0
        %2391 = vmatpush1.bf16.msra.mxu0 %v1187
        %2392 = vmatprep.subr.bf16.mxu0 0
        %2393 = vmatpush1.bf16.msra.mxu0 0
        %2394 = vmatprep.subr.bf16.mxu0 0
        %2395 = vmatpush1.bf16.msra.mxu0 0
        %2396 = vmatprep.subr.bf16.mxu0 0
        %2397 = vmatpush1.bf16.msra.mxu0 0
        %2398 = vmatprep.subr.bf16.mxu0 0
        %2399 = vmatpush1.bf16.msra.mxu0 0
        %2400 = vmatprep.subr.bf16.mxu0 0
        %2401 = vmatpush1.bf16.msra.mxu0 0
        %2402 = vmatprep.subr.bf16.mxu0 0
        %2403 = vmatpush1.bf16.msra.mxu0 0
        %2404 = vmatprep.subr.bf16.mxu0 0
        %2405 = vmatpush1.bf16.msra.mxu0 0
        %2406 = vmatprep.subr.bf16.mxu0 0
        %2407 = vmatpush1.bf16.msra.mxu0 0
        %2408 = vmatprep.subr.bf16.mxu0 0
        %2409 = vmatpush1.bf16.msra.mxu0 0
        %2410 = vmatprep.subr.bf16.mxu0 0
        %2411 = vmatpush1.bf16.msra.mxu0 0
        %2412 = vmatprep.subr.bf16.mxu0 0
        %2413 = vmatpush1.bf16.msra.mxu0 0
        %2414 = vmatprep.subr.bf16.mxu0 0
        %2415 = vmatpush1.bf16.msra.mxu0 0
        %2416 = vmatprep.mubr.bf16.mxu0 0
        %2417 = vmatmul.mubr.bf16.gmra.mrb[0].mxu0 %v2373
        %v2418 = vpop.f32.mrb[0].mxu0
        %v2419 = vadd.f32 0.0, %v2418
        %v2420 = vpop.f32.mrb[0].mxu0
        %v2421 = vpop.f32.mrb[0].mxu0
        %v2422 = vadd.f32 0.0, %v2421
        %v2423 = vpop.f32.mrb[0].mxu0
        %2424 = vmatprep.mubr.bf16.mxu0 0
        %2425 = vmatmul.mubr.bf16.gmra.mrb[0].mxu0 %v2376
        %v2426 = vpop.f32.mrb[0].mxu0
        %v2427 = vadd.f32 0.0, %v2426
        %v2428 = vpop.f32.mrb[0].mxu0
        %v2429 = vpop.f32.mrb[0].mxu0
        %v2430 = vadd.f32 0.0, %v2429
        %v2431 = vpop.f32.mrb[0].mxu0
        %2432 = vmatprep.mubr.bf16.mxu0 0
        %2433 = vmatmul.mubr.bf16.gmra.mrb[0].mxu0 %v2379
        %v2434 = vpop.f32.mrb[0].mxu0
        %v2435 = vadd.f32 0.0, %v2434
        %v2436 = vpop.f32.mrb[0].mxu0
        %v2437 = vpop.f32.mrb[0].mxu0
        %v2438 = vadd.f32 0.0, %v2437
        %v2439 = vpop.f32.mrb[0].mxu0
        %2440 = vmatprep.mubr.bf16.mxu0 0
        %2441 = vmatmul.mubr.bf16.gmra.mrb[0].mxu0 %v2382
        %v2442 = vpop.f32.mrb[0].mxu0
        %v2443 = vadd.f32 0.0, %v2442
        %v2444 = vpop.f32.mrb[0].mxu0
        %v2445 = vpop.f32.mrb[0].mxu0
        %v2446 = vadd.f32 0.0, %v2445
        %v2447 = vpop.f32.mrb[0].mxu0
        %2448 = vdwg.mxu0
        %v2449 = vmax.f32 %v2196, %v2419
        %v2450 = vmax.f32 %v2197, %v2422
        %v2451 = vmax.f32 %v2198, %v2427
        %v2452 = vmax.f32 %v2199, %v2430
        %v2453 = vmax.f32 %v2200, %v2435
        %v2454 = vmax.f32 %v2201, %v2438
        %v2455 = vmax.f32 %v2202, %v2443
        %v2456 = vmax.f32 %v2203, %v2446
        %v2457 = vsel %vm2280, inf, %v2204
        %v2458 = vsel %vm2281, inf, %v2205
        %v2459 = vsel %vm2282, inf, %v2206
        %v2460 = vsel %vm2283, inf, %v2207
        %v2461 = vsel %vm2284, inf, %v2208
        %v2462 = vsel %vm2285, inf, %v2209
        %v2463 = vsel %vm2286, inf, %v2210
        %v2464 = vsel %vm2287, inf, %v2211
        %v2465 = vsel %vm1199, %v2457, inf
        %v2466 = vsel %vm1199, %v2458, inf
        %v2467 = vsel %vm1199, %v2459, inf
        %v2468 = vsel %vm1199, %v2460, inf
        %v2469 = vsel %vm1199, %v2461, inf
        %v2470 = vmin.f32 %v2465, %v2469
        %v2471 = vsel %vm1199, %v2462, inf
        %v2472 = vmin.f32 %v2466, %v2471
        %v2473 = vsel %vm1199, %v2463, inf
        %v2474 = vmin.f32 %v2467, %v2473
        %v2475 = vsel %vm1199, %v2464, inf
        %v2476 = vmin.f32 %v2468, %v2475
        %v2477 = vmin.f32 %v2470, %v2472
        %v2478 = vmin.f32 %v2474, %v2476
        %v2479 = vmin.f32 %v2477, %v2478
        %v2480 = vrot.slane %v2479, 4
        %v2481 = vmin.f32 %v2479, %v2480
        %v2482 = vrot.slane %v2481, 2
        %v2483 = vmin.f32 %v2481, %v2482
        %v2484 = vrot.slane %v2483, 1
        %v2485 = vmin.f32 %v2483, %v2484
        %vm2486 = vcmp.le.f32.partialorder %v2457, %v2485
        %vm2487 = vcmp.le.f32.partialorder %v2458, %v2485
        %vm2488 = vcmp.le.f32.partialorder %v2459, %v2485
        %vm2489 = vcmp.le.f32.partialorder %v2460, %v2485
        %vm2490 = vcmp.le.f32.partialorder %v2461, %v2485
        %vm2491 = vcmp.le.f32.partialorder %v2462, %v2485
        %vm2492 = vcmp.le.f32.partialorder %v2463, %v2485
        %vm2493 = vcmp.le.f32.partialorder %v2464, %v2485
        %v2494 = vsel %vm2486, %v1189, 64
        %v2495 = vsel %vm2487, %v1190, 64
        %v2496 = vsel %vm2488, %v1191, 64
        %v2497 = vsel %vm2489, %v1192, 64
        %v2498 = vsel %vm2490, %v1193, 64
        %v2499 = vsel %vm2491, %v1194, 64
        %v2500 = vsel %vm2492, %v1195, 64
        %v2501 = vsel %vm2493, %v1196, 64
        %v2502 = vsel %vm1199, %v2494, 2147483647
        %v2503 = vsel %vm1199, %v2495, 2147483647
        %v2504 = vsel %vm1199, %v2496, 2147483647
        %v2505 = vsel %vm1199, %v2497, 2147483647
        %v2506 = vsel %vm1199, %v2498, 2147483647
        %vm2507 = vcmp.lt.s32.totalorder %v2502, %v2506
        %v2508 = vsel %vm2507, %v2502, %v2506
        %v2509 = vsel %vm1199, %v2499, 2147483647
        %vm2510 = vcmp.lt.s32.totalorder %v2503, %v2509
        %v2511 = vsel %vm2510, %v2503, %v2509
        %v2512 = vsel %vm1199, %v2500, 2147483647
        %vm2513 = vcmp.lt.s32.totalorder %v2504, %v2512
        %v2514 = vsel %vm2513, %v2504, %v2512
        %v2515 = vsel %vm1199, %v2501, 2147483647
        %vm2516 = vcmp.lt.s32.totalorder %v2505, %v2515
        %v2517 = vsel %vm2516, %v2505, %v2515
        %vm2518 = vcmp.lt.s32.totalorder %v2508, %v2511
        %v2519 = vsel %vm2518, %v2508, %v2511
        %vm2520 = vcmp.lt.s32.totalorder %v2514, %v2517
        %v2521 = vsel %vm2520, %v2514, %v2517
        %vm2522 = vcmp.lt.s32.totalorder %v2519, %v2521
        %v2523 = vsel %vm2522, %v2519, %v2521
        %v2524 = vrot.slane %v2523, 4
        %vm2525 = vcmp.lt.s32.totalorder %v2523, %v2524
        %v2526 = vsel %vm2525, %v2523, %v2524
        %v2527 = vrot.slane %v2526, 2
        %vm2528 = vcmp.lt.s32.totalorder %v2526, %v2527
        %v2529 = vsel %vm2528, %v2526, %v2527
        %v2530 = vrot.slane %v2529, 1
        %vm2531 = vcmp.lt.s32.totalorder %v2529, %v2530
        %v2532 = vsel %vm2531, %v2529, %v2530
        %vm2533 = vcmp.eq.s32.totalorder %v1189, %v2532
        %vm2534 = vcmp.eq.s32.totalorder %v1190, %v2532
        %vm2535 = vcmp.eq.s32.totalorder %v1191, %v2532
        %vm2536 = vcmp.eq.s32.totalorder %v1192, %v2532
        %vm2537 = vcmp.eq.s32.totalorder %v1193, %v2532
        %vm2538 = vcmp.eq.s32.totalorder %v1194, %v2532
        %vm2539 = vcmp.eq.s32.totalorder %v1195, %v2532
        %vm2540 = vcmp.eq.s32.totalorder %v1196, %v2532
        %2541 = vxpose.xlu0.b32.start [1/16] %v2532, 128
        %2542 = vxpose.xlu0.b32.cont [2/16] 0, 128
        %2543 = vxpose.xlu0.b32.cont [3/16] 0, 128
        %2544 = vxpose.xlu0.b32.cont [4/16] 0, 128
        %2545 = vxpose.xlu0.b32.cont [5/16] 0, 128
        %2546 = vxpose.xlu0.b32.cont [6/16] 0, 128
        %2547 = vxpose.xlu0.b32.cont [7/16] 0, 128
        %2548 = vxpose.xlu0.b32.cont [8/16] 0, 128
        %2549 = vxpose.xlu0.b32.cont [9/16] 0, 128
        %2550 = vxpose.xlu0.b32.cont [10/16] 0, 128
        %2551 = vxpose.xlu0.b32.cont [11/16] 0, 128
        %2552 = vxpose.xlu0.b32.cont [12/16] 0, 128
        %2553 = vxpose.xlu0.b32.cont [13/16] 0, 128
        %2554 = vxpose.xlu0.b32.cont [14/16] 0, 128
        %2555 = vxpose.xlu0.b32.cont [15/16] 0, 128
        %2556 = vxpose.xlu0.b32.end [16/16] 0, 128
        %v2557 = vpop.trf.xlu0
        %v2558 = vpop.trf.xlu0
        %v2559 = vpop.trf.xlu0
        %v2560 = vpop.trf.xlu0
        %v2561 = vpop.trf.xlu0
        %v2562 = vpop.trf.xlu0
        %v2563 = vpop.trf.xlu0
        %v2564 = vpop.trf.xlu0
        %v2565 = vpop.trf.xlu0
        %v2566 = vpop.trf.xlu0
        %v2567 = vpop.trf.xlu0
        %v2568 = vpop.trf.xlu0
        %v2569 = vpop.trf.xlu0
        %v2570 = vpop.trf.xlu0
        %v2571 = vpop.trf.xlu0
        %v2572 = vpop.trf.xlu0
        %2573 = vset.pattern.permute.xlu0 0
        %2574 = vperm.xlu0 %2573, %v2557
        %v2575 = vpop.permute.xlu0 %2574
        %2576 = vset.pattern.permute.xlu0 0
        %2577 = vperm.xlu0 %2576, %v2558
        %v2578 = vpop.permute.xlu0 %2577
        %2579 = vset.pattern.permute.xlu0 0
        %2580 = vperm.xlu0 %2579, %v2559
        %v2581 = vpop.permute.xlu0 %2580
        %2582 = vset.pattern.permute.xlu0 0
        %2583 = vperm.xlu0 %2582, %v2560
        %v2584 = vpop.permute.xlu0 %2583
        %2585 = vset.pattern.permute.xlu0 0
        %2586 = vperm.xlu0 %2585, %v2561
        %v2587 = vpop.permute.xlu0 %2586
        %2588 = vset.pattern.permute.xlu0 0
        %2589 = vperm.xlu0 %2588, %v2562
        %v2590 = vpop.permute.xlu0 %2589
        %2591 = vset.pattern.permute.xlu0 0
        %2592 = vperm.xlu0 %2591, %v2563
        %v2593 = vpop.permute.xlu0 %2592
        %2594 = vset.pattern.permute.xlu0 0
        %2595 = vperm.xlu0 %2594, %v2564
        %v2596 = vpop.permute.xlu0 %2595
        %vm2597 = vcmp.eq.s32.totalorder %v1198, %v2575
        %vm2598 = vcmp.eq.s32.totalorder %v1198, %v2578
        %vm2599 = vcmp.eq.s32.totalorder %v1198, %v2581
        %vm2600 = vcmp.eq.s32.totalorder %v1198, %v2584
        %vm2601 = vcmp.eq.s32.totalorder %v1198, %v2587
        %vm2602 = vcmp.eq.s32.totalorder %v1198, %v2590
        %vm2603 = vcmp.eq.s32.totalorder %v1198, %v2593
        %vm2604 = vcmp.eq.s32.totalorder %v1198, %v2596
        %v2605 = vsel %vm2597, 1, 0
        %v2606 = vsel %vm2598, 1, 0
        %v2607 = vsel %vm2599, 1, 0
        %v2608 = vsel %vm2600, 1, 0
        %v2609 = vsel %vm2601, 1, 0
        %v2610 = vsel %vm2602, 1, 0
        %v2611 = vsel %vm2603, 1, 0
        %v2612 = vsel %vm2604, 1, 0
        %v2613 = vcvt.s32.f32 %v2605
        %v2614 = vcvt.s32.f32 %v2606
        %v2615 = vcvt.s32.f32 %v2607
        %v2616 = vcvt.s32.f32 %v2608
        %v2617 = vcvt.s32.f32 %v2609
        %v2618 = vcvt.s32.f32 %v2610
        %v2619 = vcvt.s32.f32 %v2611
        %v2620 = vcvt.s32.f32 %v2612
        %v2621 = vpack.c.bf16 %v2614, %v2613
        %v2622 = vpack.c.bf16 %v2616, %v2615
        %v2623 = vpack.c.bf16 %v2618, %v2617
        %v2624 = vpack.c.bf16 %v2620, %v2619
        %v2626 = vsel %vm1199, %v2621, 0
        %v2629 = vsel %vm1199, %v2622, 0
        %v2632 = vsel %vm1199, %v2623, 0
        %v2635 = vsel %vm1199, %v2624, 0
        %2637 = vmatprep.subr.bf16.mxu0 0
        %2638 = vmatpush1.bf16.msra.mxu0 %v1184
        %2639 = vmatprep.subr.bf16.mxu0 0
        %2640 = vmatpush1.bf16.msra.mxu0 %v1185
        %2641 = vmatprep.subr.bf16.mxu0 0
        %2642 = vmatpush1.bf16.msra.mxu0 %v1186
        %2643 = vmatprep.subr.bf16.mxu0 0
        %2644 = vmatpush1.bf16.msra.mxu0 %v1187
        %2645 = vmatprep.subr.bf16.mxu0 0
        %2646 = vmatpush1.bf16.msra.mxu0 0
        %2647 = vmatprep.subr.bf16.mxu0 0
        %2648 = vmatpush1.bf16.msra.mxu0 0
        %2649 = vmatprep.subr.bf16.mxu0 0
        %2650 = vmatpush1.bf16.msra.mxu0 0
        %2651 = vmatprep.subr.bf16.mxu0 0
        %2652 = vmatpush1.bf16.msra.mxu0 0
        %2653 = vmatprep.subr.bf16.mxu0 0
        %2654 = vmatpush1.bf16.msra.mxu0 0
        %2655 = vmatprep.subr.bf16.mxu0 0
        %2656 = vmatpush1.bf16.msra.mxu0 0
        %2657 = vmatprep.subr.bf16.mxu0 0
        %2658 = vmatpush1.bf16.msra.mxu0 0
        %2659 = vmatprep.subr.bf16.mxu0 0
        %2660 = vmatpush1.bf16.msra.mxu0 0
        %2661 = vmatprep.subr.bf16.mxu0 0
        %2662 = vmatpush1.bf16.msra.mxu0 0
        %2663 = vmatprep.subr.bf16.mxu0 0
        %2664 = vmatpush1.bf16.msra.mxu0 0
        %2665 = vmatprep.subr.bf16.mxu0 0
        %2666 = vmatpush1.bf16.msra.mxu0 0
        %2667 = vmatprep.subr.bf16.mxu0 0
        %2668 = vmatpush1.bf16.msra.mxu0 0
        %2669 = vmatprep.mubr.bf16.mxu0 0
        %2670 = vmatmul.mubr.bf16.gmra.mrb[0].mxu0 %v2626
        %v2671 = vpop.f32.mrb[0].mxu0
        %v2672 = vadd.f32 0.0, %v2671
        %v2673 = vpop.f32.mrb[0].mxu0
        %v2674 = vpop.f32.mrb[0].mxu0
        %v2675 = vadd.f32 0.0, %v2674
        %v2676 = vpop.f32.mrb[0].mxu0
        %2677 = vmatprep.mubr.bf16.mxu0 0
        %2678 = vmatmul.mubr.bf16.gmra.mrb[0].mxu0 %v2629
        %v2679 = vpop.f32.mrb[0].mxu0
        %v2680 = vadd.f32 0.0, %v2679
        %v2681 = vpop.f32.mrb[0].mxu0
        %v2682 = vpop.f32.mrb[0].mxu0
        %v2683 = vadd.f32 0.0, %v2682
        %v2684 = vpop.f32.mrb[0].mxu0
        %2685 = vmatprep.mubr.bf16.mxu0 0
        %2686 = vmatmul.mubr.bf16.gmra.mrb[0].mxu0 %v2632
        %v2687 = vpop.f32.mrb[0].mxu0
        %v2688 = vadd.f32 0.0, %v2687
        %v2689 = vpop.f32.mrb[0].mxu0
        %v2690 = vpop.f32.mrb[0].mxu0
        %v2691 = vadd.f32 0.0, %v2690
        %v2692 = vpop.f32.mrb[0].mxu0
        %2693 = vmatprep.mubr.bf16.mxu0 0
        %2694 = vmatmul.mubr.bf16.gmra.mrb[0].mxu0 %v2635
        %v2695 = vpop.f32.mrb[0].mxu0
        %v2696 = vadd.f32 0.0, %v2695
        %v2697 = vpop.f32.mrb[0].mxu0
        %v2698 = vpop.f32.mrb[0].mxu0
        %v2699 = vadd.f32 0.0, %v2698
        %v2700 = vpop.f32.mrb[0].mxu0
        %2701 = vdwg.mxu0
        %v2702 = vmax.f32 %v2449, %v2672
        %v2703 = vmax.f32 %v2450, %v2675
        %v2704 = vmax.f32 %v2451, %v2680
        %v2705 = vmax.f32 %v2452, %v2683
        %v2706 = vmax.f32 %v2453, %v2688
        %v2707 = vmax.f32 %v2454, %v2691
        %v2708 = vmax.f32 %v2455, %v2696
        %v2709 = vmax.f32 %v2456, %v2699
        %v2710 = vsel %vm2533, inf, %v2457
        %v2711 = vsel %vm2534, inf, %v2458
        %v2712 = vsel %vm2535, inf, %v2459
        %v2713 = vsel %vm2536, inf, %v2460
        %v2714 = vsel %vm2537, inf, %v2461
        %v2715 = vsel %vm2538, inf, %v2462
        %v2716 = vsel %vm2539, inf, %v2463
        %v2717 = vsel %vm2540, inf, %v2464
        %v2718 = vsel %vm1199, %v2710, inf
        %v2719 = vsel %vm1199, %v2711, inf
        %v2720 = vsel %vm1199, %v2712, inf
        %v2721 = vsel %vm1199, %v2713, inf
        %v2722 = vsel %vm1199, %v2714, inf
        %v2723 = vmin.f32 %v2718, %v2722
        %v2724 = vsel %vm1199, %v2715, inf
        %v2725 = vmin.f32 %v2719, %v2724
        %v2726 = vsel %vm1199, %v2716, inf
        %v2727 = vmin.f32 %v2720, %v2726
        %v2728 = vsel %vm1199, %v2717, inf
        %v2729 = vmin.f32 %v2721, %v2728
        %v2730 = vmin.f32 %v2723, %v2725
        %v2731 = vmin.f32 %v2727, %v2729
        %v2732 = vmin.f32 %v2730, %v2731
        %v2733 = vrot.slane %v2732, 4
        %v2734 = vmin.f32 %v2732, %v2733
        %v2735 = vrot.slane %v2734, 2
        %v2736 = vmin.f32 %v2734, %v2735
        %v2737 = vrot.slane %v2736, 1
        %v2738 = vmin.f32 %v2736, %v2737
        %vm2739 = vcmp.le.f32.partialorder %v2710, %v2738
        %vm2740 = vcmp.le.f32.partialorder %v2711, %v2738
        %vm2741 = vcmp.le.f32.partialorder %v2712, %v2738
        %vm2742 = vcmp.le.f32.partialorder %v2713, %v2738
        %vm2743 = vcmp.le.f32.partialorder %v2714, %v2738
        %vm2744 = vcmp.le.f32.partialorder %v2715, %v2738
        %vm2745 = vcmp.le.f32.partialorder %v2716, %v2738
        %vm2746 = vcmp.le.f32.partialorder %v2717, %v2738
        %v2747 = vsel %vm2739, %v1189, 64
        %v2748 = vsel %vm2740, %v1190, 64
        %v2749 = vsel %vm2741, %v1191, 64
        %v2750 = vsel %vm2742, %v1192, 64
        %v2751 = vsel %vm2743, %v1193, 64
        %v2752 = vsel %vm2744, %v1194, 64
        %v2753 = vsel %vm2745, %v1195, 64
        %v2754 = vsel %vm2746, %v1196, 64
        %v2755 = vsel %vm1199, %v2747, 2147483647
        %v2756 = vsel %vm1199, %v2748, 2147483647
        %v2757 = vsel %vm1199, %v2749, 2147483647
        %v2758 = vsel %vm1199, %v2750, 2147483647
        %v2759 = vsel %vm1199, %v2751, 2147483647
        %vm2760 = vcmp.lt.s32.totalorder %v2755, %v2759
        %v2761 = vsel %vm2760, %v2755, %v2759
        %v2762 = vsel %vm1199, %v2752, 2147483647
        %vm2763 = vcmp.lt.s32.totalorder %v2756, %v2762
        %v2764 = vsel %vm2763, %v2756, %v2762
        %v2765 = vsel %vm1199, %v2753, 2147483647
        %vm2766 = vcmp.lt.s32.totalorder %v2757, %v2765
        %v2767 = vsel %vm2766, %v2757, %v2765
        %v2768 = vsel %vm1199, %v2754, 2147483647
        %vm2769 = vcmp.lt.s32.totalorder %v2758, %v2768
        %v2770 = vsel %vm2769, %v2758, %v2768
        %vm2771 = vcmp.lt.s32.totalorder %v2761, %v2764
        %v2772 = vsel %vm2771, %v2761, %v2764
        %vm2773 = vcmp.lt.s32.totalorder %v2767, %v2770
        %v2774 = vsel %vm2773, %v2767, %v2770
        %vm2775 = vcmp.lt.s32.totalorder %v2772, %v2774
        %v2776 = vsel %vm2775, %v2772, %v2774
        %v2777 = vrot.slane %v2776, 4
        %vm2778 = vcmp.lt.s32.totalorder %v2776, %v2777
        %v2779 = vsel %vm2778, %v2776, %v2777
        %v2780 = vrot.slane %v2779, 2
        %vm2781 = vcmp.lt.s32.totalorder %v2779, %v2780
        %v2782 = vsel %vm2781, %v2779, %v2780
        %v2783 = vrot.slane %v2782, 1
        %vm2784 = vcmp.lt.s32.totalorder %v2782, %v2783
        %v2785 = vsel %vm2784, %v2782, %v2783
        %vm2786 = vcmp.eq.s32.totalorder %v1189, %v2785
        %vm2787 = vcmp.eq.s32.totalorder %v1190, %v2785
        %vm2788 = vcmp.eq.s32.totalorder %v1191, %v2785
        %vm2789 = vcmp.eq.s32.totalorder %v1192, %v2785
        %vm2790 = vcmp.eq.s32.totalorder %v1193, %v2785
        %vm2791 = vcmp.eq.s32.totalorder %v1194, %v2785
        %vm2792 = vcmp.eq.s32.totalorder %v1195, %v2785
        %vm2793 = vcmp.eq.s32.totalorder %v1196, %v2785
        %2794 = vxpose.xlu0.b32.start [1/16] %v2785, 128
        %2795 = vxpose.xlu0.b32.cont [2/16] 0, 128
        %2796 = vxpose.xlu0.b32.cont [3/16] 0, 128
        %2797 = vxpose.xlu0.b32.cont [4/16] 0, 128
        %2798 = vxpose.xlu0.b32.cont [5/16] 0, 128
        %2799 = vxpose.xlu0.b32.cont [6/16] 0, 128
        %2800 = vxpose.xlu0.b32.cont [7/16] 0, 128
        %2801 = vxpose.xlu0.b32.cont [8/16] 0, 128
        %2802 = vxpose.xlu0.b32.cont [9/16] 0, 128
        %2803 = vxpose.xlu0.b32.cont [10/16] 0, 128
        %2804 = vxpose.xlu0.b32.cont [11/16] 0, 128
        %2805 = vxpose.xlu0.b32.cont [12/16] 0, 128
        %2806 = vxpose.xlu0.b32.cont [13/16] 0, 128
        %2807 = vxpose.xlu0.b32.cont [14/16] 0, 128
        %2808 = vxpose.xlu0.b32.cont [15/16] 0, 128
        %2809 = vxpose.xlu0.b32.end [16/16] 0, 128
        %v2810 = vpop.trf.xlu0
        %v2811 = vpop.trf.xlu0
        %v2812 = vpop.trf.xlu0
        %v2813 = vpop.trf.xlu0
        %v2814 = vpop.trf.xlu0
        %v2815 = vpop.trf.xlu0
        %v2816 = vpop.trf.xlu0
        %v2817 = vpop.trf.xlu0
        %v2818 = vpop.trf.xlu0
        %v2819 = vpop.trf.xlu0
        %v2820 = vpop.trf.xlu0
        %v2821 = vpop.trf.xlu0
        %v2822 = vpop.trf.xlu0
        %v2823 = vpop.trf.xlu0
        %v2824 = vpop.trf.xlu0
        %v2825 = vpop.trf.xlu0
        %2826 = vset.pattern.permute.xlu0 0
        %2827 = vperm.xlu0 %2826, %v2810
        %v2828 = vpop.permute.xlu0 %2827
        %2829 = vset.pattern.permute.xlu0 0
        %2830 = vperm.xlu0 %2829, %v2811
        %v2831 = vpop.permute.xlu0 %2830
        %2832 = vset.pattern.permute.xlu0 0
        %2833 = vperm.xlu0 %2832, %v2812
        %v2834 = vpop.permute.xlu0 %2833
        %2835 = vset.pattern.permute.xlu0 0
        %2836 = vperm.xlu0 %2835, %v2813
        %v2837 = vpop.permute.xlu0 %2836
        %2838 = vset.pattern.permute.xlu0 0
        %2839 = vperm.xlu0 %2838, %v2814
        %v2840 = vpop.permute.xlu0 %2839
        %2841 = vset.pattern.permute.xlu0 0
        %2842 = vperm.xlu0 %2841, %v2815
        %v2843 = vpop.permute.xlu0 %2842
        %2844 = vset.pattern.permute.xlu0 0
        %2845 = vperm.xlu0 %2844, %v2816
        %v2846 = vpop.permute.xlu0 %2845
        %2847 = vset.pattern.permute.xlu0 0
        %2848 = vperm.xlu0 %2847, %v2817
        %v2849 = vpop.permute.xlu0 %2848
        %vm2850 = vcmp.eq.s32.totalorder %v1198, %v2828
        %vm2851 = vcmp.eq.s32.totalorder %v1198, %v2831
        %vm2852 = vcmp.eq.s32.totalorder %v1198, %v2834
        %vm2853 = vcmp.eq.s32.totalorder %v1198, %v2837
        %vm2854 = vcmp.eq.s32.totalorder %v1198, %v2840
        %vm2855 = vcmp.eq.s32.totalorder %v1198, %v2843
        %vm2856 = vcmp.eq.s32.totalorder %v1198, %v2846
        %vm2857 = vcmp.eq.s32.totalorder %v1198, %v2849
        %v2858 = vsel %vm2850, 1, 0
        %v2859 = vsel %vm2851, 1, 0
        %v2860 = vsel %vm2852, 1, 0
        %v2861 = vsel %vm2853, 1, 0
        %v2862 = vsel %vm2854, 1, 0
        %v2863 = vsel %vm2855, 1, 0
        %v2864 = vsel %vm2856, 1, 0
        %v2865 = vsel %vm2857, 1, 0
        %v2866 = vcvt.s32.f32 %v2858
        %v2867 = vcvt.s32.f32 %v2859
        %v2868 = vcvt.s32.f32 %v2860
        %v2869 = vcvt.s32.f32 %v2861
        %v2870 = vcvt.s32.f32 %v2862
        %v2871 = vcvt.s32.f32 %v2863
        %v2872 = vcvt.s32.f32 %v2864
        %v2873 = vcvt.s32.f32 %v2865
        %v2874 = vpack.c.bf16 %v2867, %v2866
        %v2875 = vpack.c.bf16 %v2869, %v2868
        %v2876 = vpack.c.bf16 %v2871, %v2870
        %v2877 = vpack.c.bf16 %v2873, %v2872
        %v2879 = vsel %vm1199, %v2874, 0
        %v2882 = vsel %vm1199, %v2875, 0
        %v2885 = vsel %vm1199, %v2876, 0
        %v2888 = vsel %vm1199, %v2877, 0
        %2890 = vmatprep.subr.bf16.mxu0 0
        %2891 = vmatpush1.bf16.msra.mxu0 %v1184
        %2892 = vmatprep.subr.bf16.mxu0 0
        %2893 = vmatpush1.bf16.msra.mxu0 %v1185
        %2894 = vmatprep.subr.bf16.mxu0 0
        %2895 = vmatpush1.bf16.msra.mxu0 %v1186
        %2896 = vmatprep.subr.bf16.mxu0 0
        %2897 = vmatpush1.bf16.msra.mxu0 %v1187
        %2898 = vmatprep.subr.bf16.mxu0 0
        %2899 = vmatpush1.bf16.msra.mxu0 0
        %2900 = vmatprep.subr.bf16.mxu0 0
        %2901 = vmatpush1.bf16.msra.mxu0 0
        %2902 = vmatprep.subr.bf16.mxu0 0
        %2903 = vmatpush1.bf16.msra.mxu0 0
        %2904 = vmatprep.subr.bf16.mxu0 0
        %2905 = vmatpush1.bf16.msra.mxu0 0
        %2906 = vmatprep.subr.bf16.mxu0 0
        %2907 = vmatpush1.bf16.msra.mxu0 0
        %2908 = vmatprep.subr.bf16.mxu0 0
        %2909 = vmatpush1.bf16.msra.mxu0 0
        %2910 = vmatprep.subr.bf16.mxu0 0
        %2911 = vmatpush1.bf16.msra.mxu0 0
        %2912 = vmatprep.subr.bf16.mxu0 0
        %2913 = vmatpush1.bf16.msra.mxu0 0
        %2914 = vmatprep.subr.bf16.mxu0 0
        %2915 = vmatpush1.bf16.msra.mxu0 0
        %2916 = vmatprep.subr.bf16.mxu0 0
        %2917 = vmatpush1.bf16.msra.mxu0 0
        %2918 = vmatprep.subr.bf16.mxu0 0
        %2919 = vmatpush1.bf16.msra.mxu0 0
        %2920 = vmatprep.subr.bf16.mxu0 0
        %2921 = vmatpush1.bf16.msra.mxu0 0
        %2922 = vmatprep.mubr.bf16.mxu0 0
        %2923 = vmatmul.mubr.bf16.gmra.mrb[0].mxu0 %v2879
        %v2924 = vpop.f32.mrb[0].mxu0
        %v2925 = vadd.f32 0.0, %v2924
        %v2926 = vpop.f32.mrb[0].mxu0
        %v2927 = vpop.f32.mrb[0].mxu0
        %v2928 = vadd.f32 0.0, %v2927
        %v2929 = vpop.f32.mrb[0].mxu0
        %2930 = vmatprep.mubr.bf16.mxu0 0
        %2931 = vmatmul.mubr.bf16.gmra.mrb[0].mxu0 %v2882
        %v2932 = vpop.f32.mrb[0].mxu0
        %v2933 = vadd.f32 0.0, %v2932
        %v2934 = vpop.f32.mrb[0].mxu0
        %v2935 = vpop.f32.mrb[0].mxu0
        %v2936 = vadd.f32 0.0, %v2935
        %v2937 = vpop.f32.mrb[0].mxu0
        %2938 = vmatprep.mubr.bf16.mxu0 0
        %2939 = vmatmul.mubr.bf16.gmra.mrb[0].mxu0 %v2885
        %v2940 = vpop.f32.mrb[0].mxu0
        %v2941 = vadd.f32 0.0, %v2940
        %v2942 = vpop.f32.mrb[0].mxu0
        %v2943 = vpop.f32.mrb[0].mxu0
        %v2944 = vadd.f32 0.0, %v2943
        %v2945 = vpop.f32.mrb[0].mxu0
        %2946 = vmatprep.mubr.bf16.mxu0 0
        %2947 = vmatmul.mubr.bf16.gmra.mrb[0].mxu0 %v2888
        %v2948 = vpop.f32.mrb[0].mxu0
        %v2949 = vadd.f32 0.0, %v2948
        %v2950 = vpop.f32.mrb[0].mxu0
        %v2951 = vpop.f32.mrb[0].mxu0
        %v2952 = vadd.f32 0.0, %v2951
        %v2953 = vpop.f32.mrb[0].mxu0
        %2954 = vdwg.mxu0
        %v2955 = vmax.f32 %v2702, %v2925
        %v2956 = vmax.f32 %v2703, %v2928
        %v2957 = vmax.f32 %v2704, %v2933
        %v2958 = vmax.f32 %v2705, %v2936
        %v2959 = vmax.f32 %v2706, %v2941
        %v2960 = vmax.f32 %v2707, %v2944
        %v2961 = vmax.f32 %v2708, %v2949
        %v2962 = vmax.f32 %v2709, %v2952
        %v2963 = vsel %vm2786, inf, %v2710
        %v2964 = vsel %vm2787, inf, %v2711
        %v2965 = vsel %vm2788, inf, %v2712
        %v2966 = vsel %vm2789, inf, %v2713
        %v2967 = vsel %vm2790, inf, %v2714
        %v2968 = vsel %vm2791, inf, %v2715
        %v2969 = vsel %vm2792, inf, %v2716
        %v2970 = vsel %vm2793, inf, %v2717
        %v2971 = vsel %vm1199, %v2963, inf
        %v2972 = vsel %vm1199, %v2964, inf
        %v2973 = vsel %vm1199, %v2965, inf
        %v2974 = vsel %vm1199, %v2966, inf
        %v2975 = vsel %vm1199, %v2967, inf
        %v2976 = vmin.f32 %v2971, %v2975
        %v2977 = vsel %vm1199, %v2968, inf
        %v2978 = vmin.f32 %v2972, %v2977
        %v2979 = vsel %vm1199, %v2969, inf
        %v2980 = vmin.f32 %v2973, %v2979
        %v2981 = vsel %vm1199, %v2970, inf
        %v2982 = vmin.f32 %v2974, %v2981
        %v2983 = vmin.f32 %v2976, %v2978
        %v2984 = vmin.f32 %v2980, %v2982
        %v2985 = vmin.f32 %v2983, %v2984
        %v2986 = vrot.slane %v2985, 4
        %v2987 = vmin.f32 %v2985, %v2986
        %v2988 = vrot.slane %v2987, 2
        %v2989 = vmin.f32 %v2987, %v2988
        %v2990 = vrot.slane %v2989, 1
        %v2991 = vmin.f32 %v2989, %v2990
        %vm2992 = vcmp.le.f32.partialorder %v2963, %v2991
        %vm2993 = vcmp.le.f32.partialorder %v2964, %v2991
        %vm2994 = vcmp.le.f32.partialorder %v2965, %v2991
        %vm2995 = vcmp.le.f32.partialorder %v2966, %v2991
        %vm2996 = vcmp.le.f32.partialorder %v2967, %v2991
        %vm2997 = vcmp.le.f32.partialorder %v2968, %v2991
        %vm2998 = vcmp.le.f32.partialorder %v2969, %v2991
        %vm2999 = vcmp.le.f32.partialorder %v2970, %v2991
        %v3000 = vsel %vm2992, %v1189, 64
        %v3001 = vsel %vm2993, %v1190, 64
        %v3002 = vsel %vm2994, %v1191, 64
        %v3003 = vsel %vm2995, %v1192, 64
        %v3004 = vsel %vm2996, %v1193, 64
        %v3005 = vsel %vm2997, %v1194, 64
        %v3006 = vsel %vm2998, %v1195, 64
        %v3007 = vsel %vm2999, %v1196, 64
        %v3008 = vsel %vm1199, %v3000, 2147483647
        %v3009 = vsel %vm1199, %v3001, 2147483647
        %v3010 = vsel %vm1199, %v3002, 2147483647
        %v3011 = vsel %vm1199, %v3003, 2147483647
        %v3012 = vsel %vm1199, %v3004, 2147483647
        %vm3013 = vcmp.lt.s32.totalorder %v3008, %v3012
        %v3014 = vsel %vm3013, %v3008, %v3012
        %v3015 = vsel %vm1199, %v3005, 2147483647
        %vm3016 = vcmp.lt.s32.totalorder %v3009, %v3015
        %v3017 = vsel %vm3016, %v3009, %v3015
        %v3018 = vsel %vm1199, %v3006, 2147483647
        %vm3019 = vcmp.lt.s32.totalorder %v3010, %v3018
        %v3020 = vsel %vm3019, %v3010, %v3018
        %v3021 = vsel %vm1199, %v3007, 2147483647
        %vm3022 = vcmp.lt.s32.totalorder %v3011, %v3021
        %v3023 = vsel %vm3022, %v3011, %v3021
        %vm3024 = vcmp.lt.s32.totalorder %v3014, %v3017
        %v3025 = vsel %vm3024, %v3014, %v3017
        %vm3026 = vcmp.lt.s32.totalorder %v3020, %v3023
        %v3027 = vsel %vm3026, %v3020, %v3023
        %vm3028 = vcmp.lt.s32.totalorder %v3025, %v3027
        %v3029 = vsel %vm3028, %v3025, %v3027
        %v3030 = vrot.slane %v3029, 4
        %vm3031 = vcmp.lt.s32.totalorder %v3029, %v3030
        %v3032 = vsel %vm3031, %v3029, %v3030
        %v3033 = vrot.slane %v3032, 2
        %vm3034 = vcmp.lt.s32.totalorder %v3032, %v3033
        %v3035 = vsel %vm3034, %v3032, %v3033
        %v3036 = vrot.slane %v3035, 1
        %vm3037 = vcmp.lt.s32.totalorder %v3035, %v3036
        %v3038 = vsel %vm3037, %v3035, %v3036
        %3039 = vxpose.xlu0.b32.start [1/16] %v3038, 128
        %3040 = vxpose.xlu0.b32.cont [2/16] 0, 128
        %3041 = vxpose.xlu0.b32.cont [3/16] 0, 128
        %3042 = vxpose.xlu0.b32.cont [4/16] 0, 128
        %3043 = vxpose.xlu0.b32.cont [5/16] 0, 128
        %3044 = vxpose.xlu0.b32.cont [6/16] 0, 128
        %3045 = vxpose.xlu0.b32.cont [7/16] 0, 128
        %3046 = vxpose.xlu0.b32.cont [8/16] 0, 128
        %3047 = vxpose.xlu0.b32.cont [9/16] 0, 128
        %3048 = vxpose.xlu0.b32.cont [10/16] 0, 128
        %3049 = vxpose.xlu0.b32.cont [11/16] 0, 128
        %3050 = vxpose.xlu0.b32.cont [12/16] 0, 128
        %3051 = vxpose.xlu0.b32.cont [13/16] 0, 128
        %3052 = vxpose.xlu0.b32.cont [14/16] 0, 128
        %3053 = vxpose.xlu0.b32.cont [15/16] 0, 128
        %3054 = vxpose.xlu0.b32.end [16/16] 0, 128
        %v3055 = vpop.trf.xlu0
        %v3056 = vpop.trf.xlu0
        %v3057 = vpop.trf.xlu0
        %v3058 = vpop.trf.xlu0
        %v3059 = vpop.trf.xlu0
        %v3060 = vpop.trf.xlu0
        %v3061 = vpop.trf.xlu0
        %v3062 = vpop.trf.xlu0
        %v3063 = vpop.trf.xlu0
        %v3064 = vpop.trf.xlu0
        %v3065 = vpop.trf.xlu0
        %v3066 = vpop.trf.xlu0
        %v3067 = vpop.trf.xlu0
        %v3068 = vpop.trf.xlu0
        %v3069 = vpop.trf.xlu0
        %v3070 = vpop.trf.xlu0
        %3071 = vset.pattern.permute.xlu0 0
        %3072 = vperm.xlu0 %3071, %v3055
        %v3073 = vpop.permute.xlu0 %3072
        %3074 = vset.pattern.permute.xlu0 0
        %3075 = vperm.xlu0 %3074, %v3056
        %v3076 = vpop.permute.xlu0 %3075
        %3077 = vset.pattern.permute.xlu0 0
        %3078 = vperm.xlu0 %3077, %v3057
        %v3079 = vpop.permute.xlu0 %3078
        %3080 = vset.pattern.permute.xlu0 0
        %3081 = vperm.xlu0 %3080, %v3058
        %v3082 = vpop.permute.xlu0 %3081
        %3083 = vset.pattern.permute.xlu0 0
        %3084 = vperm.xlu0 %3083, %v3059
        %v3085 = vpop.permute.xlu0 %3084
        %3086 = vset.pattern.permute.xlu0 0
        %3087 = vperm.xlu0 %3086, %v3060
        %v3088 = vpop.permute.xlu0 %3087
        %3089 = vset.pattern.permute.xlu0 0
        %3090 = vperm.xlu0 %3089, %v3061
        %v3091 = vpop.permute.xlu0 %3090
        %3092 = vset.pattern.permute.xlu0 0
        %3093 = vperm.xlu0 %3092, %v3062
        %v3094 = vpop.permute.xlu0 %3093
        %vm3095 = vcmp.eq.s32.totalorder %v1198, %v3073
        %vm3096 = vcmp.eq.s32.totalorder %v1198, %v3076
        %vm3097 = vcmp.eq.s32.totalorder %v1198, %v3079
        %vm3098 = vcmp.eq.s32.totalorder %v1198, %v3082
        %vm3099 = vcmp.eq.s32.totalorder %v1198, %v3085
        %vm3100 = vcmp.eq.s32.totalorder %v1198, %v3088
        %vm3101 = vcmp.eq.s32.totalorder %v1198, %v3091
        %vm3102 = vcmp.eq.s32.totalorder %v1198, %v3094
        %v3103 = vsel %vm3095, 1, 0
        %v3104 = vsel %vm3096, 1, 0
        %v3105 = vsel %vm3097, 1, 0
        %v3106 = vsel %vm3098, 1, 0
        %v3107 = vsel %vm3099, 1, 0
        %v3108 = vsel %vm3100, 1, 0
        %v3109 = vsel %vm3101, 1, 0
        %v3110 = vsel %vm3102, 1, 0
        %v3111 = vcvt.s32.f32 %v3103
        %v3112 = vcvt.s32.f32 %v3104
        %v3113 = vcvt.s32.f32 %v3105
        %v3114 = vcvt.s32.f32 %v3106
        %v3115 = vcvt.s32.f32 %v3107
        %v3116 = vcvt.s32.f32 %v3108
        %v3117 = vcvt.s32.f32 %v3109
        %v3118 = vcvt.s32.f32 %v3110
        %v3119 = vpack.c.bf16 %v3112, %v3111
        %v3120 = vpack.c.bf16 %v3114, %v3113
        %v3121 = vpack.c.bf16 %v3116, %v3115
        %v3122 = vpack.c.bf16 %v3118, %v3117
        %v3124 = vsel %vm1199, %v3119, 0
        %v3127 = vsel %vm1199, %v3120, 0
        %v3130 = vsel %vm1199, %v3121, 0
        %v3133 = vsel %vm1199, %v3122, 0
        %3135 = vmatprep.subr.bf16.mxu0 0
        %3136 = vmatpush1.bf16.msra.mxu0 %v1184
        %3137 = vmatprep.subr.bf16.mxu0 0
        %3138 = vmatpush1.bf16.msra.mxu0 %v1185
        %3139 = vmatprep.subr.bf16.mxu0 0
        %3140 = vmatpush1.bf16.msra.mxu0 %v1186
        %3141 = vmatprep.subr.bf16.mxu0 0
        %3142 = vmatpush1.bf16.msra.mxu0 %v1187
        %3143 = vmatprep.subr.bf16.mxu0 0
        %3144 = vmatpush1.bf16.msra.mxu0 0
        %3145 = vmatprep.subr.bf16.mxu0 0
        %3146 = vmatpush1.bf16.msra.mxu0 0
        %3147 = vmatprep.subr.bf16.mxu0 0
        %3148 = vmatpush1.bf16.msra.mxu0 0
        %3149 = vmatprep.subr.bf16.mxu0 0
        %3150 = vmatpush1.bf16.msra.mxu0 0
        %3151 = vmatprep.subr.bf16.mxu0 0
        %3152 = vmatpush1.bf16.msra.mxu0 0
        %3153 = vmatprep.subr.bf16.mxu0 0
        %3154 = vmatpush1.bf16.msra.mxu0 0
        %3155 = vmatprep.subr.bf16.mxu0 0
        %3156 = vmatpush1.bf16.msra.mxu0 0
        %3157 = vmatprep.subr.bf16.mxu0 0
        %3158 = vmatpush1.bf16.msra.mxu0 0
        %3159 = vmatprep.subr.bf16.mxu0 0
        %3160 = vmatpush1.bf16.msra.mxu0 0
        %3161 = vmatprep.subr.bf16.mxu0 0
        %3162 = vmatpush1.bf16.msra.mxu0 0
        %3163 = vmatprep.subr.bf16.mxu0 0
        %3164 = vmatpush1.bf16.msra.mxu0 0
        %3165 = vmatprep.subr.bf16.mxu0 0
        %3166 = vmatpush1.bf16.msra.mxu0 0
        %3167 = vmatprep.mubr.bf16.mxu0 0
        %3168 = vmatmul.mubr.bf16.gmra.mrb[0].mxu0 %v3124
        %v3169 = vpop.f32.mrb[0].mxu0
        %v3170 = vadd.f32 0.0, %v3169
        %v3171 = vpop.f32.mrb[0].mxu0
        %v3172 = vpop.f32.mrb[0].mxu0
        %v3173 = vadd.f32 0.0, %v3172
        %v3174 = vpop.f32.mrb[0].mxu0
        %3175 = vmatprep.mubr.bf16.mxu0 0
        %3176 = vmatmul.mubr.bf16.gmra.mrb[0].mxu0 %v3127
        %v3177 = vpop.f32.mrb[0].mxu0
        %v3178 = vadd.f32 0.0, %v3177
        %v3179 = vpop.f32.mrb[0].mxu0
        %v3180 = vpop.f32.mrb[0].mxu0
        %v3181 = vadd.f32 0.0, %v3180
        %v3182 = vpop.f32.mrb[0].mxu0
        %3183 = vmatprep.mubr.bf16.mxu0 0
        %3184 = vmatmul.mubr.bf16.gmra.mrb[0].mxu0 %v3130
        %v3185 = vpop.f32.mrb[0].mxu0
        %v3186 = vadd.f32 0.0, %v3185
        %v3187 = vpop.f32.mrb[0].mxu0
        %v3188 = vpop.f32.mrb[0].mxu0
        %v3189 = vadd.f32 0.0, %v3188
        %v3190 = vpop.f32.mrb[0].mxu0
        %3191 = vmatprep.mubr.bf16.mxu0 0
        %3192 = vmatmul.mubr.bf16.gmra.mrb[0].mxu0 %v3133
        %v3193 = vpop.f32.mrb[0].mxu0
        %v3194 = vadd.f32 0.0, %v3193
        %v3195 = vpop.f32.mrb[0].mxu0
        %v3196 = vpop.f32.mrb[0].mxu0
        %v3197 = vadd.f32 0.0, %v3196
        %v3198 = vpop.f32.mrb[0].mxu0
        %3199 = vdwg.mxu0
        %v3200 = vmax.f32 %v2955, %v3170
        %v3201 = vmax.f32 %v2956, %v3173
        %v3202 = vmax.f32 %v2957, %v3178
        %v3203 = vmax.f32 %v2958, %v3181
        %v3204 = vmax.f32 %v2959, %v3186
        %v3205 = vmax.f32 %v2960, %v3189
        %v3206 = vmax.f32 %v2961, %v3194
        %v3207 = vmax.f32 %v2962, %v3197
        %v3208 = vpack.c.bf16 %v3201, %v3200
        %v3209 = vpack.c.bf16 %v3203, %v3202
        %v3210 = vpack.c.bf16 %v3205, %v3204
        %v3211 = vpack.c.bf16 %v3207, %v3206
        %v3212 = vld [vmem:[%s5] sm:$0xf]
        %v3213 = vld [vmem:[%s5 + $0x4] sm:$0xf]
        %v3214 = vld [vmem:[%s5 + $0x8] sm:$0xf]
        %v3215 = vld [vmem:[%s5 + $0xc] sm:$0xf]
        %v3220 = vunpack.c.l.b16 %v3212
        %v3221 = vunpack.c.l.b16 %v3213
        %v3222 = vunpack.c.l.b16 %v3214
        %v3223 = vunpack.c.l.b16 %v3215
        %v3224 = vpack.c.b16 %v3221, %v3220
        %v3225 = vpack.c.b16 %v3223, %v3222
        %v3229 = vsel %vm993, %v3208, 0
        %v3232 = vsel %vm993, %v3209, 0
        %v3235 = vsel %vm993, %v3210, 0
        %v3238 = vsel %vm993, %v3211, 0
        %3240 = vmatprep.subr.bf16.mxu0 0
        %3241 = vmatpush1.bf16.msra.mxu0 %v3224
        %3242 = vmatprep.subr.bf16.mxu0 0
        %3243 = vmatpush1.bf16.msra.mxu0 %v3225
        %3244 = vmatprep.subr.bf16.mxu0 0
        %3245 = vmatpush1.bf16.msra.mxu0 0
        %3246 = vmatprep.subr.bf16.mxu0 0
        %3247 = vmatpush1.bf16.msra.mxu0 0
        %3248 = vmatprep.subr.bf16.mxu0 0
        %3249 = vmatpush1.bf16.msra.mxu0 0
        %3250 = vmatprep.subr.bf16.mxu0 0
        %3251 = vmatpush1.bf16.msra.mxu0 0
        %3252 = vmatprep.subr.bf16.mxu0 0
        %3253 = vmatpush1.bf16.msra.mxu0 0
        %3254 = vmatprep.subr.bf16.mxu0 0
        %3255 = vmatpush1.bf16.msra.mxu0 0
        %3256 = vmatprep.subr.bf16.mxu0 0
        %3257 = vmatpush1.bf16.msra.mxu0 0
        %3258 = vmatprep.subr.bf16.mxu0 0
        %3259 = vmatpush1.bf16.msra.mxu0 0
        %3260 = vmatprep.subr.bf16.mxu0 0
        %3261 = vmatpush1.bf16.msra.mxu0 0
        %3262 = vmatprep.subr.bf16.mxu0 0
        %3263 = vmatpush1.bf16.msra.mxu0 0
        %3264 = vmatprep.subr.bf16.mxu0 0
        %3265 = vmatpush1.bf16.msra.mxu0 0
        %3266 = vmatprep.subr.bf16.mxu0 0
        %3267 = vmatpush1.bf16.msra.mxu0 0
        %3268 = vmatprep.subr.bf16.mxu0 0
        %3269 = vmatpush1.bf16.msra.mxu0 0
        %3270 = vmatprep.subr.bf16.mxu0 0
        %3271 = vmatpush1.bf16.msra.mxu0 0
        %3272 = vmatprep.mubr.bf16.mxu0 0
        %3273 = vmatmul.mubr.bf16.gmra.mrb[0].mxu0 %v3229
        %v3274 = vpop.f32.mrb[0].mxu0
        %v3275 = vadd.f32 0.0, %v3274
        %v3276 = vpop.f32.mrb[0].mxu0
        %v3277 = vpop.f32.mrb[0].mxu0
        %v3278 = vadd.f32 0.0, %v3277
        %v3279 = vpop.f32.mrb[0].mxu0
        %3280 = vmatprep.mubr.bf16.mxu0 0
        %3281 = vmatmul.mubr.bf16.gmra.mrb[0].mxu0 %v3232
        %v3282 = vpop.f32.mrb[0].mxu0
        %v3283 = vadd.f32 0.0, %v3282
        %v3284 = vpop.f32.mrb[0].mxu0
        %v3285 = vpop.f32.mrb[0].mxu0
        %v3286 = vadd.f32 0.0, %v3285
        %v3287 = vpop.f32.mrb[0].mxu0
        %3288 = vmatprep.mubr.bf16.mxu0 0
        %3289 = vmatmul.mubr.bf16.gmra.mrb[0].mxu0 %v3235
        %v3290 = vpop.f32.mrb[0].mxu0
        %v3291 = vadd.f32 0.0, %v3290
        %v3292 = vpop.f32.mrb[0].mxu0
        %v3293 = vpop.f32.mrb[0].mxu0
        %v3294 = vadd.f32 0.0, %v3293
        %v3295 = vpop.f32.mrb[0].mxu0
        %3296 = vmatprep.mubr.bf16.mxu0 0
        %3297 = vmatmul.mubr.bf16.gmra.mrb[0].mxu0 %v3238
        %v3298 = vpop.f32.mrb[0].mxu0
        %v3299 = vadd.f32 0.0, %v3298
        %v3300 = vpop.f32.mrb[0].mxu0
        %v3301 = vpop.f32.mrb[0].mxu0
        %v3302 = vadd.f32 0.0, %v3301
        %v3303 = vpop.f32.mrb[0].mxu0
        %3304 = vdwg.mxu0
        %v3305 = vmax.f32 %v3275, 0.0
        %v3306 = vmax.f32 %v3278, 0.0
        %v3307 = vmax.f32 %v3283, 0.0
        %v3308 = vmax.f32 %v3286, 0.0
        %v3309 = vmax.f32 %v3291, 0.0
        %v3310 = vmax.f32 %v3294, 0.0
        %v3311 = vmax.f32 %v3299, 0.0
        %v3312 = vmax.f32 %v3302, 0.0
        %v3313 = vpack.c.bf16 %v3306, %v3305
        %v3314 = vpack.c.bf16 %v3308, %v3307
        %v3315 = vpack.c.bf16 %v3310, %v3309
        %v3316 = vpack.c.bf16 %v3312, %v3311
        %v3317 = vld [vmem:[%s6] sm:$0xf]
        %v3318 = vld [vmem:[%s6 + $0x4] sm:$0xf]
        %v3319 = vld [vmem:[%s6 + $0x8] sm:$0xf]
        %v3320 = vld [vmem:[%s6 + $0xc] sm:$0xf]
        %v3321 = vld [vmem:[%s7] sm:$0x1]
        %v3323 = vlaneseq
        %v3324 = vshrl.u32 %v3323, 7
        %v3325 = vsub.s32 0, %v3324
        %v3326 = vrot.slane %v3321, %v3325
        %v3332 = vunpack.c.l.b16 %v3317
        %v3333 = vunpack.c.l.b16 %v3318
        %v3334 = vunpack.c.l.b16 %v3319
        %v3335 = vunpack.c.l.b16 %v3320
        %v3336 = vpack.c.b16 %v3333, %v3332
        %v3337 = vpack.c.b16 %v3335, %v3334
        %v3341 = vsel %vm993, %v3313, 0
        %v3344 = vsel %vm993, %v3314, 0
        %v3347 = vsel %vm993, %v3315, 0
        %v3350 = vsel %vm993, %v3316, 0
        %3352 = vmatprep.subr.bf16.mxu0 0
        %3353 = vmatpush1.bf16.msra.mxu0 %v3336
        %3354 = vmatprep.subr.bf16.mxu0 0
        %3355 = vmatpush1.bf16.msra.mxu0 %v3337
        %3356 = vmatprep.subr.bf16.mxu0 0
        %3357 = vmatpush1.bf16.msra.mxu0 0
        %3358 = vmatprep.subr.bf16.mxu0 0
        %3359 = vmatpush1.bf16.msra.mxu0 0
        %3360 = vmatprep.subr.bf16.mxu0 0
        %3361 = vmatpush1.bf16.msra.mxu0 0
        %3362 = vmatprep.subr.bf16.mxu0 0
        %3363 = vmatpush1.bf16.msra.mxu0 0
        %3364 = vmatprep.subr.bf16.mxu0 0
        %3365 = vmatpush1.bf16.msra.mxu0 0
        %3366 = vmatprep.subr.bf16.mxu0 0
        %3367 = vmatpush1.bf16.msra.mxu0 0
        %3368 = vmatprep.subr.bf16.mxu0 0
        %3369 = vmatpush1.bf16.msra.mxu0 0
        %3370 = vmatprep.subr.bf16.mxu0 0
        %3371 = vmatpush1.bf16.msra.mxu0 0
        %3372 = vmatprep.subr.bf16.mxu0 0
        %3373 = vmatpush1.bf16.msra.mxu0 0
        %3374 = vmatprep.subr.bf16.mxu0 0
        %3375 = vmatpush1.bf16.msra.mxu0 0
        %3376 = vmatprep.subr.bf16.mxu0 0
        %3377 = vmatpush1.bf16.msra.mxu0 0
        %3378 = vmatprep.subr.bf16.mxu0 0
        %3379 = vmatpush1.bf16.msra.mxu0 0
        %3380 = vmatprep.subr.bf16.mxu0 0
        %3381 = vmatpush1.bf16.msra.mxu0 0
        %3382 = vmatprep.subr.bf16.mxu0 0
        %3383 = vmatpush1.bf16.msra.mxu0 0
        %3384 = vmatprep.mubr.bf16.mxu0 0
        %3385 = vmatmul.mubr.bf16.gmra.mrb[0].mxu0 %v3341
        %v3386 = vpop.f32.mrb[0].mxu0
        %v3387 = vadd.f32 %v3326, %v3386
        %v3388 = vpop.f32.mrb[0].mxu0
        %v3389 = vpop.f32.mrb[0].mxu0
        %v3390 = vadd.f32 %v3326, %v3389
        %v3391 = vpop.f32.mrb[0].mxu0
        %3392 = vmatprep.mubr.bf16.mxu0 0
        %3393 = vmatmul.mubr.bf16.gmra.mrb[0].mxu0 %v3344
        %v3394 = vpop.f32.mrb[0].mxu0
        %v3395 = vadd.f32 %v3326, %v3394
        %v3396 = vpop.f32.mrb[0].mxu0
        %v3397 = vpop.f32.mrb[0].mxu0
        %v3398 = vadd.f32 %v3326, %v3397
        %v3399 = vpop.f32.mrb[0].mxu0
        %3400 = vmatprep.mubr.bf16.mxu0 0
        %3401 = vmatmul.mubr.bf16.gmra.mrb[0].mxu0 %v3347
        %v3402 = vpop.f32.mrb[0].mxu0
        %v3403 = vadd.f32 %v3326, %v3402
        %v3404 = vpop.f32.mrb[0].mxu0
        %v3405 = vpop.f32.mrb[0].mxu0
        %v3406 = vadd.f32 %v3326, %v3405
        %v3407 = vpop.f32.mrb[0].mxu0
        %3408 = vmatprep.mubr.bf16.mxu0 0
        %3409 = vmatmul.mubr.bf16.gmra.mrb[0].mxu0 %v3350
        %v3410 = vpop.f32.mrb[0].mxu0
        %v3411 = vadd.f32 %v3326, %v3410
        %v3412 = vpop.f32.mrb[0].mxu0
        %v3413 = vpop.f32.mrb[0].mxu0
        %v3414 = vadd.f32 %v3326, %v3413
        %v3415 = vpop.f32.mrb[0].mxu0
        %3416 = vdwg.mxu0
        %3417 = vxpose.xlu0.b32.start [1/16] %v3387, 128
        %3418 = vxpose.xlu0.b32.cont [2/16] %v3390, 128
        %3419 = vxpose.xlu0.b32.cont [3/16] %v3395, 128
        %3420 = vxpose.xlu0.b32.cont [4/16] %v3398, 128
        %3421 = vxpose.xlu0.b32.cont [5/16] %v3403, 128
        %3422 = vxpose.xlu0.b32.cont [6/16] %v3406, 128
        %3423 = vxpose.xlu0.b32.cont [7/16] %v3411, 128
        %3424 = vxpose.xlu0.b32.cont [8/16] %v3414, 128
        %3425 = vxpose.xlu0.b32.cont [9/16] 0.0, 128
        %3426 = vxpose.xlu0.b32.cont [10/16] 0.0, 128
        %3427 = vxpose.xlu0.b32.cont [11/16] 0.0, 128
        %3428 = vxpose.xlu0.b32.cont [12/16] 0.0, 128
        %3429 = vxpose.xlu0.b32.cont [13/16] 0.0, 128
        %3430 = vxpose.xlu0.b32.cont [14/16] 0.0, 128
        %3431 = vxpose.xlu0.b32.cont [15/16] 0.0, 128
        %3432 = vxpose.xlu0.b32.end [16/16] 0.0, 128
        %v3433 = vpop.trf.xlu0
        %v3434 = vpop.trf.xlu0
        %v3435 = vpop.trf.xlu0
        %v3436 = vpop.trf.xlu0
        %v3437 = vpop.trf.xlu0
        %v3438 = vpop.trf.xlu0
        %v3439 = vpop.trf.xlu0
        %v3440 = vpop.trf.xlu0
        %v3441 = vpop.trf.xlu0
        %v3442 = vpop.trf.xlu0
        %v3443 = vpop.trf.xlu0
        %v3444 = vpop.trf.xlu0
        %v3445 = vpop.trf.xlu0
        %v3446 = vpop.trf.xlu0
        %v3447 = vpop.trf.xlu0
        %v3448 = vpop.trf.xlu0
        %3449 = vst.msk [vmem:[%s313] sm:$0xff] %vm1199, %v3433
        %3450 = vst.msk [vmem:[%s313 + $0x8] sm:$0xff] %vm1199, %v3434
        %3451 = vst.msk [vmem:[%s313 + $0x10] sm:$0xff] %vm1199, %v3435
        %3452 = vst.msk [vmem:[%s313 + $0x18] sm:$0xff] %vm1199, %v3436
        %s3453 = sand.u32 %s208, 1
        %s3454 = scalar_lea.sflag [#allocation3], %s3453
        %s3455 = sand.u32 %s208, 1
        %s3456 = smul.addr %s3455, 32
        %s3457 = scalar_lea.vmem [#allocation2], %s3456
        // Predicated region
        $region53: #{tpu_custom_call.1} parent=51 // pred_check
          %p3458 = pneg %p218
        $region54: #{tpu_custom_call.1} parent=51 // pred_check_branch
          %3460 = sbr.rel (%p3458) target = $region56
        $region55: #{tpu_custom_call.1} parent=51 // pred_region
          %s3462 = ssub.s32 512, 512
          %3463 = vsyncadd %s3454, %s3462
          %s3464 = smul.addr %s22, 4
          %s3465 = smul.addr %s3464, 128
          %s3466 = scalar_lea.hbm %s8, %s3465
          %s3467 = sshll.u32 %s3457, 4
          %s3468 = int_to_ptr.vmem [resolvable:$true] %s3467
          %3473 = dma.vmem_to_hbm [thread:$0]  %s3468, 512, %s3466, %s3454, 128, 128, 8
        $region56: #{tpu_custom_call.1} parent=51 // pred_fallthru
          _
      $region52: #{tpu_custom_call.1} parent=5 // pred_fallthru
        _
      %p3474 = scmp.le.s32.totalorder 2, %s17
      // Predicated region
      $region57: #{tpu_custom_call.1} parent=5 // pred_check
        %p3475 = pneg %p3474
      $region58: #{tpu_custom_call.1} parent=5 // pred_check_branch
        %3477 = sbr.rel (%p3475) target = $region60
      $region59: #{tpu_custom_call.1} parent=5 // pred_region
        %s3478 = ssub.s32 %s17, 2
        // Predicated region
        $region61: #{tpu_custom_call.1} parent=59 // pred_check
          %p3479 = pneg %p224
        $region62: #{tpu_custom_call.1} parent=59 // pred_check_branch
          %3481 = sbr.rel (%p3479) target = $region64
        $region63: #{tpu_custom_call.1} parent=59 // pred_region
          %s3482 = sand.u32 %s209, 1
          %s3483 = scalar_lea.sflag [#allocation3], %s3482
          %s3484 = sand.u32 %s209, 1
          %s3485 = smul.addr %s3484, 32
          %s3486 = scalar_lea.vmem [#allocation2], %s3485
          %3487 = dma.done %s3483, 512
        $region64: #{tpu_custom_call.1} parent=59 // pred_fallthru
          _
      $region60: #{tpu_custom_call.1} parent=5 // pred_fallthru
        _
    $region6: #{tpu_custom_call.1} parent=1 // loop_footer
      %s21 = sadd.s32 1, %s17
    $region7: #{tpu_custom_call.1} parent=1 // loop_footer_branch
      %16 = sbr.rel target = $region3
    $region8: #{tpu_custom_call.1} parent=1 // loop_exit
      _
    %3488 = vsyncpa [#allocation3], 1
    %s3489 = scalar_lea.sflag [#allocation3], 1
    %3490 = vsyncpa %s3489, 1

</llo_original>
